<compile_context>
chip_gen: v7x
topology: tpu7x:2x2x1
jax: 0.10.0
libtpu: 0.0.40
codegen_flags: <defaults>
</compile_context>

<pallas_src>
import numpy as np
import jax
import jax.numpy as jnp
from jax import lax
from jax.experimental import pallas as pl
from jax.experimental.pallas import tpu as pltpu

# ----- hyper-parameters from IOBM.__init__ -----
UNITS = 8                    # LSTM hidden size
EMB = 4                      # click-label embedding size
POS_EMB = 4                  # position embedding size
IN_DIM = POS_EMB + EMB       # LSTM input size (= 8)
D1 = IN_DIM                  # first additive-attention width (dense)
D2 = 2 * UNITS               # second additive-attention width (dense_1)

# dot_general dimension numbers contracting the LAST dim of both operands (A @ B.T)
_NT = (((1,), (1,)), ((), ()))


def _sigmoid(z):
    return 1.0 / (1.0 + jnp.exp(-z))


def _softmax_rows(z):
    """Softmax over the feature axis, which is axis 0 (sublanes) in this kernel."""
    m = jnp.max(z, axis=0, keepdims=True)
    e = jnp.exp(z - m)
    return e / jnp.sum(e, axis=0, keepdims=True)


def iobm_kernel(click_ref, letor_ref, pos_ref, ctabT_ref,
                wdc_ref, wds_ref, bd_ref,
                w1c_ref, w1s_ref, b1_ref,
                w2_ref, b2_ref,
                wih_ref, whh_ref, bl_ref,
                y_ref, pq_ref, xw_ref):
    """One batch block per grid step.

    Layout: features on sublanes, (position, batch) on lanes with column
    index = l * N + b  (N = batch tile).  All per-step LSTM slices are
    therefore lane-aligned contiguous views.
    """
    f32 = jnp.float32
    L, N = y_ref.shape                                       # list size, batch tile
    H = UNITS

    # ---- context: mean over the list dim, projected once per batch element ----
    letor = letor_ref[...].astype(f32)                       # (N, L, F)
    context = jnp.mean(letor, axis=1)                        # (N, F)
    ctx_d = lax.dot_general(wdc_ref[...], context, _NT,
                            preferred_element_type=f32)      # (8, N)   = Wdc @ ctx^T
    ctx_1 = lax.dot_general(w1c_ref[...], context, _NT,
                            preferred_element_type=f32)      # (16, N)  = W1c @ ctx^T
    # repeat per position (lane-block copies; columns stay position-major)
    ctx_d = jnp.concatenate([ctx_d] * L, axis=1)             # (8, L*N)
    ctx_1 = jnp.concatenate([ctx_1] * L, axis=1)             # (16, L*N)

    # ---- sequence features x^T = [position emb ; click emb] ----
    clickb = click_ref[...].astype(f32)                      # (1, L*N) position-major
    e0 = ctabT_ref[:, 0:1]                                   # (EMB, 1)
    e1 = ctabT_ref[:, 1:2]                                   # (EMB, 1)
    # exact 2-row embedding lookup for binary {0,1} click labels
    click_emb = e0 + clickb * (e1 - e0)                      # (EMB, L*N)
    xT = jnp.concatenate([pos_ref[...], click_emb], axis=0)  # (8, L*N)

    # ---- additive attention #1 (dense) ----
    logits = jnp.tanh(
        jnp.dot(wds_ref[...], xT, preferred_element_type=f32)
        + ctx_d + bd_ref[...])                               # (8, L*N)
    x1T = (_softmax_rows(logits) * D1) * xT                  # (8, L*N)

    # ---- bidirectional LSTM (shared weights), input projection hoisted ----
    xw_ref[...] = (jnp.dot(wih_ref[...], x1T, preferred_element_type=f32)
                   + bl_ref[...])                            # (4H, L*N), bias folded in
    whh = whh_ref[...]                                       # (4H, H)
    h = jnp.zeros((H, 2 * N), f32)                           # cols 0:N fwd, N:2N bwd
    c = jnp.zeros((H, 2 * N), f32)
    bias_only = jnp.broadcast_to(bl_ref[...], (4 * H, 2 * N))
    for t in range(L):                                       # 2*L serial steps total
        if t == 0:
            xin = bias_only                                  # zero-padded input step
        else:
            xin = jnp.concatenate(
                [xw_ref[:, (t - 1) * N:t * N],               # forward input: x1[t-1]
                 xw_ref[:, (L - t) * N:(L - t + 1) * N]],    # backward input: x1[L-t]
                axis=1)                                      # (4H, 2N)
        gates = xin + jnp.dot(whh, h, preferred_element_type=f32)
        i_g = _sigmoid(gates[0:H, :])
        f_g = _sigmoid(gates[H:2 * H, :])
        g_g = jnp.tanh(gates[2 * H:3 * H, :])
        o_g = _sigmoid(gates[3 * H:4 * H, :])
        c = f_g * c + i_g * g_g
        h = o_g * jnp.tanh(c)
        # p[t] and q[L-1-t] (q stored already flipped) -> aligned VMEM scratch writes
        pq_ref[0:H, t * N:(t + 1) * N] = h[:, 0:N]
        pq_ref[H:2 * H, (L - 1 - t) * N:(L - t) * N] = h[:, N:2 * N]
    pqT = pq_ref[...]                                        # (2H, L*N)

    # ---- additive attention #2 (dense_1) ----
    logits2 = jnp.tanh(
        jnp.dot(w1s_ref[...], pqT, preferred_element_type=f32)
        + ctx_1 + b1_ref[...])                               # (16, L*N)
    x2T = (_softmax_rows(logits2) * D2) * pqT                # (16, L*N)

    # ---- dense_2: one score per (position, batch) ----
    y_flat = jnp.sum(x2T * w2_ref[...], axis=0, keepdims=True) + b2_ref[...]  # (1, L*N)
    # regroup position-major columns into a lane-dense (L, N) output tile
    yT = jnp.concatenate([y_flat[:, l * N:(l + 1) * N] for l in range(L)],
                         axis=0)                             # (L, N)
    y_ref[...] = yT.astype(y_ref.dtype)


def _round_up(x, m):
    return ((x + m - 1) // m) * m


def iobm_forward(click_label, letor_features, params, *, b_tile=256):
    """JAX glue: batch blocking, layout prep, pallas_call."""
    B, L = click_label.shape
    F = letor_features.shape[-1]
    f32 = jnp.float32

    bt = min(int(b_tile), _round_up(B, 128))
    bt = _round_up(bt, 128)                                  # lane-aligned batch tile
    Bp = _round_up(B, bt)
    nb = Bp // bt

    click = click_label.astype(f32)
    letor = letor_features                                   # cast in-kernel (bf16 ok)
    if Bp != B:
        click = jnp.concatenate([click, jnp.zeros((Bp - B, L), f32)], axis=0)
        letor = jnp.concatenate(
            [letor, jnp.zeros((Bp - B, L, F), letor.dtype)], axis=0)

    # position-major click: click_pm[i, 0, l*bt + b] = click[i*bt + b, l]
    click_pm = click.reshape(nb, bt, L).transpose(0, 2, 1).reshape(nb, 1, L * bt)

    # parameters, pre-arranged for the transposed in-kernel layout
    pos_rep = jnp.repeat(params["pos_tab"][:L].astype(f32).T, bt, axis=1)  # (4, L*bt)
    ctabT = params["click_tab"].astype(f32).T                              # (4, 2)
    Wd = params["Wd"].astype(f32)
    wdc, wds = Wd[:, :F], Wd[:, F:]                                        # (8,F),(8,8)
    bd = params["bd"].astype(f32)[:, None]                                 # (8, 1)
    W1 = params["W1"].astype(f32)
    w1c, w1s = W1[:, :F], W1[:, F:]                                        # (16,F),(16,16)
    b1 = params["b1"].astype(f32)[:, None]                                 # (16, 1)
    w2 = params["W2"].astype(f32).T                                        # (16, 1)
    b2 = params["b2"].astype(f32)[:, None]                                 # (1, 1)
    wih = params["Wih"].astype(f32)                                        # (32, 8)
    whh = params["Whh"].astype(f32)                                        # (32, 8)
    bl = (params["bih"] + params["bhh"]).astype(f32)[:, None]              # (32, 1)

    def const_spec(shape):
        zeros = (0,) * len(shape)
        return pl.BlockSpec(shape, lambda i: zeros)          # resident across grid

    in_specs = [
        pl.BlockSpec((None, 1, L * bt), lambda i: (i, 0, 0)),   # click_pm
        pl.BlockSpec((bt, L, F), lambda i: (i, 0, 0)),          # letor
        const_spec(pos_rep.shape),
        const_spec(ctabT.shape),
        const_spec(wdc.shape), const_spec(wds.shape), const_spec(bd.shape),
        const_spec(w1c.shape), const_spec(w1s.shape), const_spec(b1.shape),
        const_spec(w2.shape), const_spec(b2.shape),
        const_spec(wih.shape), const_spec(whh.shape), const_spec(bl.shape),
    ]
    out_spec = pl.BlockSpec((None, L, bt), lambda i: (i, 0, 0))

    yb = pl.pallas_call(
        iobm_kernel,
        out_shape=jax.ShapeDtypeStruct((nb, L, bt), f32),
        grid=(nb,),
        in_specs=in_specs,
        out_specs=out_spec,
        scratch_shapes=[
            pltpu.VMEM((2 * UNITS, L * bt), f32),            # pq  (LSTM outputs)
            pltpu.VMEM((4 * UNITS, L * bt), f32),            # xw  (hoisted input proj)
        ],
        compiler_params=pltpu.CompilerParams(
            dimension_semantics=("parallel",)),              # megacore on v7x
    )(click_pm, letor, pos_rep, ctabT, wdc, wds, bd,
      w1c, w1s, b1, w2, b2, wih, whh, bl)

    # (nb, L, bt) -> (Bp, L) -> (B, L)
    y = yb.transpose(0, 2, 1).reshape(Bp, L)[:B]
    return y


# ---------------- pure-JAX reference (mirrors the PyTorch forward) ----------------
def iobm_reference(click, letor, params):
    B, L = click.shape
    F = letor.shape[-1]
    context = jnp.broadcast_to(jnp.mean(letor, axis=1, keepdims=True), (B, L, F))
    pos = jnp.broadcast_to(params["pos_tab"][:L][None], (B, L, POS_EMB))
    cl = params["click_tab"][click.astype(jnp.int32)]          # (B, L, EMB)
    x = jnp.concatenate([pos, cl], axis=-1)                    # (B, L, 8)

    xin = jnp.concatenate([context, x], axis=-1)
    a = jax.nn.softmax(jnp.tanh(xin @ params["Wd"].T + params["bd"]), axis=-1) * D1
    x1 = a * x

    H = UNITS

    def lstm(seq):                                             # (B, L, 8)
        def step(carry, x_t):
            h, c = carry
            gates = (x_t @ params["Wih"].T + h @ params["Whh"].T
                     + params["bih"] + params["bhh"])
            i = _sigmoid(gates[:, :H]); f = _sigmoid(gates[:, H:2 * H])
            g = jnp.tanh(gates[:, 2 * H:3 * H]); o = _sigmoid(gates[:, 3 * H:])
            c = f * c + i * g
            h = o * jnp.tanh(c)
            return (h, c), h
        h0 = jnp.zeros((seq.shape[0], H), jnp.float32)
        _, hs = lax.scan(step, (h0, h0), jnp.swapaxes(seq, 0, 1))
        return jnp.swapaxes(hs, 0, 1)

    zeros = jnp.zeros((B, 1, IN_DIM), jnp.float32)
    fwd = jnp.concatenate([zeros, x1[:, :-1]], axis=1)
    bwd = jnp.concatenate([zeros, x1[:, :0:-1]], axis=1)
    p = lstm(fwd)
    q = jnp.flip(lstm(bwd), axis=1)
    pq = jnp.concatenate([p, q], axis=-1)

    xin2 = jnp.concatenate([context, pq], axis=-1)
    a2 = jax.nn.softmax(jnp.tanh(xin2 @ params["W1"].T + params["b1"]), axis=-1) * D2
    x2 = a2 * pq
    y = x2 @ params["W2"].T + params["b2"]
    return y[..., 0]


def init_params(key, feature_size, rank_list_size):
    ks = jax.random.split(key, 12)
    s = 0.1
    return {
        "pos_tab": jax.random.normal(ks[0], (rank_list_size, POS_EMB), jnp.float32),
        "click_tab": jax.random.normal(ks[1], (2, EMB), jnp.float32),
        "Wd": s * jax.random.normal(ks[2], (D1, feature_size + IN_DIM), jnp.float32),
        "bd": s * jax.random.normal(ks[3], (D1,), jnp.float32),
        "W1": s * jax.random.normal(ks[4], (D2, feature_size + D2), jnp.float32),
        "b1": s * jax.random.normal(ks[5], (D2,), jnp.float32),
        "W2": s * jax.random.normal(ks[6], (1, D2), jnp.float32),
        "b2": s * jax.random.normal(ks[7], (1,), jnp.float32),
        "Wih": s * jax.random.normal(ks[8], (4 * UNITS, IN_DIM), jnp.float32),
        "Whh": s * jax.random.normal(ks[9], (4 * UNITS, UNITS), jnp.float32),
        "bih": s * jax.random.normal(ks[10], (4 * UNITS,), jnp.float32),
        "bhh": s * jax.random.normal(ks[11], (4 * UNITS,), jnp.float32),
    }


if __name__ == "__main__":
    L, F = 8, 16                          # rank_list_size, feature_size
    key = jax.random.PRNGKey(0)
    k1, k2, k3 = jax.random.split(key, 3)
    params = init_params(k3, F, L)

    # small demo shape
    B = 4
    click_label = (jax.random.uniform(k1, (B, L)) > 0.5).astype(jnp.float32)
    letor_features = jax.random.normal(k2, (B, L, F), jnp.float32)

    y = iobm_forward(click_label, letor_features, params)
    y = jax.block_until_ready(y)
    y_ref = iobm_reference(click_label, letor_features, params)
    np.testing.assert_allclose(np.asarray(y), np.asarray(y_ref),
                               atol=1e-3, rtol=1e-3)
    assert y.shape == (B, L)

    # exercise multiple batch blocks + tail padding
    B2 = 300
    k4, k5 = jax.random.split(k1)
    click2 = (jax.random.uniform(k4, (B2, L)) > 0.5).astype(jnp.float32)
    letor2 = jax.random.normal(k5, (B2, L, F), jnp.float32)
    y2 = jax.block_until_ready(iobm_forward(click2, letor2, params, b_tile=128))
    y2_ref = iobm_reference(click2, letor2, params)
    np.testing.assert_allclose(np.asarray(y2), np.asarray(y2_ref),
                               atol=1e-3, rtol=1e-3)

    print("KERNEL_OK")
</pallas_src>

<mosaic_0001>
module attributes {stable_mosaic.version = 11 : i64} {
  func.func @iobm_kernel(%arg0: i32, %arg1: memref<1x1x1024xf32, #tpu.memory_space<vmem>>, %arg2: memref<128x8x16xf32, #tpu.memory_space<vmem>>, %arg3: memref<4x1024xf32, #tpu.memory_space<vmem>>, %arg4: memref<4x2xf32, #tpu.memory_space<vmem>>, %arg5: memref<8x16xf32, #tpu.memory_space<vmem>>, %arg6: memref<8x8xf32, #tpu.memory_space<vmem>>, %arg7: memref<8x1xf32, #tpu.memory_space<vmem>>, %arg8: memref<16x16xf32, #tpu.memory_space<vmem>>, %arg9: memref<16x16xf32, #tpu.memory_space<vmem>>, %arg10: memref<16x1xf32, #tpu.memory_space<vmem>>, %arg11: memref<16x1xf32, #tpu.memory_space<vmem>>, %arg12: memref<1x1xf32, #tpu.memory_space<vmem>>, %arg13: memref<32x8xf32, #tpu.memory_space<vmem>>, %arg14: memref<32x8xf32, #tpu.memory_space<vmem>>, %arg15: memref<32x1xf32, #tpu.memory_space<vmem>>, %arg16: memref<1x8x128xf32, #tpu.memory_space<vmem>>, %arg17: memref<16x1024xf32, #tpu.memory_space<vmem>>, %arg18: memref<32x1024xf32, #tpu.memory_space<vmem>>) attributes {dimension_semantics = [#tpu.dimension_semantics<parallel>], iteration_bounds = array<i64: 1>, scalar_prefetch = 0 : i64, scratch_operands = 2 : i64, tpu.core_type = #tpu.core_type<tc>, window_params = [{transform_indices = @transform_0, window_bounds = array<i64: 1, 1, 1024>}, {transform_indices = @transform_1, window_bounds = array<i64: 128, 8, 16>}, {pipeline_mode = #tpu.pipeline_mode<synchronous>, transform_indices = @transform_2, window_bounds = array<i64: 4, 1024>}, {pipeline_mode = #tpu.pipeline_mode<synchronous>, transform_indices = @transform_3, window_bounds = array<i64: 4, 2>}, {pipeline_mode = #tpu.pipeline_mode<synchronous>, transform_indices = @transform_4, window_bounds = array<i64: 8, 16>}, {pipeline_mode = #tpu.pipeline_mode<synchronous>, transform_indices = @transform_5, window_bounds = array<i64: 8, 8>}, {pipeline_mode = #tpu.pipeline_mode<synchronous>, transform_indices = @transform_6, window_bounds = array<i64: 8, 1>}, {pipeline_mode = #tpu.pipeline_mode<synchronous>, transform_indices = @transform_7, window_bounds = array<i64: 16, 16>}, {pipeline_mode = #tpu.pipeline_mode<synchronous>, transform_indices = @transform_8, window_bounds = array<i64: 16, 16>}, {pipeline_mode = #tpu.pipeline_mode<synchronous>, transform_indices = @transform_9, window_bounds = array<i64: 16, 1>}, {pipeline_mode = #tpu.pipeline_mode<synchronous>, transform_indices = @transform_10, window_bounds = array<i64: 16, 1>}, {pipeline_mode = #tpu.pipeline_mode<synchronous>, transform_indices = @transform_11, window_bounds = array<i64: 1, 1>}, {pipeline_mode = #tpu.pipeline_mode<synchronous>, transform_indices = @transform_12, window_bounds = array<i64: 32, 8>}, {pipeline_mode = #tpu.pipeline_mode<synchronous>, transform_indices = @transform_13, window_bounds = array<i64: 32, 8>}, {pipeline_mode = #tpu.pipeline_mode<synchronous>, transform_indices = @transform_14, window_bounds = array<i64: 32, 1>}, {transform_indices = @transform_15, window_bounds = array<i64: 1, 8, 128>}]} {
    %c0 = arith.constant 0 : index
    %c0_0 = arith.constant 0 : index
    %c0_1 = arith.constant 0 : index
    %0 = vector.load %arg2[%c0, %c0_0, %c0_1] : memref<128x8x16xf32, #tpu.memory_space<vmem>>, vector<128x8x16xf32>
    %cst = arith.constant dense<0.000000e+00> : vector<128x16xf32>
    %1 = vector.multi_reduction <add>, %0, %cst [1] : vector<128x8x16xf32> to vector<128x16xf32>
    %cst_2 = arith.constant 8.000000e+00 : f32
    %2 = vector.broadcast %cst_2 : f32 to vector<128x16xf32>
    %3 = arith.divf %1, %2 : vector<128x16xf32>
    %c0_3 = arith.constant 0 : index
    %c0_4 = arith.constant 0 : index
    %4 = vector.load %arg5[%c0_3, %c0_4] : memref<8x16xf32, #tpu.memory_space<vmem>>, vector<8x16xf32>
    %cst_5 = arith.constant dense<0.000000e+00> : vector<8x128xf32>
    %5 = tpu.matmul %4, %3, %cst_5 {dimension_numbers = #tpu.dot_dimension_numbers<[1], [1], [0], [0], [0, 0, 1, 0], [], []>} : vector<8x16xf32>, vector<128x16xf32>, vector<8x128xf32> -> vector<8x128xf32>
    %c0_6 = arith.constant 0 : index
    %c0_7 = arith.constant 0 : index
    %6 = vector.load %arg8[%c0_6, %c0_7] : memref<16x16xf32, #tpu.memory_space<vmem>>, vector<16x16xf32>
    %cst_8 = arith.constant dense<0.000000e+00> : vector<16x128xf32>
    %7 = tpu.matmul %6, %3, %cst_8 {dimension_numbers = #tpu.dot_dimension_numbers<[1], [1], [0], [0], [0, 0, 1, 0], [], []>} : vector<16x16xf32>, vector<128x16xf32>, vector<16x128xf32> -> vector<16x128xf32>
    %8 = tpu.concatenate %5, %5, %5, %5, %5, %5, %5, %5 in 1 : vector<8x128xf32>, vector<8x128xf32>, vector<8x128xf32>, vector<8x128xf32>, vector<8x128xf32>, vector<8x128xf32>, vector<8x128xf32>, vector<8x128xf32> -> vector<8x1024xf32>
    %9 = tpu.concatenate %7, %7, %7, %7, %7, %7, %7, %7 in 1 : vector<16x128xf32>, vector<16x128xf32>, vector<16x128xf32>, vector<16x128xf32>, vector<16x128xf32>, vector<16x128xf32>, vector<16x128xf32>, vector<16x128xf32> -> vector<16x1024xf32>
    %c0_9 = arith.constant 0 : index
    %c0_10 = arith.constant 0 : index
    %c0_11 = arith.constant 0 : index
    %10 = vector.load %arg1[%c0_9, %c0_10, %c0_11] : memref<1x1x1024xf32, #tpu.memory_space<vmem>>, vector<1x1x1024xf32>
    %11 = vector.shape_cast %10 : vector<1x1x1024xf32> to vector<1x1024xf32>
    %c0_12 = arith.constant 0 : index
    %c0_13 = arith.constant 0 : index
    %12 = vector.load %arg4[%c0_12, %c0_13] : memref<4x2xf32, #tpu.memory_space<vmem>>, vector<4x1xf32>
    %c0_14 = arith.constant 0 : index
    %c1 = arith.constant 1 : index
    %13 = vector.load %arg4[%c0_14, %c1] : memref<4x2xf32, #tpu.memory_space<vmem>>, vector<4x1xf32>
    %14 = arith.subf %13, %12 : vector<4x1xf32>
    %15 = vector.broadcast %11 : vector<1x1024xf32> to vector<4x1024xf32>
    %16 = vector.broadcast %14 : vector<4x1xf32> to vector<4x1024xf32>
    %17 = arith.mulf %15, %16 : vector<4x1024xf32>
    %18 = vector.broadcast %12 : vector<4x1xf32> to vector<4x1024xf32>
    %19 = arith.addf %18, %17 : vector<4x1024xf32>
    %c0_15 = arith.constant 0 : index
    %c0_16 = arith.constant 0 : index
    %20 = vector.load %arg3[%c0_15, %c0_16] : memref<4x1024xf32, #tpu.memory_space<vmem>>, vector<4x1024xf32>
    %21 = tpu.concatenate %20, %19 in 0 : vector<4x1024xf32>, vector<4x1024xf32> -> vector<8x1024xf32>
    %c0_17 = arith.constant 0 : index
    %c0_18 = arith.constant 0 : index
    %22 = vector.load %arg6[%c0_17, %c0_18] : memref<8x8xf32, #tpu.memory_space<vmem>>, vector<8x8xf32>
    %cst_19 = arith.constant dense<0.000000e+00> : vector<8x1024xf32>
    %23 = tpu.matmul %22, %21, %cst_19 {dimension_numbers = #tpu.dot_dimension_numbers<[1], [0], [0], [1], [0, 0, 1, 1], [], []>} : vector<8x8xf32>, vector<8x1024xf32>, vector<8x1024xf32> -> vector<8x1024xf32>
    %24 = arith.addf %23, %8 : vector<8x1024xf32>
    %c0_20 = arith.constant 0 : index
    %c0_21 = arith.constant 0 : index
    %25 = vector.load %arg7[%c0_20, %c0_21] : memref<8x1xf32, #tpu.memory_space<vmem>>, vector<8x1xf32>
    %26 = vector.broadcast %25 : vector<8x1xf32> to vector<8x1024xf32>
    %27 = arith.addf %24, %26 : vector<8x1024xf32>
    %28 = math.tanh %27 : vector<8x1024xf32>
    %cst_22 = arith.constant dense<0xFF800000> : vector<1024xf32>
    %29 = vector.multi_reduction <maximumf>, %28, %cst_22 [0] : vector<8x1024xf32> to vector<1024xf32>
    %30 = vector.shape_cast %29 : vector<1024xf32> to vector<1x1024xf32>
    %31 = vector.broadcast %30 : vector<1x1024xf32> to vector<8x1024xf32>
    %32 = arith.subf %28, %31 : vector<8x1024xf32>
    %33 = math.exp %32 : vector<8x1024xf32>
    %cst_23 = arith.constant dense<0.000000e+00> : vector<1024xf32>
    %34 = vector.multi_reduction <add>, %33, %cst_23 [0] : vector<8x1024xf32> to vector<1024xf32>
    %35 = vector.shape_cast %34 : vector<1024xf32> to vector<1x1024xf32>
    %36 = vector.broadcast %35 : vector<1x1024xf32> to vector<8x1024xf32>
    %37 = arith.divf %33, %36 : vector<8x1024xf32>
    %cst_24 = arith.constant 8.000000e+00 : f32
    %38 = vector.broadcast %cst_24 : f32 to vector<8x1024xf32>
    %39 = arith.mulf %37, %38 : vector<8x1024xf32>
    %40 = arith.mulf %39, %21 : vector<8x1024xf32>
    %c0_25 = arith.constant 0 : index
    %c0_26 = arith.constant 0 : index
    %41 = vector.load %arg13[%c0_25, %c0_26] : memref<32x8xf32, #tpu.memory_space<vmem>>, vector<32x8xf32>
    %cst_27 = arith.constant dense<0.000000e+00> : vector<32x1024xf32>
    %42 = tpu.matmul %41, %40, %cst_27 {dimension_numbers = #tpu.dot_dimension_numbers<[1], [0], [0], [1], [0, 0, 1, 1], [], []>} : vector<32x8xf32>, vector<8x1024xf32>, vector<32x1024xf32> -> vector<32x1024xf32>
    %c0_28 = arith.constant 0 : index
    %c0_29 = arith.constant 0 : index
    %43 = vector.load %arg15[%c0_28, %c0_29] : memref<32x1xf32, #tpu.memory_space<vmem>>, vector<32x1xf32>
    %44 = vector.broadcast %43 : vector<32x1xf32> to vector<32x1024xf32>
    %45 = arith.addf %42, %44 : vector<32x1024xf32>
    %c0_30 = arith.constant 0 : index
    %c0_31 = arith.constant 0 : index
    %46 = vector.load %arg18[%c0_30, %c0_31] : memref<32x1024xf32, #tpu.memory_space<vmem>>, vector<32x1024xf32>
    tpu.vector_store %arg18[%c0_30, %c0_31], %45 {strides = array<i32>} : memref<32x1024xf32, #tpu.memory_space<vmem>>, vector<32x1024xf32>,
    %c0_32 = arith.constant 0 : index
    %c0_33 = arith.constant 0 : index
    %47 = vector.load %arg14[%c0_32, %c0_33] : memref<32x8xf32, #tpu.memory_space<vmem>>, vector<32x8xf32>
    %cst_34 = arith.constant 0.000000e+00 : f32
    %48 = vector.broadcast %cst_34 : f32 to vector<8x256xf32>
    %cst_35 = arith.constant 0.000000e+00 : f32
    %49 = vector.broadcast %cst_35 : f32 to vector<8x256xf32>
    %c0_36 = arith.constant 0 : index
    %c0_37 = arith.constant 0 : index
    %50 = vector.load %arg15[%c0_36, %c0_37] : memref<32x1xf32, #tpu.memory_space<vmem>>, vector<32x1xf32>
    %51 = vector.shape_cast %50 : vector<32x1xf32> to vector<32x1xf32>
    %52 = vector.broadcast %51 : vector<32x1xf32> to vector<32x256xf32>
    %cst_38 = arith.constant dense<0.000000e+00> : vector<32x256xf32>
    %53 = tpu.matmul %47, %48, %cst_38 {dimension_numbers = #tpu.dot_dimension_numbers<[1], [0], [0], [1], [0, 0, 1, 1], [], []>} : vector<32x8xf32>, vector<8x256xf32>, vector<32x256xf32> -> vector<32x256xf32>
    %54 = arith.addf %52, %53 : vector<32x256xf32>
    %55 = vector.extract_strided_slice %54 {offsets = [0, 0], sizes = [8, 256], strides = [1, 1]} : vector<32x256xf32> to vector<8x256xf32>
    %cst_39 = arith.constant 0.000000e+00 : f32
    %56 = vector.broadcast %cst_39 : f32 to vector<8x256xf32>
    %57 = arith.subf %56, %55 : vector<8x256xf32>
    %58 = math.exp %57 : vector<8x256xf32>
    %cst_40 = arith.constant 1.000000e+00 : f32
    %59 = vector.broadcast %cst_40 : f32 to vector<8x256xf32>
    %60 = arith.addf %59, %58 : vector<8x256xf32>
    %cst_41 = arith.constant 1.000000e+00 : f32
    %61 = vector.broadcast %cst_41 : f32 to vector<8x256xf32>
    %62 = arith.divf %61, %60 : vector<8x256xf32>
    %63 = vector.extract_strided_slice %54 {offsets = [8, 0], sizes = [8, 256], strides = [1, 1]} : vector<32x256xf32> to vector<8x256xf32>
    %cst_42 = arith.constant 0.000000e+00 : f32
    %64 = vector.broadcast %cst_42 : f32 to vector<8x256xf32>
    %65 = arith.subf %64, %63 : vector<8x256xf32>
    %66 = math.exp %65 : vector<8x256xf32>
    %cst_43 = arith.constant 1.000000e+00 : f32
    %67 = vector.broadcast %cst_43 : f32 to vector<8x256xf32>
    %68 = arith.addf %67, %66 : vector<8x256xf32>
    %cst_44 = arith.constant 1.000000e+00 : f32
    %69 = vector.broadcast %cst_44 : f32 to vector<8x256xf32>
    %70 = arith.divf %69, %68 : vector<8x256xf32>
    %71 = vector.extract_strided_slice %54 {offsets = [16, 0], sizes = [8, 256], strides = [1, 1]} : vector<32x256xf32> to vector<8x256xf32>
    %72 = math.tanh %71 : vector<8x256xf32>
    %73 = vector.extract_strided_slice %54 {offsets = [24, 0], sizes = [8, 256], strides = [1, 1]} : vector<32x256xf32> to vector<8x256xf32>
    %cst_45 = arith.constant 0.000000e+00 : f32
    %74 = vector.broadcast %cst_45 : f32 to vector<8x256xf32>
    %75 = arith.subf %74, %73 : vector<8x256xf32>
    %76 = math.exp %75 : vector<8x256xf32>
    %cst_46 = arith.constant 1.000000e+00 : f32
    %77 = vector.broadcast %cst_46 : f32 to vector<8x256xf32>
    %78 = arith.addf %77, %76 : vector<8x256xf32>
    %cst_47 = arith.constant 1.000000e+00 : f32
    %79 = vector.broadcast %cst_47 : f32 to vector<8x256xf32>
    %80 = arith.divf %79, %78 : vector<8x256xf32>
    %81 = arith.mulf %70, %49 : vector<8x256xf32>
    %82 = arith.mulf %62, %72 : vector<8x256xf32>
    %83 = arith.addf %81, %82 : vector<8x256xf32>
    %84 = math.tanh %83 : vector<8x256xf32>
    %85 = arith.mulf %80, %84 : vector<8x256xf32>
    %86 = vector.extract_strided_slice %85 {offsets = [0, 0], sizes = [8, 128], strides = [1, 1]} : vector<8x256xf32> to vector<8x128xf32>
    %c0_48 = arith.constant 0 : index
    %c0_49 = arith.constant 0 : index
    %87 = vector.load %arg17[%c0_48, %c0_49] : memref<16x1024xf32, #tpu.memory_space<vmem>>, vector<8x128xf32>
    tpu.vector_store %arg17[%c0_48, %c0_49], %86 {strides = array<i32>} : memref<16x1024xf32, #tpu.memory_space<vmem>>, vector<8x128xf32>,
    %88 = vector.extract_strided_slice %85 {offsets = [0, 128], sizes = [8, 128], strides = [1, 1]} : vector<8x256xf32> to vector<8x128xf32>
    %c8 = arith.constant 8 : index
    %c896 = arith.constant 896 : index
    %89 = vector.load %arg17[%c8, %c896] : memref<16x1024xf32, #tpu.memory_space<vmem>>, vector<8x128xf32>
    tpu.vector_store %arg17[%c8, %c896], %88 {strides = array<i32>} : memref<16x1024xf32, #tpu.memory_space<vmem>>, vector<8x128xf32>,
    %c0_50 = arith.constant 0 : index
    %c0_51 = arith.constant 0 : index
    %90 = vector.load %arg18[%c0_50, %c0_51] : memref<32x1024xf32, #tpu.memory_space<vmem>>, vector<32x128xf32>
    %c0_52 = arith.constant 0 : index
    %c896_53 = arith.constant 896 : index
    %91 = vector.load %arg18[%c0_52, %c896_53] : memref<32x1024xf32, #tpu.memory_space<vmem>>, vector<32x128xf32>
    %92 = tpu.concatenate %90, %91 in 1 : vector<32x128xf32>, vector<32x128xf32> -> vector<32x256xf32>
    %cst_54 = arith.constant dense<0.000000e+00> : vector<32x256xf32>
    %93 = tpu.matmul %47, %85, %cst_54 {dimension_numbers = #tpu.dot_dimension_numbers<[1], [0], [0], [1], [0, 0, 1, 1], [], []>} : vector<32x8xf32>, vector<8x256xf32>, vector<32x256xf32> -> vector<32x256xf32>
    %94 = arith.addf %92, %93 : vector<32x256xf32>
    %95 = vector.extract_strided_slice %94 {offsets = [0, 0], sizes = [8, 256], strides = [1, 1]} : vector<32x256xf32> to vector<8x256xf32>
    %cst_55 = arith.constant 0.000000e+00 : f32
    %96 = vector.broadcast %cst_55 : f32 to vector<8x256xf32>
    %97 = arith.subf %96, %95 : vector<8x256xf32>
    %98 = math.exp %97 : vector<8x256xf32>
    %cst_56 = arith.constant 1.000000e+00 : f32
    %99 = vector.broadcast %cst_56 : f32 to vector<8x256xf32>
    %100 = arith.addf %99, %98 : vector<8x256xf32>
    %cst_57 = arith.constant 1.000000e+00 : f32
    %101 = vector.broadcast %cst_57 : f32 to vector<8x256xf32>
    %102 = arith.divf %101, %100 : vector<8x256xf32>
    %103 = vector.extract_strided_slice %94 {offsets = [8, 0], sizes = [8, 256], strides = [1, 1]} : vector<32x256xf32> to vector<8x256xf32>
    %cst_58 = arith.constant 0.000000e+00 : f32
    %104 = vector.broadcast %cst_58 : f32 to vector<8x256xf32>
    %105 = arith.subf %104, %103 : vector<8x256xf32>
    %106 = math.exp %105 : vector<8x256xf32>
    %cst_59 = arith.constant 1.000000e+00 : f32
    %107 = vector.broadcast %cst_59 : f32 to vector<8x256xf32>
    %108 = arith.addf %107, %106 : vector<8x256xf32>
    %cst_60 = arith.constant 1.000000e+00 : f32
    %109 = vector.broadcast %cst_60 : f32 to vector<8x256xf32>
    %110 = arith.divf %109, %108 : vector<8x256xf32>
    %111 = vector.extract_strided_slice %94 {offsets = [16, 0], sizes = [8, 256], strides = [1, 1]} : vector<32x256xf32> to vector<8x256xf32>
    %112 = math.tanh %111 : vector<8x256xf32>
    %113 = vector.extract_strided_slice %94 {offsets = [24, 0], sizes = [8, 256], strides = [1, 1]} : vector<32x256xf32> to vector<8x256xf32>
    %cst_61 = arith.constant 0.000000e+00 : f32
    %114 = vector.broadcast %cst_61 : f32 to vector<8x256xf32>
    %115 = arith.subf %114, %113 : vector<8x256xf32>
    %116 = math.exp %115 : vector<8x256xf32>
    %cst_62 = arith.constant 1.000000e+00 : f32
    %117 = vector.broadcast %cst_62 : f32 to vector<8x256xf32>
    %118 = arith.addf %117, %116 : vector<8x256xf32>
    %cst_63 = arith.constant 1.000000e+00 : f32
    %119 = vector.broadcast %cst_63 : f32 to vector<8x256xf32>
    %120 = arith.divf %119, %118 : vector<8x256xf32>
    %121 = arith.mulf %110, %83 : vector<8x256xf32>
    %122 = arith.mulf %102, %112 : vector<8x256xf32>
    %123 = arith.addf %121, %122 : vector<8x256xf32>
    %124 = math.tanh %123 : vector<8x256xf32>
    %125 = arith.mulf %120, %124 : vector<8x256xf32>
    %126 = vector.extract_strided_slice %125 {offsets = [0, 0], sizes = [8, 128], strides = [1, 1]} : vector<8x256xf32> to vector<8x128xf32>
    %c0_64 = arith.constant 0 : index
    %c128 = arith.constant 128 : index
    %127 = vector.load %arg17[%c0_64, %c128] : memref<16x1024xf32, #tpu.memory_space<vmem>>, vector<8x128xf32>
    tpu.vector_store %arg17[%c0_64, %c128], %126 {strides = array<i32>} : memref<16x1024xf32, #tpu.memory_space<vmem>>, vector<8x128xf32>,
    %128 = vector.extract_strided_slice %125 {offsets = [0, 128], sizes = [8, 128], strides = [1, 1]} : vector<8x256xf32> to vector<8x128xf32>
    %c8_65 = arith.constant 8 : index
    %c768 = arith.constant 768 : index
    %129 = vector.load %arg17[%c8_65, %c768] : memref<16x1024xf32, #tpu.memory_space<vmem>>, vector<8x128xf32>
    tpu.vector_store %arg17[%c8_65, %c768], %128 {strides = array<i32>} : memref<16x1024xf32, #tpu.memory_space<vmem>>, vector<8x128xf32>,
    %c0_66 = arith.constant 0 : index
    %c128_67 = arith.constant 128 : index
    %130 = vector.load %arg18[%c0_66, %c128_67] : memref<32x1024xf32, #tpu.memory_space<vmem>>, vector<32x128xf32>
    %c0_68 = arith.constant 0 : index
    %c768_69 = arith.constant 768 : index
    %131 = vector.load %arg18[%c0_68, %c768_69] : memref<32x1024xf32, #tpu.memory_space<vmem>>, vector<32x128xf32>
    %132 = tpu.concatenate %130, %131 in 1 : vector<32x128xf32>, vector<32x128xf32> -> vector<32x256xf32>
    %cst_70 = arith.constant dense<0.000000e+00> : vector<32x256xf32>
    %133 = tpu.matmul %47, %125, %cst_70 {dimension_numbers = #tpu.dot_dimension_numbers<[1], [0], [0], [1], [0, 0, 1, 1], [], []>} : vector<32x8xf32>, vector<8x256xf32>, vector<32x256xf32> -> vector<32x256xf32>
    %134 = arith.addf %132, %133 : vector<32x256xf32>
    %135 = vector.extract_strided_slice %134 {offsets = [0, 0], sizes = [8, 256], strides = [1, 1]} : vector<32x256xf32> to vector<8x256xf32>
    %cst_71 = arith.constant 0.000000e+00 : f32
    %136 = vector.broadcast %cst_71 : f32 to vector<8x256xf32>
    %137 = arith.subf %136, %135 : vector<8x256xf32>
    %138 = math.exp %137 : vector<8x256xf32>
    %cst_72 = arith.constant 1.000000e+00 : f32
    %139 = vector.broadcast %cst_72 : f32 to vector<8x256xf32>
    %140 = arith.addf %139, %138 : vector<8x256xf32>
    %cst_73 = arith.constant 1.000000e+00 : f32
    %141 = vector.broadcast %cst_73 : f32 to vector<8x256xf32>
    %142 = arith.divf %141, %140 : vector<8x256xf32>
    %143 = vector.extract_strided_slice %134 {offsets = [8, 0], sizes = [8, 256], strides = [1, 1]} : vector<32x256xf32> to vector<8x256xf32>
    %cst_74 = arith.constant 0.000000e+00 : f32
    %144 = vector.broadcast %cst_74 : f32 to vector<8x256xf32>
    %145 = arith.subf %144, %143 : vector<8x256xf32>
    %146 = math.exp %145 : vector<8x256xf32>
    %cst_75 = arith.constant 1.000000e+00 : f32
    %147 = vector.broadcast %cst_75 : f32 to vector<8x256xf32>
    %148 = arith.addf %147, %146 : vector<8x256xf32>
    %cst_76 = arith.constant 1.000000e+00 : f32
    %149 = vector.broadcast %cst_76 : f32 to vector<8x256xf32>
    %150 = arith.divf %149, %148 : vector<8x256xf32>
    %151 = vector.extract_strided_slice %134 {offsets = [16, 0], sizes = [8, 256], strides = [1, 1]} : vector<32x256xf32> to vector<8x256xf32>
    %152 = math.tanh %151 : vector<8x256xf32>
    %153 = vector.extract_strided_slice %134 {offsets = [24, 0], sizes = [8, 256], strides = [1, 1]} : vector<32x256xf32> to vector<8x256xf32>
    %cst_77 = arith.constant 0.000000e+00 : f32
    %154 = vector.broadcast %cst_77 : f32 to vector<8x256xf32>
    %155 = arith.subf %154, %153 : vector<8x256xf32>
    %156 = math.exp %155 : vector<8x256xf32>
    %cst_78 = arith.constant 1.000000e+00 : f32
    %157 = vector.broadcast %cst_78 : f32 to vector<8x256xf32>
    %158 = arith.addf %157, %156 : vector<8x256xf32>
    %cst_79 = arith.constant 1.000000e+00 : f32
    %159 = vector.broadcast %cst_79 : f32 to vector<8x256xf32>
    %160 = arith.divf %159, %158 : vector<8x256xf32>
    %161 = arith.mulf %150, %123 : vector<8x256xf32>
    %162 = arith.mulf %142, %152 : vector<8x256xf32>
    %163 = arith.addf %161, %162 : vector<8x256xf32>
    %164 = math.tanh %163 : vector<8x256xf32>
    %165 = arith.mulf %160, %164 : vector<8x256xf32>
    %166 = vector.extract_strided_slice %165 {offsets = [0, 0], sizes = [8, 128], strides = [1, 1]} : vector<8x256xf32> to vector<8x128xf32>
    %c0_80 = arith.constant 0 : index
    %c256 = arith.constant 256 : index
    %167 = vector.load %arg17[%c0_80, %c256] : memref<16x1024xf32, #tpu.memory_space<vmem>>, vector<8x128xf32>
    tpu.vector_store %arg17[%c0_80, %c256], %166 {strides = array<i32>} : memref<16x1024xf32, #tpu.memory_space<vmem>>, vector<8x128xf32>,
    %168 = vector.extract_strided_slice %165 {offsets = [0, 128], sizes = [8, 128], strides = [1, 1]} : vector<8x256xf32> to vector<8x128xf32>
    %c8_81 = arith.constant 8 : index
    %c640 = arith.constant 640 : index
    %169 = vector.load %arg17[%c8_81, %c640] : memref<16x1024xf32, #tpu.memory_space<vmem>>, vector<8x128xf32>
    tpu.vector_store %arg17[%c8_81, %c640], %168 {strides = array<i32>} : memref<16x1024xf32, #tpu.memory_space<vmem>>, vector<8x128xf32>,
    %c0_82 = arith.constant 0 : index
    %c256_83 = arith.constant 256 : index
    %170 = vector.load %arg18[%c0_82, %c256_83] : memref<32x1024xf32, #tpu.memory_space<vmem>>, vector<32x128xf32>
    %c0_84 = arith.constant 0 : index
    %c640_85 = arith.constant 640 : index
    %171 = vector.load %arg18[%c0_84, %c640_85] : memref<32x1024xf32, #tpu.memory_space<vmem>>, vector<32x128xf32>
    %172 = tpu.concatenate %170, %171 in 1 : vector<32x128xf32>, vector<32x128xf32> -> vector<32x256xf32>
    %cst_86 = arith.constant dense<0.000000e+00> : vector<32x256xf32>
    %173 = tpu.matmul %47, %165, %cst_86 {dimension_numbers = #tpu.dot_dimension_numbers<[1], [0], [0], [1], [0, 0, 1, 1], [], []>} : vector<32x8xf32>, vector<8x256xf32>, vector<32x256xf32> -> vector<32x256xf32>
    %174 = arith.addf %172, %173 : vector<32x256xf32>
    %175 = vector.extract_strided_slice %174 {offsets = [0, 0], sizes = [8, 256], strides = [1, 1]} : vector<32x256xf32> to vector<8x256xf32>
    %cst_87 = arith.constant 0.000000e+00 : f32
    %176 = vector.broadcast %cst_87 : f32 to vector<8x256xf32>
    %177 = arith.subf %176, %175 : vector<8x256xf32>
    %178 = math.exp %177 : vector<8x256xf32>
    %cst_88 = arith.constant 1.000000e+00 : f32
    %179 = vector.broadcast %cst_88 : f32 to vector<8x256xf32>
    %180 = arith.addf %179, %178 : vector<8x256xf32>
    %cst_89 = arith.constant 1.000000e+00 : f32
    %181 = vector.broadcast %cst_89 : f32 to vector<8x256xf32>
    %182 = arith.divf %181, %180 : vector<8x256xf32>
    %183 = vector.extract_strided_slice %174 {offsets = [8, 0], sizes = [8, 256], strides = [1, 1]} : vector<32x256xf32> to vector<8x256xf32>
    %cst_90 = arith.constant 0.000000e+00 : f32
    %184 = vector.broadcast %cst_90 : f32 to vector<8x256xf32>
    %185 = arith.subf %184, %183 : vector<8x256xf32>
    %186 = math.exp %185 : vector<8x256xf32>
    %cst_91 = arith.constant 1.000000e+00 : f32
    %187 = vector.broadcast %cst_91 : f32 to vector<8x256xf32>
    %188 = arith.addf %187, %186 : vector<8x256xf32>
    %cst_92 = arith.constant 1.000000e+00 : f32
    %189 = vector.broadcast %cst_92 : f32 to vector<8x256xf32>
    %190 = arith.divf %189, %188 : vector<8x256xf32>
    %191 = vector.extract_strided_slice %174 {offsets = [16, 0], sizes = [8, 256], strides = [1, 1]} : vector<32x256xf32> to vector<8x256xf32>
    %192 = math.tanh %191 : vector<8x256xf32>
    %193 = vector.extract_strided_slice %174 {offsets = [24, 0], sizes = [8, 256], strides = [1, 1]} : vector<32x256xf32> to vector<8x256xf32>
    %cst_93 = arith.constant 0.000000e+00 : f32
    %194 = vector.broadcast %cst_93 : f32 to vector<8x256xf32>
    %195 = arith.subf %194, %193 : vector<8x256xf32>
    %196 = math.exp %195 : vector<8x256xf32>
    %cst_94 = arith.constant 1.000000e+00 : f32
    %197 = vector.broadcast %cst_94 : f32 to vector<8x256xf32>
    %198 = arith.addf %197, %196 : vector<8x256xf32>
    %cst_95 = arith.constant 1.000000e+00 : f32
    %199 = vector.broadcast %cst_95 : f32 to vector<8x256xf32>
    %200 = arith.divf %199, %198 : vector<8x256xf32>
    %201 = arith.mulf %190, %163 : vector<8x256xf32>
    %202 = arith.mulf %182, %192 : vector<8x256xf32>
    %203 = arith.addf %201, %202 : vector<8x256xf32>
    %204 = math.tanh %203 : vector<8x256xf32>
    %205 = arith.mulf %200, %204 : vector<8x256xf32>
    %206 = vector.extract_strided_slice %205 {offsets = [0, 0], sizes = [8, 128], strides = [1, 1]} : vector<8x256xf32> to vector<8x128xf32>
    %c0_96 = arith.constant 0 : index
    %c384 = arith.constant 384 : index
    %207 = vector.load %arg17[%c0_96, %c384] : memref<16x1024xf32, #tpu.memory_space<vmem>>, vector<8x128xf32>
    tpu.vector_store %arg17[%c0_96, %c384], %206 {strides = array<i32>} : memref<16x1024xf32, #tpu.memory_space<vmem>>, vector<8x128xf32>,
    %208 = vector.extract_strided_slice %205 {offsets = [0, 128], sizes = [8, 128], strides = [1, 1]} : vector<8x256xf32> to vector<8x128xf32>
    %c8_97 = arith.constant 8 : index
    %c512 = arith.constant 512 : index
    %209 = vector.load %arg17[%c8_97, %c512] : memref<16x1024xf32, #tpu.memory_space<vmem>>, vector<8x128xf32>
    tpu.vector_store %arg17[%c8_97, %c512], %208 {strides = array<i32>} : memref<16x1024xf32, #tpu.memory_space<vmem>>, vector<8x128xf32>,
    %c0_98 = arith.constant 0 : index
    %c384_99 = arith.constant 384 : index
    %210 = vector.load %arg18[%c0_98, %c384_99] : memref<32x1024xf32, #tpu.memory_space<vmem>>, vector<32x128xf32>
    %c0_100 = arith.constant 0 : index
    %c512_101 = arith.constant 512 : index
    %211 = vector.load %arg18[%c0_100, %c512_101] : memref<32x1024xf32, #tpu.memory_space<vmem>>, vector<32x128xf32>
    %212 = tpu.concatenate %210, %211 in 1 : vector<32x128xf32>, vector<32x128xf32> -> vector<32x256xf32>
    %cst_102 = arith.constant dense<0.000000e+00> : vector<32x256xf32>
    %213 = tpu.matmul %47, %205, %cst_102 {dimension_numbers = #tpu.dot_dimension_numbers<[1], [0], [0], [1], [0, 0, 1, 1], [], []>} : vector<32x8xf32>, vector<8x256xf32>, vector<32x256xf32> -> vector<32x256xf32>
    %214 = arith.addf %212, %213 : vector<32x256xf32>
    %215 = vector.extract_strided_slice %214 {offsets = [0, 0], sizes = [8, 256], strides = [1, 1]} : vector<32x256xf32> to vector<8x256xf32>
    %cst_103 = arith.constant 0.000000e+00 : f32
    %216 = vector.broadcast %cst_103 : f32 to vector<8x256xf32>
    %217 = arith.subf %216, %215 : vector<8x256xf32>
    %218 = math.exp %217 : vector<8x256xf32>
    %cst_104 = arith.constant 1.000000e+00 : f32
    %219 = vector.broadcast %cst_104 : f32 to vector<8x256xf32>
    %220 = arith.addf %219, %218 : vector<8x256xf32>
    %cst_105 = arith.constant 1.000000e+00 : f32
    %221 = vector.broadcast %cst_105 : f32 to vector<8x256xf32>
    %222 = arith.divf %221, %220 : vector<8x256xf32>
    %223 = vector.extract_strided_slice %214 {offsets = [8, 0], sizes = [8, 256], strides = [1, 1]} : vector<32x256xf32> to vector<8x256xf32>
    %cst_106 = arith.constant 0.000000e+00 : f32
    %224 = vector.broadcast %cst_106 : f32 to vector<8x256xf32>
    %225 = arith.subf %224, %223 : vector<8x256xf32>
    %226 = math.exp %225 : vector<8x256xf32>
    %cst_107 = arith.constant 1.000000e+00 : f32
    %227 = vector.broadcast %cst_107 : f32 to vector<8x256xf32>
    %228 = arith.addf %227, %226 : vector<8x256xf32>
    %cst_108 = arith.constant 1.000000e+00 : f32
    %229 = vector.broadcast %cst_108 : f32 to vector<8x256xf32>
    %230 = arith.divf %229, %228 : vector<8x256xf32>
    %231 = vector.extract_strided_slice %214 {offsets = [16, 0], sizes = [8, 256], strides = [1, 1]} : vector<32x256xf32> to vector<8x256xf32>
    %232 = math.tanh %231 : vector<8x256xf32>
    %233 = vector.extract_strided_slice %214 {offsets = [24, 0], sizes = [8, 256], strides = [1, 1]} : vector<32x256xf32> to vector<8x256xf32>
    %cst_109 = arith.constant 0.000000e+00 : f32
    %234 = vector.broadcast %cst_109 : f32 to vector<8x256xf32>
    %235 = arith.subf %234, %233 : vector<8x256xf32>
    %236 = math.exp %235 : vector<8x256xf32>
    %cst_110 = arith.constant 1.000000e+00 : f32
    %237 = vector.broadcast %cst_110 : f32 to vector<8x256xf32>
    %238 = arith.addf %237, %236 : vector<8x256xf32>
    %cst_111 = arith.constant 1.000000e+00 : f32
    %239 = vector.broadcast %cst_111 : f32 to vector<8x256xf32>
    %240 = arith.divf %239, %238 : vector<8x256xf32>
    %241 = arith.mulf %230, %203 : vector<8x256xf32>
    %242 = arith.mulf %222, %232 : vector<8x256xf32>
    %243 = arith.addf %241, %242 : vector<8x256xf32>
    %244 = math.tanh %243 : vector<8x256xf32>
    %245 = arith.mulf %240, %244 : vector<8x256xf32>
    %246 = vector.extract_strided_slice %245 {offsets = [0, 0], sizes = [8, 128], strides = [1, 1]} : vector<8x256xf32> to vector<8x128xf32>
    %c0_112 = arith.constant 0 : index
    %c512_113 = arith.constant 512 : index
    %247 = vector.load %arg17[%c0_112, %c512_113] : memref<16x1024xf32, #tpu.memory_space<vmem>>, vector<8x128xf32>
    tpu.vector_store %arg17[%c0_112, %c512_113], %246 {strides = array<i32>} : memref<16x1024xf32, #tpu.memory_space<vmem>>, vector<8x128xf32>,
    %248 = vector.extract_strided_slice %245 {offsets = [0, 128], sizes = [8, 128], strides = [1, 1]} : vector<8x256xf32> to vector<8x128xf32>
    %c8_114 = arith.constant 8 : index
    %c384_115 = arith.constant 384 : index
    %249 = vector.load %arg17[%c8_114, %c384_115] : memref<16x1024xf32, #tpu.memory_space<vmem>>, vector<8x128xf32>
    tpu.vector_store %arg17[%c8_114, %c384_115], %248 {strides = array<i32>} : memref<16x1024xf32, #tpu.memory_space<vmem>>, vector<8x128xf32>,
    %c0_116 = arith.constant 0 : index
    %c512_117 = arith.constant 512 : index
    %250 = vector.load %arg18[%c0_116, %c512_117] : memref<32x1024xf32, #tpu.memory_space<vmem>>, vector<32x128xf32>
    %c0_118 = arith.constant 0 : index
    %c384_119 = arith.constant 384 : index
    %251 = vector.load %arg18[%c0_118, %c384_119] : memref<32x1024xf32, #tpu.memory_space<vmem>>, vector<32x128xf32>
    %252 = tpu.concatenate %250, %251 in 1 : vector<32x128xf32>, vector<32x128xf32> -> vector<32x256xf32>
    %cst_120 = arith.constant dense<0.000000e+00> : vector<32x256xf32>
    %253 = tpu.matmul %47, %245, %cst_120 {dimension_numbers = #tpu.dot_dimension_numbers<[1], [0], [0], [1], [0, 0, 1, 1], [], []>} : vector<32x8xf32>, vector<8x256xf32>, vector<32x256xf32> -> vector<32x256xf32>
    %254 = arith.addf %252, %253 : vector<32x256xf32>
    %255 = vector.extract_strided_slice %254 {offsets = [0, 0], sizes = [8, 256], strides = [1, 1]} : vector<32x256xf32> to vector<8x256xf32>
    %cst_121 = arith.constant 0.000000e+00 : f32
    %256 = vector.broadcast %cst_121 : f32 to vector<8x256xf32>
    %257 = arith.subf %256, %255 : vector<8x256xf32>
    %258 = math.exp %257 : vector<8x256xf32>
    %cst_122 = arith.constant 1.000000e+00 : f32
    %259 = vector.broadcast %cst_122 : f32 to vector<8x256xf32>
    %260 = arith.addf %259, %258 : vector<8x256xf32>
    %cst_123 = arith.constant 1.000000e+00 : f32
    %261 = vector.broadcast %cst_123 : f32 to vector<8x256xf32>
    %262 = arith.divf %261, %260 : vector<8x256xf32>
    %263 = vector.extract_strided_slice %254 {offsets = [8, 0], sizes = [8, 256], strides = [1, 1]} : vector<32x256xf32> to vector<8x256xf32>
    %cst_124 = arith.constant 0.000000e+00 : f32
    %264 = vector.broadcast %cst_124 : f32 to vector<8x256xf32>
    %265 = arith.subf %264, %263 : vector<8x256xf32>
    %266 = math.exp %265 : vector<8x256xf32>
    %cst_125 = arith.constant 1.000000e+00 : f32
    %267 = vector.broadcast %cst_125 : f32 to vector<8x256xf32>
    %268 = arith.addf %267, %266 : vector<8x256xf32>
    %cst_126 = arith.constant 1.000000e+00 : f32
    %269 = vector.broadcast %cst_126 : f32 to vector<8x256xf32>
    %270 = arith.divf %269, %268 : vector<8x256xf32>
    %271 = vector.extract_strided_slice %254 {offsets = [16, 0], sizes = [8, 256], strides = [1, 1]} : vector<32x256xf32> to vector<8x256xf32>
    %272 = math.tanh %271 : vector<8x256xf32>
    %273 = vector.extract_strided_slice %254 {offsets = [24, 0], sizes = [8, 256], strides = [1, 1]} : vector<32x256xf32> to vector<8x256xf32>
    %cst_127 = arith.constant 0.000000e+00 : f32
    %274 = vector.broadcast %cst_127 : f32 to vector<8x256xf32>
    %275 = arith.subf %274, %273 : vector<8x256xf32>
    %276 = math.exp %275 : vector<8x256xf32>
    %cst_128 = arith.constant 1.000000e+00 : f32
    %277 = vector.broadcast %cst_128 : f32 to vector<8x256xf32>
    %278 = arith.addf %277, %276 : vector<8x256xf32>
    %cst_129 = arith.constant 1.000000e+00 : f32
    %279 = vector.broadcast %cst_129 : f32 to vector<8x256xf32>
    %280 = arith.divf %279, %278 : vector<8x256xf32>
    %281 = arith.mulf %270, %243 : vector<8x256xf32>
    %282 = arith.mulf %262, %272 : vector<8x256xf32>
    %283 = arith.addf %281, %282 : vector<8x256xf32>
    %284 = math.tanh %283 : vector<8x256xf32>
    %285 = arith.mulf %280, %284 : vector<8x256xf32>
    %286 = vector.extract_strided_slice %285 {offsets = [0, 0], sizes = [8, 128], strides = [1, 1]} : vector<8x256xf32> to vector<8x128xf32>
    %c0_130 = arith.constant 0 : index
    %c640_131 = arith.constant 640 : index
    %287 = vector.load %arg17[%c0_130, %c640_131] : memref<16x1024xf32, #tpu.memory_space<vmem>>, vector<8x128xf32>
    tpu.vector_store %arg17[%c0_130, %c640_131], %286 {strides = array<i32>} : memref<16x1024xf32, #tpu.memory_space<vmem>>, vector<8x128xf32>,
    %288 = vector.extract_strided_slice %285 {offsets = [0, 128], sizes = [8, 128], strides = [1, 1]} : vector<8x256xf32> to vector<8x128xf32>
    %c8_132 = arith.constant 8 : index
    %c256_133 = arith.constant 256 : index
    %289 = vector.load %arg17[%c8_132, %c256_133] : memref<16x1024xf32, #tpu.memory_space<vmem>>, vector<8x128xf32>
    tpu.vector_store %arg17[%c8_132, %c256_133], %288 {strides = array<i32>} : memref<16x1024xf32, #tpu.memory_space<vmem>>, vector<8x128xf32>,
    %c0_134 = arith.constant 0 : index
    %c640_135 = arith.constant 640 : index
    %290 = vector.load %arg18[%c0_134, %c640_135] : memref<32x1024xf32, #tpu.memory_space<vmem>>, vector<32x128xf32>
    %c0_136 = arith.constant 0 : index
    %c256_137 = arith.constant 256 : index
    %291 = vector.load %arg18[%c0_136, %c256_137] : memref<32x1024xf32, #tpu.memory_space<vmem>>, vector<32x128xf32>
    %292 = tpu.concatenate %290, %291 in 1 : vector<32x128xf32>, vector<32x128xf32> -> vector<32x256xf32>
    %cst_138 = arith.constant dense<0.000000e+00> : vector<32x256xf32>
    %293 = tpu.matmul %47, %285, %cst_138 {dimension_numbers = #tpu.dot_dimension_numbers<[1], [0], [0], [1], [0, 0, 1, 1], [], []>} : vector<32x8xf32>, vector<8x256xf32>, vector<32x256xf32> -> vector<32x256xf32>
    %294 = arith.addf %292, %293 : vector<32x256xf32>
    %295 = vector.extract_strided_slice %294 {offsets = [0, 0], sizes = [8, 256], strides = [1, 1]} : vector<32x256xf32> to vector<8x256xf32>
    %cst_139 = arith.constant 0.000000e+00 : f32
    %296 = vector.broadcast %cst_139 : f32 to vector<8x256xf32>
    %297 = arith.subf %296, %295 : vector<8x256xf32>
    %298 = math.exp %297 : vector<8x256xf32>
    %cst_140 = arith.constant 1.000000e+00 : f32
    %299 = vector.broadcast %cst_140 : f32 to vector<8x256xf32>
    %300 = arith.addf %299, %298 : vector<8x256xf32>
    %cst_141 = arith.constant 1.000000e+00 : f32
    %301 = vector.broadcast %cst_141 : f32 to vector<8x256xf32>
    %302 = arith.divf %301, %300 : vector<8x256xf32>
    %303 = vector.extract_strided_slice %294 {offsets = [8, 0], sizes = [8, 256], strides = [1, 1]} : vector<32x256xf32> to vector<8x256xf32>
    %cst_142 = arith.constant 0.000000e+00 : f32
    %304 = vector.broadcast %cst_142 : f32 to vector<8x256xf32>
    %305 = arith.subf %304, %303 : vector<8x256xf32>
    %306 = math.exp %305 : vector<8x256xf32>
    %cst_143 = arith.constant 1.000000e+00 : f32
    %307 = vector.broadcast %cst_143 : f32 to vector<8x256xf32>
    %308 = arith.addf %307, %306 : vector<8x256xf32>
    %cst_144 = arith.constant 1.000000e+00 : f32
    %309 = vector.broadcast %cst_144 : f32 to vector<8x256xf32>
    %310 = arith.divf %309, %308 : vector<8x256xf32>
    %311 = vector.extract_strided_slice %294 {offsets = [16, 0], sizes = [8, 256], strides = [1, 1]} : vector<32x256xf32> to vector<8x256xf32>
    %312 = math.tanh %311 : vector<8x256xf32>
    %313 = vector.extract_strided_slice %294 {offsets = [24, 0], sizes = [8, 256], strides = [1, 1]} : vector<32x256xf32> to vector<8x256xf32>
    %cst_145 = arith.constant 0.000000e+00 : f32
    %314 = vector.broadcast %cst_145 : f32 to vector<8x256xf32>
    %315 = arith.subf %314, %313 : vector<8x256xf32>
    %316 = math.exp %315 : vector<8x256xf32>
    %cst_146 = arith.constant 1.000000e+00 : f32
    %317 = vector.broadcast %cst_146 : f32 to vector<8x256xf32>
    %318 = arith.addf %317, %316 : vector<8x256xf32>
    %cst_147 = arith.constant 1.000000e+00 : f32
    %319 = vector.broadcast %cst_147 : f32 to vector<8x256xf32>
    %320 = arith.divf %319, %318 : vector<8x256xf32>
    %321 = arith.mulf %310, %283 : vector<8x256xf32>
    %322 = arith.mulf %302, %312 : vector<8x256xf32>
    %323 = arith.addf %321, %322 : vector<8x256xf32>
    %324 = math.tanh %323 : vector<8x256xf32>
    %325 = arith.mulf %320, %324 : vector<8x256xf32>
    %326 = vector.extract_strided_slice %325 {offsets = [0, 0], sizes = [8, 128], strides = [1, 1]} : vector<8x256xf32> to vector<8x128xf32>
    %c0_148 = arith.constant 0 : index
    %c768_149 = arith.constant 768 : index
    %327 = vector.load %arg17[%c0_148, %c768_149] : memref<16x1024xf32, #tpu.memory_space<vmem>>, vector<8x128xf32>
    tpu.vector_store %arg17[%c0_148, %c768_149], %326 {strides = array<i32>} : memref<16x1024xf32, #tpu.memory_space<vmem>>, vector<8x128xf32>,
    %328 = vector.extract_strided_slice %325 {offsets = [0, 128], sizes = [8, 128], strides = [1, 1]} : vector<8x256xf32> to vector<8x128xf32>
    %c8_150 = arith.constant 8 : index
    %c128_151 = arith.constant 128 : index
    %329 = vector.load %arg17[%c8_150, %c128_151] : memref<16x1024xf32, #tpu.memory_space<vmem>>, vector<8x128xf32>
    tpu.vector_store %arg17[%c8_150, %c128_151], %328 {strides = array<i32>} : memref<16x1024xf32, #tpu.memory_space<vmem>>, vector<8x128xf32>,
    %c0_152 = arith.constant 0 : index
    %c768_153 = arith.constant 768 : index
    %330 = vector.load %arg18[%c0_152, %c768_153] : memref<32x1024xf32, #tpu.memory_space<vmem>>, vector<32x128xf32>
    %c0_154 = arith.constant 0 : index
    %c128_155 = arith.constant 128 : index
    %331 = vector.load %arg18[%c0_154, %c128_155] : memref<32x1024xf32, #tpu.memory_space<vmem>>, vector<32x128xf32>
    %332 = tpu.concatenate %330, %331 in 1 : vector<32x128xf32>, vector<32x128xf32> -> vector<32x256xf32>
    %cst_156 = arith.constant dense<0.000000e+00> : vector<32x256xf32>
    %333 = tpu.matmul %47, %325, %cst_156 {dimension_numbers = #tpu.dot_dimension_numbers<[1], [0], [0], [1], [0, 0, 1, 1], [], []>} : vector<32x8xf32>, vector<8x256xf32>, vector<32x256xf32> -> vector<32x256xf32>
    %334 = arith.addf %332, %333 : vector<32x256xf32>
    %335 = vector.extract_strided_slice %334 {offsets = [0, 0], sizes = [8, 256], strides = [1, 1]} : vector<32x256xf32> to vector<8x256xf32>
    %cst_157 = arith.constant 0.000000e+00 : f32
    %336 = vector.broadcast %cst_157 : f32 to vector<8x256xf32>
    %337 = arith.subf %336, %335 : vector<8x256xf32>
    %338 = math.exp %337 : vector<8x256xf32>
    %cst_158 = arith.constant 1.000000e+00 : f32
    %339 = vector.broadcast %cst_158 : f32 to vector<8x256xf32>
    %340 = arith.addf %339, %338 : vector<8x256xf32>
    %cst_159 = arith.constant 1.000000e+00 : f32
    %341 = vector.broadcast %cst_159 : f32 to vector<8x256xf32>
    %342 = arith.divf %341, %340 : vector<8x256xf32>
    %343 = vector.extract_strided_slice %334 {offsets = [8, 0], sizes = [8, 256], strides = [1, 1]} : vector<32x256xf32> to vector<8x256xf32>
    %cst_160 = arith.constant 0.000000e+00 : f32
    %344 = vector.broadcast %cst_160 : f32 to vector<8x256xf32>
    %345 = arith.subf %344, %343 : vector<8x256xf32>
    %346 = math.exp %345 : vector<8x256xf32>
    %cst_161 = arith.constant 1.000000e+00 : f32
    %347 = vector.broadcast %cst_161 : f32 to vector<8x256xf32>
    %348 = arith.addf %347, %346 : vector<8x256xf32>
    %cst_162 = arith.constant 1.000000e+00 : f32
    %349 = vector.broadcast %cst_162 : f32 to vector<8x256xf32>
    %350 = arith.divf %349, %348 : vector<8x256xf32>
    %351 = vector.extract_strided_slice %334 {offsets = [16, 0], sizes = [8, 256], strides = [1, 1]} : vector<32x256xf32> to vector<8x256xf32>
    %352 = math.tanh %351 : vector<8x256xf32>
    %353 = vector.extract_strided_slice %334 {offsets = [24, 0], sizes = [8, 256], strides = [1, 1]} : vector<32x256xf32> to vector<8x256xf32>
    %cst_163 = arith.constant 0.000000e+00 : f32
    %354 = vector.broadcast %cst_163 : f32 to vector<8x256xf32>
    %355 = arith.subf %354, %353 : vector<8x256xf32>
    %356 = math.exp %355 : vector<8x256xf32>
    %cst_164 = arith.constant 1.000000e+00 : f32
    %357 = vector.broadcast %cst_164 : f32 to vector<8x256xf32>
    %358 = arith.addf %357, %356 : vector<8x256xf32>
    %cst_165 = arith.constant 1.000000e+00 : f32
    %359 = vector.broadcast %cst_165 : f32 to vector<8x256xf32>
    %360 = arith.divf %359, %358 : vector<8x256xf32>
    %361 = arith.mulf %350, %323 : vector<8x256xf32>
    %362 = arith.mulf %342, %352 : vector<8x256xf32>
    %363 = arith.addf %361, %362 : vector<8x256xf32>
    %364 = math.tanh %363 : vector<8x256xf32>
    %365 = arith.mulf %360, %364 : vector<8x256xf32>
    %366 = vector.extract_strided_slice %365 {offsets = [0, 0], sizes = [8, 128], strides = [1, 1]} : vector<8x256xf32> to vector<8x128xf32>
    %c0_166 = arith.constant 0 : index
    %c896_167 = arith.constant 896 : index
    %367 = vector.load %arg17[%c0_166, %c896_167] : memref<16x1024xf32, #tpu.memory_space<vmem>>, vector<8x128xf32>
    tpu.vector_store %arg17[%c0_166, %c896_167], %366 {strides = array<i32>} : memref<16x1024xf32, #tpu.memory_space<vmem>>, vector<8x128xf32>,
    %368 = vector.extract_strided_slice %365 {offsets = [0, 128], sizes = [8, 128], strides = [1, 1]} : vector<8x256xf32> to vector<8x128xf32>
    %c8_168 = arith.constant 8 : index
    %c0_169 = arith.constant 0 : index
    %369 = vector.load %arg17[%c8_168, %c0_169] : memref<16x1024xf32, #tpu.memory_space<vmem>>, vector<8x128xf32>
    tpu.vector_store %arg17[%c8_168, %c0_169], %368 {strides = array<i32>} : memref<16x1024xf32, #tpu.memory_space<vmem>>, vector<8x128xf32>,
    %c0_170 = arith.constant 0 : index
    %c0_171 = arith.constant 0 : index
    %370 = vector.load %arg17[%c0_170, %c0_171] : memref<16x1024xf32, #tpu.memory_space<vmem>>, vector<16x1024xf32>
    %c0_172 = arith.constant 0 : index
    %c0_173 = arith.constant 0 : index
    %371 = vector.load %arg9[%c0_172, %c0_173] : memref<16x16xf32, #tpu.memory_space<vmem>>, vector<16x16xf32>
    %cst_174 = arith.constant dense<0.000000e+00> : vector<16x1024xf32>
    %372 = tpu.matmul %371, %370, %cst_174 {dimension_numbers = #tpu.dot_dimension_numbers<[1], [0], [0], [1], [0, 0, 1, 1], [], []>} : vector<16x16xf32>, vector<16x1024xf32>, vector<16x1024xf32> -> vector<16x1024xf32>
    %373 = arith.addf %372, %9 : vector<16x1024xf32>
    %c0_175 = arith.constant 0 : index
    %c0_176 = arith.constant 0 : index
    %374 = vector.load %arg10[%c0_175, %c0_176] : memref<16x1xf32, #tpu.memory_space<vmem>>, vector<16x1xf32>
    %375 = vector.broadcast %374 : vector<16x1xf32> to vector<16x1024xf32>
    %376 = arith.addf %373, %375 : vector<16x1024xf32>
    %377 = math.tanh %376 : vector<16x1024xf32>
    %cst_177 = arith.constant dense<0xFF800000> : vector<1024xf32>
    %378 = vector.multi_reduction <maximumf>, %377, %cst_177 [0] : vector<16x1024xf32> to vector<1024xf32>
    %379 = vector.shape_cast %378 : vector<1024xf32> to vector<1x1024xf32>
    %380 = vector.broadcast %379 : vector<1x1024xf32> to vector<16x1024xf32>
    %381 = arith.subf %377, %380 : vector<16x1024xf32>
    %382 = math.exp %381 : vector<16x1024xf32>
    %cst_178 = arith.constant dense<0.000000e+00> : vector<1024xf32>
    %383 = vector.multi_reduction <add>, %382, %cst_178 [0] : vector<16x1024xf32> to vector<1024xf32>
    %384 = vector.shape_cast %383 : vector<1024xf32> to vector<1x1024xf32>
    %385 = vector.broadcast %384 : vector<1x1024xf32> to vector<16x1024xf32>
    %386 = arith.divf %382, %385 : vector<16x1024xf32>
    %cst_179 = arith.constant 1.600000e+01 : f32
    %387 = vector.broadcast %cst_179 : f32 to vector<16x1024xf32>
    %388 = arith.mulf %386, %387 : vector<16x1024xf32>
    %389 = arith.mulf %388, %370 : vector<16x1024xf32>
    %c0_180 = arith.constant 0 : index
    %c0_181 = arith.constant 0 : index
    %390 = vector.load %arg11[%c0_180, %c0_181] : memref<16x1xf32, #tpu.memory_space<vmem>>, vector<16x1xf32>
    %391 = vector.broadcast %390 : vector<16x1xf32> to vector<16x1024xf32>
    %392 = arith.mulf %389, %391 : vector<16x1024xf32>
    %cst_182 = arith.constant dense<0.000000e+00> : vector<1024xf32>
    %393 = vector.multi_reduction <add>, %392, %cst_182 [0] : vector<16x1024xf32> to vector<1024xf32>
    %394 = vector.shape_cast %393 : vector<1024xf32> to vector<1x1024xf32>
    %c0_183 = arith.constant 0 : index
    %c0_184 = arith.constant 0 : index
    %395 = vector.load %arg12[%c0_183, %c0_184] : memref<1x1xf32, #tpu.memory_space<vmem>>, vector<1x1xf32>
    %396 = vector.broadcast %395 : vector<1x1xf32> to vector<1x1024xf32>
    %397 = arith.addf %394, %396 : vector<1x1024xf32>
    %398 = vector.extract_strided_slice %397 {offsets = [0, 0], sizes = [1, 128], strides = [1, 1]} : vector<1x1024xf32> to vector<1x128xf32>
    %399 = vector.extract_strided_slice %397 {offsets = [0, 128], sizes = [1, 128], strides = [1, 1]} : vector<1x1024xf32> to vector<1x128xf32>
    %400 = vector.extract_strided_slice %397 {offsets = [0, 256], sizes = [1, 128], strides = [1, 1]} : vector<1x1024xf32> to vector<1x128xf32>
    %401 = vector.extract_strided_slice %397 {offsets = [0, 384], sizes = [1, 128], strides = [1, 1]} : vector<1x1024xf32> to vector<1x128xf32>
    %402 = vector.extract_strided_slice %397 {offsets = [0, 512], sizes = [1, 128], strides = [1, 1]} : vector<1x1024xf32> to vector<1x128xf32>
    %403 = vector.extract_strided_slice %397 {offsets = [0, 640], sizes = [1, 128], strides = [1, 1]} : vector<1x1024xf32> to vector<1x128xf32>
    %404 = vector.extract_strided_slice %397 {offsets = [0, 768], sizes = [1, 128], strides = [1, 1]} : vector<1x1024xf32> to vector<1x128xf32>
    %405 = vector.extract_strided_slice %397 {offsets = [0, 896], sizes = [1, 128], strides = [1, 1]} : vector<1x1024xf32> to vector<1x128xf32>
    %406 = tpu.concatenate %398, %399, %400, %401, %402, %403, %404, %405 in 0 : vector<1x128xf32>, vector<1x128xf32>, vector<1x128xf32>, vector<1x128xf32>, vector<1x128xf32>, vector<1x128xf32>, vector<1x128xf32>, vector<1x128xf32> -> vector<8x128xf32>
    %c0_185 = arith.constant 0 : index
    %c0_186 = arith.constant 0 : index
    %c0_187 = arith.constant 0 : index
    %407 = vector.load %arg16[%c0_185, %c0_186, %c0_187] : memref<1x8x128xf32, #tpu.memory_space<vmem>>, vector<1x8x128xf32>
    %408 = vector.shape_cast %407 : vector<1x8x128xf32> to vector<8x128xf32>
    %409 = vector.shape_cast %406 : vector<8x128xf32> to vector<1x8x128xf32>
    tpu.vector_store %arg16[%c0_185, %c0_186, %c0_187], %409 {strides = array<i32>} : memref<1x8x128xf32, #tpu.memory_space<vmem>>, vector<1x8x128xf32>,
    return
  }
  func.func @transform_0(%arg0: i32) -> (i32, i32, i32) {
    %c0_i32 = arith.constant 0 : i32
    %c0_i32_0 = arith.constant 0 : i32
    %c0_i32_1 = arith.constant 0 : i32
    return %arg0, %c0_i32, %c0_i32_0 : i32, i32, i32
  }
  func.func @transform_1(%arg0: i32) -> (i32, i32, i32) {
    %c0_i32 = arith.constant 0 : i32
    %c0_i32_0 = arith.constant 0 : i32
    %c0_i32_1 = arith.constant 0 : i32
    return %arg0, %c0_i32, %c0_i32_0 : i32, i32, i32
  }
  func.func @transform_2(%arg0: i32) -> (i32, i32) {
    %c0_i32 = arith.constant 0 : i32
    %c0_i32_0 = arith.constant 0 : i32
    %c0_i32_1 = arith.constant 0 : i32
    return %c0_i32, %c0_i32_0 : i32, i32
  }
  func.func @transform_3(%arg0: i32) -> (i32, i32) {
    %c0_i32 = arith.constant 0 : i32
    %c0_i32_0 = arith.constant 0 : i32
    %c0_i32_1 = arith.constant 0 : i32
    return %c0_i32, %c0_i32_0 : i32, i32
  }
  func.func @transform_4(%arg0: i32) -> (i32, i32) {
    %c0_i32 = arith.constant 0 : i32
    %c0_i32_0 = arith.constant 0 : i32
    %c0_i32_1 = arith.constant 0 : i32
    return %c0_i32, %c0_i32_0 : i32, i32
  }
  func.func @transform_5(%arg0: i32) -> (i32, i32) {
    %c0_i32 = arith.constant 0 : i32
    %c0_i32_0 = arith.constant 0 : i32
    %c0_i32_1 = arith.constant 0 : i32
    return %c0_i32, %c0_i32_0 : i32, i32
  }
  func.func @transform_6(%arg0: i32) -> (i32, i32) {
    %c0_i32 = arith.constant 0 : i32
    %c0_i32_0 = arith.constant 0 : i32
    %c0_i32_1 = arith.constant 0 : i32
    return %c0_i32, %c0_i32_0 : i32, i32
  }
  func.func @transform_7(%arg0: i32) -> (i32, i32) {
    %c0_i32 = arith.constant 0 : i32
    %c0_i32_0 = arith.constant 0 : i32
    %c0_i32_1 = arith.constant 0 : i32
    return %c0_i32, %c0_i32_0 : i32, i32
  }
  func.func @transform_8(%arg0: i32) -> (i32, i32) {
    %c0_i32 = arith.constant 0 : i32
    %c0_i32_0 = arith.constant 0 : i32
    %c0_i32_1 = arith.constant 0 : i32
    return %c0_i32, %c0_i32_0 : i32, i32
  }
  func.func @transform_9(%arg0: i32) -> (i32, i32) {
    %c0_i32 = arith.constant 0 : i32
    %c0_i32_0 = arith.constant 0 : i32
    %c0_i32_1 = arith.constant 0 : i32
    return %c0_i32, %c0_i32_0 : i32, i32
  }
  func.func @transform_10(%arg0: i32) -> (i32, i32) {
    %c0_i32 = arith.constant 0 : i32
    %c0_i32_0 = arith.constant 0 : i32
    %c0_i32_1 = arith.constant 0 : i32
    return %c0_i32, %c0_i32_0 : i32, i32
  }
  func.func @transform_11(%arg0: i32) -> (i32, i32) {
    %c0_i32 = arith.constant 0 : i32
    %c0_i32_0 = arith.constant 0 : i32
    %c0_i32_1 = arith.constant 0 : i32
    return %c0_i32, %c0_i32_0 : i32, i32
  }
  func.func @transform_12(%arg0: i32) -> (i32, i32) {
    %c0_i32 = arith.constant 0 : i32
    %c0_i32_0 = arith.constant 0 : i32
    %c0_i32_1 = arith.constant 0 : i32
    return %c0_i32, %c0_i32_0 : i32, i32
  }
  func.func @transform_13(%arg0: i32) -> (i32, i32) {
    %c0_i32 = arith.constant 0 : i32
    %c0_i32_0 = arith.constant 0 : i32
    %c0_i32_1 = arith.constant 0 : i32
    return %c0_i32, %c0_i32_0 : i32, i32
  }
  func.func @transform_14(%arg0: i32) -> (i32, i32) {
    %c0_i32 = arith.constant 0 : i32
    %c0_i32_0 = arith.constant 0 : i32
    %c0_i32_1 = arith.constant 0 : i32
    return %c0_i32, %c0_i32_0 : i32, i32
  }
  func.func @transform_15(%arg0: i32) -> (i32, i32, i32) {
    %c0_i32 = arith.constant 0 : i32
    %c0_i32_0 = arith.constant 0 : i32
    %c0_i32_1 = arith.constant 0 : i32
    return %arg0, %c0_i32, %c0_i32_0 : i32, i32, i32
  }
}

</mosaic_0001>

<llo_original>
// kernel: tpu_custom_call.1
$region0: #{tpu_custom_call.1}
  #allocation0 [shape = 'u32[]', space=smem, size = 0x4, offset = 0x4, fixed_abs, tag = 'smem constant byte address 0x4 - core index']
  #allocation1 [shape = 'u32[144,128]{1,0:T(1,128)}', space=vmem, size = 0x12000, scoped, tag = 'internal scratch']
  #allocation2 [shape = 'f32[16,1024]{1,0:T(8,128)}', space=vmem, size = 0x10000, scoped, tag = 'scratch operand']
  #allocation3 [shape = 'f32[32,1024]{1,0:T(8,128)}', space=vmem, size = 0x20000, scoped, tag = 'scratch operand']
  #allocation4 [shape = 'f32[1,1]{1,0:T(1,128)S(1)}', space=vmem, size = 0x200, scoped, tag = 'scoped memory for tpu_custom_call.1']
  %s0 = inlined_call_operand.vmem [shape: f32[1,1,1024], index: 0, kind: input, shape index: {}]
  %s1 = inlined_call_operand.vmem [shape: f32[128,8,16], index: 1, kind: input, shape index: {}]
  %s2 = inlined_call_operand.vmem [shape: f32[4,1024], index: 2, kind: input, shape index: {}]
  %s3 = inlined_call_operand.vmem [shape: f32[4,2], index: 3, kind: input, shape index: {}]
  %s4 = inlined_call_operand.vmem [shape: f32[8,16], index: 4, kind: input, shape index: {}]
  %s5 = inlined_call_operand.vmem [shape: f32[8,8], index: 5, kind: input, shape index: {}]
  %s6 = inlined_call_operand.vmem [shape: f32[8,1], index: 6, kind: input, shape index: {}]
  %s7 = inlined_call_operand.vmem [shape: f32[16,16], index: 7, kind: input, shape index: {}]
  %s8 = inlined_call_operand.vmem [shape: f32[16,16], index: 8, kind: input, shape index: {}]
  %s9 = inlined_call_operand.vmem [shape: f32[16,1], index: 9, kind: input, shape index: {}]
  %s10 = inlined_call_operand.vmem [shape: f32[16,1], index: 10, kind: input, shape index: {}]
  %s11 = inlined_call_operand.<no memory space> [shape: f32[1,1], index: 11, kind: input, shape index: {}]
  %s12 = inlined_call_operand.vmem [shape: f32[32,8], index: 12, kind: input, shape index: {}]
  %s13 = inlined_call_operand.vmem [shape: f32[32,8], index: 13, kind: input, shape index: {}]
  %s14 = inlined_call_operand.vmem [shape: f32[32,1], index: 14, kind: input, shape index: {}]
  %s15 = inlined_call_operand.hbm [shape: f32[1,8,128], index: 15, kind: output, shape index: {}]
  %s16 = sld [smem:[#allocation0]]
  $region70: #{tpu_custom_call.1} parent=0
    _
  %s18 = ssub.s32 1, %s16
  %s19 = scalar_select 0, %s18, %s16
  %v20 = vstv %s11
  %21 = vst [vmem:[#allocation4] sm:$0x1] %v20
  $region1: #{tpu_custom_call.1} parent=0
    #allocation5 [shape = 'u8[4096]{0}', space=vmem, size = 0x1000, scoped, tag = 'output window, operand 0, single buffered']
    #allocation6 [shape = 's32[1]{0}', space=sflag, size = 0x4, scoped, tag = 'scoped memory for tpu_custom_call.1']
    %22 = vsyncpa [#allocation6], 0
    // Predicated region
    $region2: #{tpu_custom_call.1} parent=1 // pred_check
      _
    $region3: #{tpu_custom_call.1} parent=1 // pred_check_branch
      %24 = sbr.rel (0) target = $region5
    $region4: #{tpu_custom_call.1} parent=1 // pred_region
      _
    $region5: #{tpu_custom_call.1} parent=1 // pred_fallthru
      _
    // Predicated region
    $region6: #{tpu_custom_call.1} parent=1 // pred_check
      _
    $region7: #{tpu_custom_call.1} parent=1 // pred_check_branch
      %26 = sbr.rel (0) target = $region9
    $region8: #{tpu_custom_call.1} parent=1 // pred_region
      _
    $region9: #{tpu_custom_call.1} parent=1 // pred_fallthru
      _
    // Predicated region
    $region10: #{tpu_custom_call.1} parent=1 // pred_check
      _
    $region11: #{tpu_custom_call.1} parent=1 // pred_check_branch
      %28 = sbr.rel (0) target = $region13
    $region12: #{tpu_custom_call.1} parent=1 // pred_region
      _
    $region13: #{tpu_custom_call.1} parent=1 // pred_fallthru
      _
    // Predicated region
    $region14: #{tpu_custom_call.1} parent=1 // pred_check
      _
    $region15: #{tpu_custom_call.1} parent=1 // pred_check_branch
      %30 = sbr.rel (0) target = $region17
    $region16: #{tpu_custom_call.1} parent=1 // pred_region
      _
    $region17: #{tpu_custom_call.1} parent=1 // pred_fallthru
      _
    // Predicated region
    $region18: #{tpu_custom_call.1} parent=1 // pred_check
      _
    $region19: #{tpu_custom_call.1} parent=1 // pred_check_branch
      %32 = sbr.rel (0) target = $region21
    $region20: #{tpu_custom_call.1} parent=1 // pred_region
      _
    $region21: #{tpu_custom_call.1} parent=1 // pred_fallthru
      _
    // Predicated region
    $region22: #{tpu_custom_call.1} parent=1 // pred_check
      _
    $region23: #{tpu_custom_call.1} parent=1 // pred_check_branch
      %34 = sbr.rel (0) target = $region25
    $region24: #{tpu_custom_call.1} parent=1 // pred_region
      _
    $region25: #{tpu_custom_call.1} parent=1 // pred_fallthru
      _
    // Predicated region
    $region26: #{tpu_custom_call.1} parent=1 // pred_check
      _
    $region27: #{tpu_custom_call.1} parent=1 // pred_check_branch
      %36 = sbr.rel (0) target = $region29
    $region28: #{tpu_custom_call.1} parent=1 // pred_region
      _
    $region29: #{tpu_custom_call.1} parent=1 // pred_fallthru
      _
    // Predicated region
    $region30: #{tpu_custom_call.1} parent=1 // pred_check
      _
    $region31: #{tpu_custom_call.1} parent=1 // pred_check_branch
      %38 = sbr.rel (0) target = $region33
    $region32: #{tpu_custom_call.1} parent=1 // pred_region
      _
    $region33: #{tpu_custom_call.1} parent=1 // pred_fallthru
      _
    // Predicated region
    $region34: #{tpu_custom_call.1} parent=1 // pred_check
      _
    $region35: #{tpu_custom_call.1} parent=1 // pred_check_branch
      %40 = sbr.rel (0) target = $region37
    $region36: #{tpu_custom_call.1} parent=1 // pred_region
      _
    $region37: #{tpu_custom_call.1} parent=1 // pred_fallthru
      _
    // Predicated region
    $region38: #{tpu_custom_call.1} parent=1 // pred_check
      _
    $region39: #{tpu_custom_call.1} parent=1 // pred_check_branch
      %42 = sbr.rel (0) target = $region41
    $region40: #{tpu_custom_call.1} parent=1 // pred_region
      _
    $region41: #{tpu_custom_call.1} parent=1 // pred_fallthru
      _
    // Predicated region
    $region42: #{tpu_custom_call.1} parent=1 // pred_check
      _
    $region43: #{tpu_custom_call.1} parent=1 // pred_check_branch
      %44 = sbr.rel (0) target = $region45
    $region44: #{tpu_custom_call.1} parent=1 // pred_region
      _
    $region45: #{tpu_custom_call.1} parent=1 // pred_fallthru
      _
    // Predicated region
    $region46: #{tpu_custom_call.1} parent=1 // pred_check
      _
    $region47: #{tpu_custom_call.1} parent=1 // pred_check_branch
      %46 = sbr.rel (0) target = $region49
    $region48: #{tpu_custom_call.1} parent=1 // pred_region
      _
    $region49: #{tpu_custom_call.1} parent=1 // pred_fallthru
      _
    // Predicated region
    $region50: #{tpu_custom_call.1} parent=1 // pred_check
      _
    $region51: #{tpu_custom_call.1} parent=1 // pred_check_branch
      %48 = sbr.rel (0) target = $region53
    $region52: #{tpu_custom_call.1} parent=1 // pred_region
      _
    $region53: #{tpu_custom_call.1} parent=1 // pred_fallthru
      _
    // Predicated region
    $region54: #{tpu_custom_call.1} parent=1 // pred_check
      _
    $region55: #{tpu_custom_call.1} parent=1 // pred_check_branch
      %50 = sbr.rel (0) target = $region57
    $region56: #{tpu_custom_call.1} parent=1 // pred_region
      _
    $region57: #{tpu_custom_call.1} parent=1 // pred_fallthru
      _
    // Predicated region
    $region58: #{tpu_custom_call.1} parent=1 // pred_check
      _
    $region59: #{tpu_custom_call.1} parent=1 // pred_check_branch
      %52 = sbr.rel (0) target = $region61
    $region60: #{tpu_custom_call.1} parent=1 // pred_region
      _
    $region61: #{tpu_custom_call.1} parent=1 // pred_fallthru
      _
    %v53 = vld [vmem:[%s1] sm:$0xff]
    %v54 = vld [vmem:[%s1 + $0x8] sm:$0xff]
    %v55 = vld [vmem:[%s1 + $0x10] sm:$0xff]
    %v56 = vld [vmem:[%s1 + $0x18] sm:$0xff]
    %v57 = vld [vmem:[%s1 + $0x20] sm:$0xff]
    %v58 = vld [vmem:[%s1 + $0x28] sm:$0xff]
    %v59 = vld [vmem:[%s1 + $0x30] sm:$0xff]
    %v60 = vld [vmem:[%s1 + $0x38] sm:$0xff]
    %v61 = vld [vmem:[%s1 + $0x40] sm:$0xff]
    %v62 = vld [vmem:[%s1 + $0x48] sm:$0xff]
    %v63 = vld [vmem:[%s1 + $0x50] sm:$0xff]
    %v64 = vld [vmem:[%s1 + $0x58] sm:$0xff]
    %v65 = vld [vmem:[%s1 + $0x60] sm:$0xff]
    %v66 = vld [vmem:[%s1 + $0x68] sm:$0xff]
    %v67 = vld [vmem:[%s1 + $0x70] sm:$0xff]
    %v68 = vld [vmem:[%s1 + $0x78] sm:$0xff]
    %v69 = vld [vmem:[%s1 + $0x80] sm:$0xff]
    %v70 = vld [vmem:[%s1 + $0x88] sm:$0xff]
    %v71 = vld [vmem:[%s1 + $0x90] sm:$0xff]
    %v72 = vld [vmem:[%s1 + $0x98] sm:$0xff]
    %v73 = vld [vmem:[%s1 + $0xa0] sm:$0xff]
    %v74 = vld [vmem:[%s1 + $0xa8] sm:$0xff]
    %v75 = vld [vmem:[%s1 + $0xb0] sm:$0xff]
    %v76 = vld [vmem:[%s1 + $0xb8] sm:$0xff]
    %v77 = vld [vmem:[%s1 + $0xc0] sm:$0xff]
    %v78 = vld [vmem:[%s1 + $0xc8] sm:$0xff]
    %v79 = vld [vmem:[%s1 + $0xd0] sm:$0xff]
    %v80 = vld [vmem:[%s1 + $0xd8] sm:$0xff]
    %v81 = vld [vmem:[%s1 + $0xe0] sm:$0xff]
    %v82 = vld [vmem:[%s1 + $0xe8] sm:$0xff]
    %v83 = vld [vmem:[%s1 + $0xf0] sm:$0xff]
    %v84 = vld [vmem:[%s1 + $0xf8] sm:$0xff]
    %v85 = vld [vmem:[%s1 + $0x100] sm:$0xff]
    %v86 = vld [vmem:[%s1 + $0x108] sm:$0xff]
    %v87 = vld [vmem:[%s1 + $0x110] sm:$0xff]
    %v88 = vld [vmem:[%s1 + $0x118] sm:$0xff]
    %v89 = vld [vmem:[%s1 + $0x120] sm:$0xff]
    %v90 = vld [vmem:[%s1 + $0x128] sm:$0xff]
    %v91 = vld [vmem:[%s1 + $0x130] sm:$0xff]
    %v92 = vld [vmem:[%s1 + $0x138] sm:$0xff]
    %v93 = vld [vmem:[%s1 + $0x140] sm:$0xff]
    %v94 = vld [vmem:[%s1 + $0x148] sm:$0xff]
    %v95 = vld [vmem:[%s1 + $0x150] sm:$0xff]
    %v96 = vld [vmem:[%s1 + $0x158] sm:$0xff]
    %v97 = vld [vmem:[%s1 + $0x160] sm:$0xff]
    %v98 = vld [vmem:[%s1 + $0x168] sm:$0xff]
    %v99 = vld [vmem:[%s1 + $0x170] sm:$0xff]
    %v100 = vld [vmem:[%s1 + $0x178] sm:$0xff]
    %v101 = vld [vmem:[%s1 + $0x180] sm:$0xff]
    %v102 = vld [vmem:[%s1 + $0x188] sm:$0xff]
    %v103 = vld [vmem:[%s1 + $0x190] sm:$0xff]
    %v104 = vld [vmem:[%s1 + $0x198] sm:$0xff]
    %v105 = vld [vmem:[%s1 + $0x1a0] sm:$0xff]
    %v106 = vld [vmem:[%s1 + $0x1a8] sm:$0xff]
    %v107 = vld [vmem:[%s1 + $0x1b0] sm:$0xff]
    %v108 = vld [vmem:[%s1 + $0x1b8] sm:$0xff]
    %v109 = vld [vmem:[%s1 + $0x1c0] sm:$0xff]
    %v110 = vld [vmem:[%s1 + $0x1c8] sm:$0xff]
    %v111 = vld [vmem:[%s1 + $0x1d0] sm:$0xff]
    %v112 = vld [vmem:[%s1 + $0x1d8] sm:$0xff]
    %v113 = vld [vmem:[%s1 + $0x1e0] sm:$0xff]
    %v114 = vld [vmem:[%s1 + $0x1e8] sm:$0xff]
    %v115 = vld [vmem:[%s1 + $0x1f0] sm:$0xff]
    %v116 = vld [vmem:[%s1 + $0x1f8] sm:$0xff]
    %v117 = vld [vmem:[%s1 + $0x200] sm:$0xff]
    %v118 = vld [vmem:[%s1 + $0x208] sm:$0xff]
    %v119 = vld [vmem:[%s1 + $0x210] sm:$0xff]
    %v120 = vld [vmem:[%s1 + $0x218] sm:$0xff]
    %v121 = vld [vmem:[%s1 + $0x220] sm:$0xff]
    %v122 = vld [vmem:[%s1 + $0x228] sm:$0xff]
    %v123 = vld [vmem:[%s1 + $0x230] sm:$0xff]
    %v124 = vld [vmem:[%s1 + $0x238] sm:$0xff]
    %v125 = vld [vmem:[%s1 + $0x240] sm:$0xff]
    %v126 = vld [vmem:[%s1 + $0x248] sm:$0xff]
    %v127 = vld [vmem:[%s1 + $0x250] sm:$0xff]
    %v128 = vld [vmem:[%s1 + $0x258] sm:$0xff]
    %v129 = vld [vmem:[%s1 + $0x260] sm:$0xff]
    %v130 = vld [vmem:[%s1 + $0x268] sm:$0xff]
    %v131 = vld [vmem:[%s1 + $0x270] sm:$0xff]
    %v132 = vld [vmem:[%s1 + $0x278] sm:$0xff]
    %v133 = vld [vmem:[%s1 + $0x280] sm:$0xff]
    %v134 = vld [vmem:[%s1 + $0x288] sm:$0xff]
    %v135 = vld [vmem:[%s1 + $0x290] sm:$0xff]
    %v136 = vld [vmem:[%s1 + $0x298] sm:$0xff]
    %v137 = vld [vmem:[%s1 + $0x2a0] sm:$0xff]
    %v138 = vld [vmem:[%s1 + $0x2a8] sm:$0xff]
    %v139 = vld [vmem:[%s1 + $0x2b0] sm:$0xff]
    %v140 = vld [vmem:[%s1 + $0x2b8] sm:$0xff]
    %v141 = vld [vmem:[%s1 + $0x2c0] sm:$0xff]
    %v142 = vld [vmem:[%s1 + $0x2c8] sm:$0xff]
    %v143 = vld [vmem:[%s1 + $0x2d0] sm:$0xff]
    %v144 = vld [vmem:[%s1 + $0x2d8] sm:$0xff]
    %v145 = vld [vmem:[%s1 + $0x2e0] sm:$0xff]
    %v146 = vld [vmem:[%s1 + $0x2e8] sm:$0xff]
    %v147 = vld [vmem:[%s1 + $0x2f0] sm:$0xff]
    %v148 = vld [vmem:[%s1 + $0x2f8] sm:$0xff]
    %v149 = vld [vmem:[%s1 + $0x300] sm:$0xff]
    %v150 = vld [vmem:[%s1 + $0x308] sm:$0xff]
    %v151 = vld [vmem:[%s1 + $0x310] sm:$0xff]
    %v152 = vld [vmem:[%s1 + $0x318] sm:$0xff]
    %v153 = vld [vmem:[%s1 + $0x320] sm:$0xff]
    %v154 = vld [vmem:[%s1 + $0x328] sm:$0xff]
    %v155 = vld [vmem:[%s1 + $0x330] sm:$0xff]
    %v156 = vld [vmem:[%s1 + $0x338] sm:$0xff]
    %v157 = vld [vmem:[%s1 + $0x340] sm:$0xff]
    %v158 = vld [vmem:[%s1 + $0x348] sm:$0xff]
    %v159 = vld [vmem:[%s1 + $0x350] sm:$0xff]
    %v160 = vld [vmem:[%s1 + $0x358] sm:$0xff]
    %v161 = vld [vmem:[%s1 + $0x360] sm:$0xff]
    %v162 = vld [vmem:[%s1 + $0x368] sm:$0xff]
    %v163 = vld [vmem:[%s1 + $0x370] sm:$0xff]
    %v164 = vld [vmem:[%s1 + $0x378] sm:$0xff]
    %v165 = vld [vmem:[%s1 + $0x380] sm:$0xff]
    %v166 = vld [vmem:[%s1 + $0x388] sm:$0xff]
    %v167 = vld [vmem:[%s1 + $0x390] sm:$0xff]
    %v168 = vld [vmem:[%s1 + $0x398] sm:$0xff]
    %v169 = vld [vmem:[%s1 + $0x3a0] sm:$0xff]
    %v170 = vld [vmem:[%s1 + $0x3a8] sm:$0xff]
    %v171 = vld [vmem:[%s1 + $0x3b0] sm:$0xff]
    %v172 = vld [vmem:[%s1 + $0x3b8] sm:$0xff]
    %v173 = vld [vmem:[%s1 + $0x3c0] sm:$0xff]
    %v174 = vld [vmem:[%s1 + $0x3c8] sm:$0xff]
    %v175 = vld [vmem:[%s1 + $0x3d0] sm:$0xff]
    %v176 = vld [vmem:[%s1 + $0x3d8] sm:$0xff]
    %v177 = vld [vmem:[%s1 + $0x3e0] sm:$0xff]
    %v178 = vld [vmem:[%s1 + $0x3e8] sm:$0xff]
    %v179 = vld [vmem:[%s1 + $0x3f0] sm:$0xff]
    %v180 = vld [vmem:[%s1 + $0x3f8] sm:$0xff]
    %vm181 = vcmask 130048
    %v182 = vsel %vm181, %v53, 0.0
    %v183 = vrot.slane %v182, 4
    %v184 = vadd.f32 %v182, %v183
    %v185 = vrot.slane %v184, 2
    %v186 = vadd.f32 %v184, %v185
    %v187 = vrot.slane %v186, 1
    %v188 = vadd.f32 %v186, %v187
    %v189 = vsel %vm181, %v54, 0.0
    %v190 = vrot.slane %v189, 4
    %v191 = vadd.f32 %v189, %v190
    %v192 = vrot.slane %v191, 2
    %v193 = vadd.f32 %v191, %v192
    %v194 = vrot.slane %v193, 1
    %v195 = vadd.f32 %v193, %v194
    %v196 = vsel %vm181, %v55, 0.0
    %v197 = vrot.slane %v196, 4
    %v198 = vadd.f32 %v196, %v197
    %v199 = vrot.slane %v198, 2
    %v200 = vadd.f32 %v198, %v199
    %v201 = vrot.slane %v200, 1
    %v202 = vadd.f32 %v200, %v201
    %v203 = vsel %vm181, %v56, 0.0
    %v204 = vrot.slane %v203, 4
    %v205 = vadd.f32 %v203, %v204
    %v206 = vrot.slane %v205, 2
    %v207 = vadd.f32 %v205, %v206
    %v208 = vrot.slane %v207, 1
    %v209 = vadd.f32 %v207, %v208
    %v210 = vsel %vm181, %v57, 0.0
    %v211 = vrot.slane %v210, 4
    %v212 = vadd.f32 %v210, %v211
    %v213 = vrot.slane %v212, 2
    %v214 = vadd.f32 %v212, %v213
    %v215 = vrot.slane %v214, 1
    %v216 = vadd.f32 %v214, %v215
    %v217 = vsel %vm181, %v58, 0.0
    %v218 = vrot.slane %v217, 4
    %v219 = vadd.f32 %v217, %v218
    %v220 = vrot.slane %v219, 2
    %v221 = vadd.f32 %v219, %v220
    %v222 = vrot.slane %v221, 1
    %v223 = vadd.f32 %v221, %v222
    %v224 = vsel %vm181, %v59, 0.0
    %v225 = vrot.slane %v224, 4
    %v226 = vadd.f32 %v224, %v225
    %v227 = vrot.slane %v226, 2
    %v228 = vadd.f32 %v226, %v227
    %v229 = vrot.slane %v228, 1
    %v230 = vadd.f32 %v228, %v229
    %v231 = vsel %vm181, %v60, 0.0
    %v232 = vrot.slane %v231, 4
    %v233 = vadd.f32 %v231, %v232
    %v234 = vrot.slane %v233, 2
    %v235 = vadd.f32 %v233, %v234
    %v236 = vrot.slane %v235, 1
    %v237 = vadd.f32 %v235, %v236
    %v238 = vsel %vm181, %v61, 0.0
    %v239 = vrot.slane %v238, 4
    %v240 = vadd.f32 %v238, %v239
    %v241 = vrot.slane %v240, 2
    %v242 = vadd.f32 %v240, %v241
    %v243 = vrot.slane %v242, 1
    %v244 = vadd.f32 %v242, %v243
    %v245 = vsel %vm181, %v62, 0.0
    %v246 = vrot.slane %v245, 4
    %v247 = vadd.f32 %v245, %v246
    %v248 = vrot.slane %v247, 2
    %v249 = vadd.f32 %v247, %v248
    %v250 = vrot.slane %v249, 1
    %v251 = vadd.f32 %v249, %v250
    %v252 = vsel %vm181, %v63, 0.0
    %v253 = vrot.slane %v252, 4
    %v254 = vadd.f32 %v252, %v253
    %v255 = vrot.slane %v254, 2
    %v256 = vadd.f32 %v254, %v255
    %v257 = vrot.slane %v256, 1
    %v258 = vadd.f32 %v256, %v257
    %v259 = vsel %vm181, %v64, 0.0
    %v260 = vrot.slane %v259, 4
    %v261 = vadd.f32 %v259, %v260
    %v262 = vrot.slane %v261, 2
    %v263 = vadd.f32 %v261, %v262
    %v264 = vrot.slane %v263, 1
    %v265 = vadd.f32 %v263, %v264
    %v266 = vsel %vm181, %v65, 0.0
    %v267 = vrot.slane %v266, 4
    %v268 = vadd.f32 %v266, %v267
    %v269 = vrot.slane %v268, 2
    %v270 = vadd.f32 %v268, %v269
    %v271 = vrot.slane %v270, 1
    %v272 = vadd.f32 %v270, %v271
    %v273 = vsel %vm181, %v66, 0.0
    %v274 = vrot.slane %v273, 4
    %v275 = vadd.f32 %v273, %v274
    %v276 = vrot.slane %v275, 2
    %v277 = vadd.f32 %v275, %v276
    %v278 = vrot.slane %v277, 1
    %v279 = vadd.f32 %v277, %v278
    %v280 = vsel %vm181, %v67, 0.0
    %v281 = vrot.slane %v280, 4
    %v282 = vadd.f32 %v280, %v281
    %v283 = vrot.slane %v282, 2
    %v284 = vadd.f32 %v282, %v283
    %v285 = vrot.slane %v284, 1
    %v286 = vadd.f32 %v284, %v285
    %v287 = vsel %vm181, %v68, 0.0
    %v288 = vrot.slane %v287, 4
    %v289 = vadd.f32 %v287, %v288
    %v290 = vrot.slane %v289, 2
    %v291 = vadd.f32 %v289, %v290
    %v292 = vrot.slane %v291, 1
    %v293 = vadd.f32 %v291, %v292
    %v294 = vsel %vm181, %v69, 0.0
    %v295 = vrot.slane %v294, 4
    %v296 = vadd.f32 %v294, %v295
    %v297 = vrot.slane %v296, 2
    %v298 = vadd.f32 %v296, %v297
    %v299 = vrot.slane %v298, 1
    %v300 = vadd.f32 %v298, %v299
    %v301 = vsel %vm181, %v70, 0.0
    %v302 = vrot.slane %v301, 4
    %v303 = vadd.f32 %v301, %v302
    %v304 = vrot.slane %v303, 2
    %v305 = vadd.f32 %v303, %v304
    %v306 = vrot.slane %v305, 1
    %v307 = vadd.f32 %v305, %v306
    %v308 = vsel %vm181, %v71, 0.0
    %v309 = vrot.slane %v308, 4
    %v310 = vadd.f32 %v308, %v309
    %v311 = vrot.slane %v310, 2
    %v312 = vadd.f32 %v310, %v311
    %v313 = vrot.slane %v312, 1
    %v314 = vadd.f32 %v312, %v313
    %v315 = vsel %vm181, %v72, 0.0
    %v316 = vrot.slane %v315, 4
    %v317 = vadd.f32 %v315, %v316
    %v318 = vrot.slane %v317, 2
    %v319 = vadd.f32 %v317, %v318
    %v320 = vrot.slane %v319, 1
    %v321 = vadd.f32 %v319, %v320
    %v322 = vsel %vm181, %v73, 0.0
    %v323 = vrot.slane %v322, 4
    %v324 = vadd.f32 %v322, %v323
    %v325 = vrot.slane %v324, 2
    %v326 = vadd.f32 %v324, %v325
    %v327 = vrot.slane %v326, 1
    %v328 = vadd.f32 %v326, %v327
    %v329 = vsel %vm181, %v74, 0.0
    %v330 = vrot.slane %v329, 4
    %v331 = vadd.f32 %v329, %v330
    %v332 = vrot.slane %v331, 2
    %v333 = vadd.f32 %v331, %v332
    %v334 = vrot.slane %v333, 1
    %v335 = vadd.f32 %v333, %v334
    %v336 = vsel %vm181, %v75, 0.0
    %v337 = vrot.slane %v336, 4
    %v338 = vadd.f32 %v336, %v337
    %v339 = vrot.slane %v338, 2
    %v340 = vadd.f32 %v338, %v339
    %v341 = vrot.slane %v340, 1
    %v342 = vadd.f32 %v340, %v341
    %v343 = vsel %vm181, %v76, 0.0
    %v344 = vrot.slane %v343, 4
    %v345 = vadd.f32 %v343, %v344
    %v346 = vrot.slane %v345, 2
    %v347 = vadd.f32 %v345, %v346
    %v348 = vrot.slane %v347, 1
    %v349 = vadd.f32 %v347, %v348
    %v350 = vsel %vm181, %v77, 0.0
    %v351 = vrot.slane %v350, 4
    %v352 = vadd.f32 %v350, %v351
    %v353 = vrot.slane %v352, 2
    %v354 = vadd.f32 %v352, %v353
    %v355 = vrot.slane %v354, 1
    %v356 = vadd.f32 %v354, %v355
    %v357 = vsel %vm181, %v78, 0.0
    %v358 = vrot.slane %v357, 4
    %v359 = vadd.f32 %v357, %v358
    %v360 = vrot.slane %v359, 2
    %v361 = vadd.f32 %v359, %v360
    %v362 = vrot.slane %v361, 1
    %v363 = vadd.f32 %v361, %v362
    %v364 = vsel %vm181, %v79, 0.0
    %v365 = vrot.slane %v364, 4
    %v366 = vadd.f32 %v364, %v365
    %v367 = vrot.slane %v366, 2
    %v368 = vadd.f32 %v366, %v367
    %v369 = vrot.slane %v368, 1
    %v370 = vadd.f32 %v368, %v369
    %v371 = vsel %vm181, %v80, 0.0
    %v372 = vrot.slane %v371, 4
    %v373 = vadd.f32 %v371, %v372
    %v374 = vrot.slane %v373, 2
    %v375 = vadd.f32 %v373, %v374
    %v376 = vrot.slane %v375, 1
    %v377 = vadd.f32 %v375, %v376
    %v378 = vsel %vm181, %v81, 0.0
    %v379 = vrot.slane %v378, 4
    %v380 = vadd.f32 %v378, %v379
    %v381 = vrot.slane %v380, 2
    %v382 = vadd.f32 %v380, %v381
    %v383 = vrot.slane %v382, 1
    %v384 = vadd.f32 %v382, %v383
    %v385 = vsel %vm181, %v82, 0.0
    %v386 = vrot.slane %v385, 4
    %v387 = vadd.f32 %v385, %v386
    %v388 = vrot.slane %v387, 2
    %v389 = vadd.f32 %v387, %v388
    %v390 = vrot.slane %v389, 1
    %v391 = vadd.f32 %v389, %v390
    %v392 = vsel %vm181, %v83, 0.0
    %v393 = vrot.slane %v392, 4
    %v394 = vadd.f32 %v392, %v393
    %v395 = vrot.slane %v394, 2
    %v396 = vadd.f32 %v394, %v395
    %v397 = vrot.slane %v396, 1
    %v398 = vadd.f32 %v396, %v397
    %v399 = vsel %vm181, %v84, 0.0
    %v400 = vrot.slane %v399, 4
    %v401 = vadd.f32 %v399, %v400
    %v402 = vrot.slane %v401, 2
    %v403 = vadd.f32 %v401, %v402
    %v404 = vrot.slane %v403, 1
    %v405 = vadd.f32 %v403, %v404
    %v406 = vsel %vm181, %v85, 0.0
    %v407 = vrot.slane %v406, 4
    %v408 = vadd.f32 %v406, %v407
    %v409 = vrot.slane %v408, 2
    %v410 = vadd.f32 %v408, %v409
    %v411 = vrot.slane %v410, 1
    %v412 = vadd.f32 %v410, %v411
    %v413 = vsel %vm181, %v86, 0.0
    %v414 = vrot.slane %v413, 4
    %v415 = vadd.f32 %v413, %v414
    %v416 = vrot.slane %v415, 2
    %v417 = vadd.f32 %v415, %v416
    %v418 = vrot.slane %v417, 1
    %v419 = vadd.f32 %v417, %v418
    %v420 = vsel %vm181, %v87, 0.0
    %v421 = vrot.slane %v420, 4
    %v422 = vadd.f32 %v420, %v421
    %v423 = vrot.slane %v422, 2
    %v424 = vadd.f32 %v422, %v423
    %v425 = vrot.slane %v424, 1
    %v426 = vadd.f32 %v424, %v425
    %v427 = vsel %vm181, %v88, 0.0
    %v428 = vrot.slane %v427, 4
    %v429 = vadd.f32 %v427, %v428
    %v430 = vrot.slane %v429, 2
    %v431 = vadd.f32 %v429, %v430
    %v432 = vrot.slane %v431, 1
    %v433 = vadd.f32 %v431, %v432
    %v434 = vsel %vm181, %v89, 0.0
    %v435 = vrot.slane %v434, 4
    %v436 = vadd.f32 %v434, %v435
    %v437 = vrot.slane %v436, 2
    %v438 = vadd.f32 %v436, %v437
    %v439 = vrot.slane %v438, 1
    %v440 = vadd.f32 %v438, %v439
    %v441 = vsel %vm181, %v90, 0.0
    %v442 = vrot.slane %v441, 4
    %v443 = vadd.f32 %v441, %v442
    %v444 = vrot.slane %v443, 2
    %v445 = vadd.f32 %v443, %v444
    %v446 = vrot.slane %v445, 1
    %v447 = vadd.f32 %v445, %v446
    %v448 = vsel %vm181, %v91, 0.0
    %v449 = vrot.slane %v448, 4
    %v450 = vadd.f32 %v448, %v449
    %v451 = vrot.slane %v450, 2
    %v452 = vadd.f32 %v450, %v451
    %v453 = vrot.slane %v452, 1
    %v454 = vadd.f32 %v452, %v453
    %v455 = vsel %vm181, %v92, 0.0
    %v456 = vrot.slane %v455, 4
    %v457 = vadd.f32 %v455, %v456
    %v458 = vrot.slane %v457, 2
    %v459 = vadd.f32 %v457, %v458
    %v460 = vrot.slane %v459, 1
    %v461 = vadd.f32 %v459, %v460
    %v462 = vsel %vm181, %v93, 0.0
    %v463 = vrot.slane %v462, 4
    %v464 = vadd.f32 %v462, %v463
    %v465 = vrot.slane %v464, 2
    %v466 = vadd.f32 %v464, %v465
    %v467 = vrot.slane %v466, 1
    %v468 = vadd.f32 %v466, %v467
    %v469 = vsel %vm181, %v94, 0.0
    %v470 = vrot.slane %v469, 4
    %v471 = vadd.f32 %v469, %v470
    %v472 = vrot.slane %v471, 2
    %v473 = vadd.f32 %v471, %v472
    %v474 = vrot.slane %v473, 1
    %v475 = vadd.f32 %v473, %v474
    %v476 = vsel %vm181, %v95, 0.0
    %v477 = vrot.slane %v476, 4
    %v478 = vadd.f32 %v476, %v477
    %v479 = vrot.slane %v478, 2
    %v480 = vadd.f32 %v478, %v479
    %v481 = vrot.slane %v480, 1
    %v482 = vadd.f32 %v480, %v481
    %v483 = vsel %vm181, %v96, 0.0
    %v484 = vrot.slane %v483, 4
    %v485 = vadd.f32 %v483, %v484
    %v486 = vrot.slane %v485, 2
    %v487 = vadd.f32 %v485, %v486
    %v488 = vrot.slane %v487, 1
    %v489 = vadd.f32 %v487, %v488
    %v490 = vsel %vm181, %v97, 0.0
    %v491 = vrot.slane %v490, 4
    %v492 = vadd.f32 %v490, %v491
    %v493 = vrot.slane %v492, 2
    %v494 = vadd.f32 %v492, %v493
    %v495 = vrot.slane %v494, 1
    %v496 = vadd.f32 %v494, %v495
    %v497 = vsel %vm181, %v98, 0.0
    %v498 = vrot.slane %v497, 4
    %v499 = vadd.f32 %v497, %v498
    %v500 = vrot.slane %v499, 2
    %v501 = vadd.f32 %v499, %v500
    %v502 = vrot.slane %v501, 1
    %v503 = vadd.f32 %v501, %v502
    %v504 = vsel %vm181, %v99, 0.0
    %v505 = vrot.slane %v504, 4
    %v506 = vadd.f32 %v504, %v505
    %v507 = vrot.slane %v506, 2
    %v508 = vadd.f32 %v506, %v507
    %v509 = vrot.slane %v508, 1
    %v510 = vadd.f32 %v508, %v509
    %v511 = vsel %vm181, %v100, 0.0
    %v512 = vrot.slane %v511, 4
    %v513 = vadd.f32 %v511, %v512
    %v514 = vrot.slane %v513, 2
    %v515 = vadd.f32 %v513, %v514
    %v516 = vrot.slane %v515, 1
    %v517 = vadd.f32 %v515, %v516
    %v518 = vsel %vm181, %v101, 0.0
    %v519 = vrot.slane %v518, 4
    %v520 = vadd.f32 %v518, %v519
    %v521 = vrot.slane %v520, 2
    %v522 = vadd.f32 %v520, %v521
    %v523 = vrot.slane %v522, 1
    %v524 = vadd.f32 %v522, %v523
    %v525 = vsel %vm181, %v102, 0.0
    %v526 = vrot.slane %v525, 4
    %v527 = vadd.f32 %v525, %v526
    %v528 = vrot.slane %v527, 2
    %v529 = vadd.f32 %v527, %v528
    %v530 = vrot.slane %v529, 1
    %v531 = vadd.f32 %v529, %v530
    %v532 = vsel %vm181, %v103, 0.0
    %v533 = vrot.slane %v532, 4
    %v534 = vadd.f32 %v532, %v533
    %v535 = vrot.slane %v534, 2
    %v536 = vadd.f32 %v534, %v535
    %v537 = vrot.slane %v536, 1
    %v538 = vadd.f32 %v536, %v537
    %v539 = vsel %vm181, %v104, 0.0
    %v540 = vrot.slane %v539, 4
    %v541 = vadd.f32 %v539, %v540
    %v542 = vrot.slane %v541, 2
    %v543 = vadd.f32 %v541, %v542
    %v544 = vrot.slane %v543, 1
    %v545 = vadd.f32 %v543, %v544
    %v546 = vsel %vm181, %v105, 0.0
    %v547 = vrot.slane %v546, 4
    %v548 = vadd.f32 %v546, %v547
    %v549 = vrot.slane %v548, 2
    %v550 = vadd.f32 %v548, %v549
    %v551 = vrot.slane %v550, 1
    %v552 = vadd.f32 %v550, %v551
    %v553 = vsel %vm181, %v106, 0.0
    %v554 = vrot.slane %v553, 4
    %v555 = vadd.f32 %v553, %v554
    %v556 = vrot.slane %v555, 2
    %v557 = vadd.f32 %v555, %v556
    %v558 = vrot.slane %v557, 1
    %v559 = vadd.f32 %v557, %v558
    %v560 = vsel %vm181, %v107, 0.0
    %v561 = vrot.slane %v560, 4
    %v562 = vadd.f32 %v560, %v561
    %v563 = vrot.slane %v562, 2
    %v564 = vadd.f32 %v562, %v563
    %v565 = vrot.slane %v564, 1
    %v566 = vadd.f32 %v564, %v565
    %v567 = vsel %vm181, %v108, 0.0
    %v568 = vrot.slane %v567, 4
    %v569 = vadd.f32 %v567, %v568
    %v570 = vrot.slane %v569, 2
    %v571 = vadd.f32 %v569, %v570
    %v572 = vrot.slane %v571, 1
    %v573 = vadd.f32 %v571, %v572
    %v574 = vsel %vm181, %v109, 0.0
    %v575 = vrot.slane %v574, 4
    %v576 = vadd.f32 %v574, %v575
    %v577 = vrot.slane %v576, 2
    %v578 = vadd.f32 %v576, %v577
    %v579 = vrot.slane %v578, 1
    %v580 = vadd.f32 %v578, %v579
    %v581 = vsel %vm181, %v110, 0.0
    %v582 = vrot.slane %v581, 4
    %v583 = vadd.f32 %v581, %v582
    %v584 = vrot.slane %v583, 2
    %v585 = vadd.f32 %v583, %v584
    %v586 = vrot.slane %v585, 1
    %v587 = vadd.f32 %v585, %v586
    %v588 = vsel %vm181, %v111, 0.0
    %v589 = vrot.slane %v588, 4
    %v590 = vadd.f32 %v588, %v589
    %v591 = vrot.slane %v590, 2
    %v592 = vadd.f32 %v590, %v591
    %v593 = vrot.slane %v592, 1
    %v594 = vadd.f32 %v592, %v593
    %v595 = vsel %vm181, %v112, 0.0
    %v596 = vrot.slane %v595, 4
    %v597 = vadd.f32 %v595, %v596
    %v598 = vrot.slane %v597, 2
    %v599 = vadd.f32 %v597, %v598
    %v600 = vrot.slane %v599, 1
    %v601 = vadd.f32 %v599, %v600
    %v602 = vsel %vm181, %v113, 0.0
    %v603 = vrot.slane %v602, 4
    %v604 = vadd.f32 %v602, %v603
    %v605 = vrot.slane %v604, 2
    %v606 = vadd.f32 %v604, %v605
    %v607 = vrot.slane %v606, 1
    %v608 = vadd.f32 %v606, %v607
    %v609 = vsel %vm181, %v114, 0.0
    %v610 = vrot.slane %v609, 4
    %v611 = vadd.f32 %v609, %v610
    %v612 = vrot.slane %v611, 2
    %v613 = vadd.f32 %v611, %v612
    %v614 = vrot.slane %v613, 1
    %v615 = vadd.f32 %v613, %v614
    %v616 = vsel %vm181, %v115, 0.0
    %v617 = vrot.slane %v616, 4
    %v618 = vadd.f32 %v616, %v617
    %v619 = vrot.slane %v618, 2
    %v620 = vadd.f32 %v618, %v619
    %v621 = vrot.slane %v620, 1
    %v622 = vadd.f32 %v620, %v621
    %v623 = vsel %vm181, %v116, 0.0
    %v624 = vrot.slane %v623, 4
    %v625 = vadd.f32 %v623, %v624
    %v626 = vrot.slane %v625, 2
    %v627 = vadd.f32 %v625, %v626
    %v628 = vrot.slane %v627, 1
    %v629 = vadd.f32 %v627, %v628
    %v630 = vsel %vm181, %v117, 0.0
    %v631 = vrot.slane %v630, 4
    %v632 = vadd.f32 %v630, %v631
    %v633 = vrot.slane %v632, 2
    %v634 = vadd.f32 %v632, %v633
    %v635 = vrot.slane %v634, 1
    %v636 = vadd.f32 %v634, %v635
    %v637 = vsel %vm181, %v118, 0.0
    %v638 = vrot.slane %v637, 4
    %v639 = vadd.f32 %v637, %v638
    %v640 = vrot.slane %v639, 2
    %v641 = vadd.f32 %v639, %v640
    %v642 = vrot.slane %v641, 1
    %v643 = vadd.f32 %v641, %v642
    %v644 = vsel %vm181, %v119, 0.0
    %v645 = vrot.slane %v644, 4
    %v646 = vadd.f32 %v644, %v645
    %v647 = vrot.slane %v646, 2
    %v648 = vadd.f32 %v646, %v647
    %v649 = vrot.slane %v648, 1
    %v650 = vadd.f32 %v648, %v649
    %v651 = vsel %vm181, %v120, 0.0
    %v652 = vrot.slane %v651, 4
    %v653 = vadd.f32 %v651, %v652
    %v654 = vrot.slane %v653, 2
    %v655 = vadd.f32 %v653, %v654
    %v656 = vrot.slane %v655, 1
    %v657 = vadd.f32 %v655, %v656
    %v658 = vsel %vm181, %v121, 0.0
    %v659 = vrot.slane %v658, 4
    %v660 = vadd.f32 %v658, %v659
    %v661 = vrot.slane %v660, 2
    %v662 = vadd.f32 %v660, %v661
    %v663 = vrot.slane %v662, 1
    %v664 = vadd.f32 %v662, %v663
    %v665 = vsel %vm181, %v122, 0.0
    %v666 = vrot.slane %v665, 4
    %v667 = vadd.f32 %v665, %v666
    %v668 = vrot.slane %v667, 2
    %v669 = vadd.f32 %v667, %v668
    %v670 = vrot.slane %v669, 1
    %v671 = vadd.f32 %v669, %v670
    %v672 = vsel %vm181, %v123, 0.0
    %v673 = vrot.slane %v672, 4
    %v674 = vadd.f32 %v672, %v673
    %v675 = vrot.slane %v674, 2
    %v676 = vadd.f32 %v674, %v675
    %v677 = vrot.slane %v676, 1
    %v678 = vadd.f32 %v676, %v677
    %v679 = vsel %vm181, %v124, 0.0
    %v680 = vrot.slane %v679, 4
    %v681 = vadd.f32 %v679, %v680
    %v682 = vrot.slane %v681, 2
    %v683 = vadd.f32 %v681, %v682
    %v684 = vrot.slane %v683, 1
    %v685 = vadd.f32 %v683, %v684
    %v686 = vsel %vm181, %v125, 0.0
    %v687 = vrot.slane %v686, 4
    %v688 = vadd.f32 %v686, %v687
    %v689 = vrot.slane %v688, 2
    %v690 = vadd.f32 %v688, %v689
    %v691 = vrot.slane %v690, 1
    %v692 = vadd.f32 %v690, %v691
    %v693 = vsel %vm181, %v126, 0.0
    %v694 = vrot.slane %v693, 4
    %v695 = vadd.f32 %v693, %v694
    %v696 = vrot.slane %v695, 2
    %v697 = vadd.f32 %v695, %v696
    %v698 = vrot.slane %v697, 1
    %v699 = vadd.f32 %v697, %v698
    %v700 = vsel %vm181, %v127, 0.0
    %v701 = vrot.slane %v700, 4
    %v702 = vadd.f32 %v700, %v701
    %v703 = vrot.slane %v702, 2
    %v704 = vadd.f32 %v702, %v703
    %v705 = vrot.slane %v704, 1
    %v706 = vadd.f32 %v704, %v705
    %v707 = vsel %vm181, %v128, 0.0
    %v708 = vrot.slane %v707, 4
    %v709 = vadd.f32 %v707, %v708
    %v710 = vrot.slane %v709, 2
    %v711 = vadd.f32 %v709, %v710
    %v712 = vrot.slane %v711, 1
    %v713 = vadd.f32 %v711, %v712
    %v714 = vsel %vm181, %v129, 0.0
    %v715 = vrot.slane %v714, 4
    %v716 = vadd.f32 %v714, %v715
    %v717 = vrot.slane %v716, 2
    %v718 = vadd.f32 %v716, %v717
    %v719 = vrot.slane %v718, 1
    %v720 = vadd.f32 %v718, %v719
    %v721 = vsel %vm181, %v130, 0.0
    %v722 = vrot.slane %v721, 4
    %v723 = vadd.f32 %v721, %v722
    %v724 = vrot.slane %v723, 2
    %v725 = vadd.f32 %v723, %v724
    %v726 = vrot.slane %v725, 1
    %v727 = vadd.f32 %v725, %v726
    %v728 = vsel %vm181, %v131, 0.0
    %v729 = vrot.slane %v728, 4
    %v730 = vadd.f32 %v728, %v729
    %v731 = vrot.slane %v730, 2
    %v732 = vadd.f32 %v730, %v731
    %v733 = vrot.slane %v732, 1
    %v734 = vadd.f32 %v732, %v733
    %v735 = vsel %vm181, %v132, 0.0
    %v736 = vrot.slane %v735, 4
    %v737 = vadd.f32 %v735, %v736
    %v738 = vrot.slane %v737, 2
    %v739 = vadd.f32 %v737, %v738
    %v740 = vrot.slane %v739, 1
    %v741 = vadd.f32 %v739, %v740
    %v742 = vsel %vm181, %v133, 0.0
    %v743 = vrot.slane %v742, 4
    %v744 = vadd.f32 %v742, %v743
    %v745 = vrot.slane %v744, 2
    %v746 = vadd.f32 %v744, %v745
    %v747 = vrot.slane %v746, 1
    %v748 = vadd.f32 %v746, %v747
    %v749 = vsel %vm181, %v134, 0.0
    %v750 = vrot.slane %v749, 4
    %v751 = vadd.f32 %v749, %v750
    %v752 = vrot.slane %v751, 2
    %v753 = vadd.f32 %v751, %v752
    %v754 = vrot.slane %v753, 1
    %v755 = vadd.f32 %v753, %v754
    %v756 = vsel %vm181, %v135, 0.0
    %v757 = vrot.slane %v756, 4
    %v758 = vadd.f32 %v756, %v757
    %v759 = vrot.slane %v758, 2
    %v760 = vadd.f32 %v758, %v759
    %v761 = vrot.slane %v760, 1
    %v762 = vadd.f32 %v760, %v761
    %v763 = vsel %vm181, %v136, 0.0
    %v764 = vrot.slane %v763, 4
    %v765 = vadd.f32 %v763, %v764
    %v766 = vrot.slane %v765, 2
    %v767 = vadd.f32 %v765, %v766
    %v768 = vrot.slane %v767, 1
    %v769 = vadd.f32 %v767, %v768
    %v770 = vsel %vm181, %v137, 0.0
    %v771 = vrot.slane %v770, 4
    %v772 = vadd.f32 %v770, %v771
    %v773 = vrot.slane %v772, 2
    %v774 = vadd.f32 %v772, %v773
    %v775 = vrot.slane %v774, 1
    %v776 = vadd.f32 %v774, %v775
    %v777 = vsel %vm181, %v138, 0.0
    %v778 = vrot.slane %v777, 4
    %v779 = vadd.f32 %v777, %v778
    %v780 = vrot.slane %v779, 2
    %v781 = vadd.f32 %v779, %v780
    %v782 = vrot.slane %v781, 1
    %v783 = vadd.f32 %v781, %v782
    %v784 = vsel %vm181, %v139, 0.0
    %v785 = vrot.slane %v784, 4
    %v786 = vadd.f32 %v784, %v785
    %v787 = vrot.slane %v786, 2
    %v788 = vadd.f32 %v786, %v787
    %v789 = vrot.slane %v788, 1
    %v790 = vadd.f32 %v788, %v789
    %v791 = vsel %vm181, %v140, 0.0
    %v792 = vrot.slane %v791, 4
    %v793 = vadd.f32 %v791, %v792
    %v794 = vrot.slane %v793, 2
    %v795 = vadd.f32 %v793, %v794
    %v796 = vrot.slane %v795, 1
    %v797 = vadd.f32 %v795, %v796
    %v798 = vsel %vm181, %v141, 0.0
    %v799 = vrot.slane %v798, 4
    %v800 = vadd.f32 %v798, %v799
    %v801 = vrot.slane %v800, 2
    %v802 = vadd.f32 %v800, %v801
    %v803 = vrot.slane %v802, 1
    %v804 = vadd.f32 %v802, %v803
    %v805 = vsel %vm181, %v142, 0.0
    %v806 = vrot.slane %v805, 4
    %v807 = vadd.f32 %v805, %v806
    %v808 = vrot.slane %v807, 2
    %v809 = vadd.f32 %v807, %v808
    %v810 = vrot.slane %v809, 1
    %v811 = vadd.f32 %v809, %v810
    %v812 = vsel %vm181, %v143, 0.0
    %v813 = vrot.slane %v812, 4
    %v814 = vadd.f32 %v812, %v813
    %v815 = vrot.slane %v814, 2
    %v816 = vadd.f32 %v814, %v815
    %v817 = vrot.slane %v816, 1
    %v818 = vadd.f32 %v816, %v817
    %v819 = vsel %vm181, %v144, 0.0
    %v820 = vrot.slane %v819, 4
    %v821 = vadd.f32 %v819, %v820
    %v822 = vrot.slane %v821, 2
    %v823 = vadd.f32 %v821, %v822
    %v824 = vrot.slane %v823, 1
    %v825 = vadd.f32 %v823, %v824
    %v826 = vsel %vm181, %v145, 0.0
    %v827 = vrot.slane %v826, 4
    %v828 = vadd.f32 %v826, %v827
    %v829 = vrot.slane %v828, 2
    %v830 = vadd.f32 %v828, %v829
    %v831 = vrot.slane %v830, 1
    %v832 = vadd.f32 %v830, %v831
    %v833 = vsel %vm181, %v146, 0.0
    %v834 = vrot.slane %v833, 4
    %v835 = vadd.f32 %v833, %v834
    %v836 = vrot.slane %v835, 2
    %v837 = vadd.f32 %v835, %v836
    %v838 = vrot.slane %v837, 1
    %v839 = vadd.f32 %v837, %v838
    %v840 = vsel %vm181, %v147, 0.0
    %v841 = vrot.slane %v840, 4
    %v842 = vadd.f32 %v840, %v841
    %v843 = vrot.slane %v842, 2
    %v844 = vadd.f32 %v842, %v843
    %v845 = vrot.slane %v844, 1
    %v846 = vadd.f32 %v844, %v845
    %v847 = vsel %vm181, %v148, 0.0
    %v848 = vrot.slane %v847, 4
    %v849 = vadd.f32 %v847, %v848
    %v850 = vrot.slane %v849, 2
    %v851 = vadd.f32 %v849, %v850
    %v852 = vrot.slane %v851, 1
    %v853 = vadd.f32 %v851, %v852
    %v854 = vsel %vm181, %v149, 0.0
    %v855 = vrot.slane %v854, 4
    %v856 = vadd.f32 %v854, %v855
    %v857 = vrot.slane %v856, 2
    %v858 = vadd.f32 %v856, %v857
    %v859 = vrot.slane %v858, 1
    %v860 = vadd.f32 %v858, %v859
    %v861 = vsel %vm181, %v150, 0.0
    %v862 = vrot.slane %v861, 4
    %v863 = vadd.f32 %v861, %v862
    %v864 = vrot.slane %v863, 2
    %v865 = vadd.f32 %v863, %v864
    %v866 = vrot.slane %v865, 1
    %v867 = vadd.f32 %v865, %v866
    %v868 = vsel %vm181, %v151, 0.0
    %v869 = vrot.slane %v868, 4
    %v870 = vadd.f32 %v868, %v869
    %v871 = vrot.slane %v870, 2
    %v872 = vadd.f32 %v870, %v871
    %v873 = vrot.slane %v872, 1
    %v874 = vadd.f32 %v872, %v873
    %v875 = vsel %vm181, %v152, 0.0
    %v876 = vrot.slane %v875, 4
    %v877 = vadd.f32 %v875, %v876
    %v878 = vrot.slane %v877, 2
    %v879 = vadd.f32 %v877, %v878
    %v880 = vrot.slane %v879, 1
    %v881 = vadd.f32 %v879, %v880
    %v882 = vsel %vm181, %v153, 0.0
    %v883 = vrot.slane %v882, 4
    %v884 = vadd.f32 %v882, %v883
    %v885 = vrot.slane %v884, 2
    %v886 = vadd.f32 %v884, %v885
    %v887 = vrot.slane %v886, 1
    %v888 = vadd.f32 %v886, %v887
    %v889 = vsel %vm181, %v154, 0.0
    %v890 = vrot.slane %v889, 4
    %v891 = vadd.f32 %v889, %v890
    %v892 = vrot.slane %v891, 2
    %v893 = vadd.f32 %v891, %v892
    %v894 = vrot.slane %v893, 1
    %v895 = vadd.f32 %v893, %v894
    %v896 = vsel %vm181, %v155, 0.0
    %v897 = vrot.slane %v896, 4
    %v898 = vadd.f32 %v896, %v897
    %v899 = vrot.slane %v898, 2
    %v900 = vadd.f32 %v898, %v899
    %v901 = vrot.slane %v900, 1
    %v902 = vadd.f32 %v900, %v901
    %v903 = vsel %vm181, %v156, 0.0
    %v904 = vrot.slane %v903, 4
    %v905 = vadd.f32 %v903, %v904
    %v906 = vrot.slane %v905, 2
    %v907 = vadd.f32 %v905, %v906
    %v908 = vrot.slane %v907, 1
    %v909 = vadd.f32 %v907, %v908
    %v910 = vsel %vm181, %v157, 0.0
    %v911 = vrot.slane %v910, 4
    %v912 = vadd.f32 %v910, %v911
    %v913 = vrot.slane %v912, 2
    %v914 = vadd.f32 %v912, %v913
    %v915 = vrot.slane %v914, 1
    %v916 = vadd.f32 %v914, %v915
    %v917 = vsel %vm181, %v158, 0.0
    %v918 = vrot.slane %v917, 4
    %v919 = vadd.f32 %v917, %v918
    %v920 = vrot.slane %v919, 2
    %v921 = vadd.f32 %v919, %v920
    %v922 = vrot.slane %v921, 1
    %v923 = vadd.f32 %v921, %v922
    %v924 = vsel %vm181, %v159, 0.0
    %v925 = vrot.slane %v924, 4
    %v926 = vadd.f32 %v924, %v925
    %v927 = vrot.slane %v926, 2
    %v928 = vadd.f32 %v926, %v927
    %v929 = vrot.slane %v928, 1
    %v930 = vadd.f32 %v928, %v929
    %v931 = vsel %vm181, %v160, 0.0
    %v932 = vrot.slane %v931, 4
    %v933 = vadd.f32 %v931, %v932
    %v934 = vrot.slane %v933, 2
    %v935 = vadd.f32 %v933, %v934
    %v936 = vrot.slane %v935, 1
    %v937 = vadd.f32 %v935, %v936
    %v938 = vsel %vm181, %v161, 0.0
    %v939 = vrot.slane %v938, 4
    %v940 = vadd.f32 %v938, %v939
    %v941 = vrot.slane %v940, 2
    %v942 = vadd.f32 %v940, %v941
    %v943 = vrot.slane %v942, 1
    %v944 = vadd.f32 %v942, %v943
    %v945 = vsel %vm181, %v162, 0.0
    %v946 = vrot.slane %v945, 4
    %v947 = vadd.f32 %v945, %v946
    %v948 = vrot.slane %v947, 2
    %v949 = vadd.f32 %v947, %v948
    %v950 = vrot.slane %v949, 1
    %v951 = vadd.f32 %v949, %v950
    %v952 = vsel %vm181, %v163, 0.0
    %v953 = vrot.slane %v952, 4
    %v954 = vadd.f32 %v952, %v953
    %v955 = vrot.slane %v954, 2
    %v956 = vadd.f32 %v954, %v955
    %v957 = vrot.slane %v956, 1
    %v958 = vadd.f32 %v956, %v957
    %v959 = vsel %vm181, %v164, 0.0
    %v960 = vrot.slane %v959, 4
    %v961 = vadd.f32 %v959, %v960
    %v962 = vrot.slane %v961, 2
    %v963 = vadd.f32 %v961, %v962
    %v964 = vrot.slane %v963, 1
    %v965 = vadd.f32 %v963, %v964
    %v966 = vsel %vm181, %v165, 0.0
    %v967 = vrot.slane %v966, 4
    %v968 = vadd.f32 %v966, %v967
    %v969 = vrot.slane %v968, 2
    %v970 = vadd.f32 %v968, %v969
    %v971 = vrot.slane %v970, 1
    %v972 = vadd.f32 %v970, %v971
    %v973 = vsel %vm181, %v166, 0.0
    %v974 = vrot.slane %v973, 4
    %v975 = vadd.f32 %v973, %v974
    %v976 = vrot.slane %v975, 2
    %v977 = vadd.f32 %v975, %v976
    %v978 = vrot.slane %v977, 1
    %v979 = vadd.f32 %v977, %v978
    %v980 = vsel %vm181, %v167, 0.0
    %v981 = vrot.slane %v980, 4
    %v982 = vadd.f32 %v980, %v981
    %v983 = vrot.slane %v982, 2
    %v984 = vadd.f32 %v982, %v983
    %v985 = vrot.slane %v984, 1
    %v986 = vadd.f32 %v984, %v985
    %v987 = vsel %vm181, %v168, 0.0
    %v988 = vrot.slane %v987, 4
    %v989 = vadd.f32 %v987, %v988
    %v990 = vrot.slane %v989, 2
    %v991 = vadd.f32 %v989, %v990
    %v992 = vrot.slane %v991, 1
    %v993 = vadd.f32 %v991, %v992
    %v994 = vsel %vm181, %v169, 0.0
    %v995 = vrot.slane %v994, 4
    %v996 = vadd.f32 %v994, %v995
    %v997 = vrot.slane %v996, 2
    %v998 = vadd.f32 %v996, %v997
    %v999 = vrot.slane %v998, 1
    %v1000 = vadd.f32 %v998, %v999
    %v1001 = vsel %vm181, %v170, 0.0
    %v1002 = vrot.slane %v1001, 4
    %v1003 = vadd.f32 %v1001, %v1002
    %v1004 = vrot.slane %v1003, 2
    %v1005 = vadd.f32 %v1003, %v1004
    %v1006 = vrot.slane %v1005, 1
    %v1007 = vadd.f32 %v1005, %v1006
    %v1008 = vsel %vm181, %v171, 0.0
    %v1009 = vrot.slane %v1008, 4
    %v1010 = vadd.f32 %v1008, %v1009
    %v1011 = vrot.slane %v1010, 2
    %v1012 = vadd.f32 %v1010, %v1011
    %v1013 = vrot.slane %v1012, 1
    %v1014 = vadd.f32 %v1012, %v1013
    %v1015 = vsel %vm181, %v172, 0.0
    %v1016 = vrot.slane %v1015, 4
    %v1017 = vadd.f32 %v1015, %v1016
    %v1018 = vrot.slane %v1017, 2
    %v1019 = vadd.f32 %v1017, %v1018
    %v1020 = vrot.slane %v1019, 1
    %v1021 = vadd.f32 %v1019, %v1020
    %v1022 = vsel %vm181, %v173, 0.0
    %v1023 = vrot.slane %v1022, 4
    %v1024 = vadd.f32 %v1022, %v1023
    %v1025 = vrot.slane %v1024, 2
    %v1026 = vadd.f32 %v1024, %v1025
    %v1027 = vrot.slane %v1026, 1
    %v1028 = vadd.f32 %v1026, %v1027
    %v1029 = vsel %vm181, %v174, 0.0
    %v1030 = vrot.slane %v1029, 4
    %v1031 = vadd.f32 %v1029, %v1030
    %v1032 = vrot.slane %v1031, 2
    %v1033 = vadd.f32 %v1031, %v1032
    %v1034 = vrot.slane %v1033, 1
    %v1035 = vadd.f32 %v1033, %v1034
    %v1036 = vsel %vm181, %v175, 0.0
    %v1037 = vrot.slane %v1036, 4
    %v1038 = vadd.f32 %v1036, %v1037
    %v1039 = vrot.slane %v1038, 2
    %v1040 = vadd.f32 %v1038, %v1039
    %v1041 = vrot.slane %v1040, 1
    %v1042 = vadd.f32 %v1040, %v1041
    %v1043 = vsel %vm181, %v176, 0.0
    %v1044 = vrot.slane %v1043, 4
    %v1045 = vadd.f32 %v1043, %v1044
    %v1046 = vrot.slane %v1045, 2
    %v1047 = vadd.f32 %v1045, %v1046
    %v1048 = vrot.slane %v1047, 1
    %v1049 = vadd.f32 %v1047, %v1048
    %v1050 = vsel %vm181, %v177, 0.0
    %v1051 = vrot.slane %v1050, 4
    %v1052 = vadd.f32 %v1050, %v1051
    %v1053 = vrot.slane %v1052, 2
    %v1054 = vadd.f32 %v1052, %v1053
    %v1055 = vrot.slane %v1054, 1
    %v1056 = vadd.f32 %v1054, %v1055
    %v1057 = vsel %vm181, %v178, 0.0
    %v1058 = vrot.slane %v1057, 4
    %v1059 = vadd.f32 %v1057, %v1058
    %v1060 = vrot.slane %v1059, 2
    %v1061 = vadd.f32 %v1059, %v1060
    %v1062 = vrot.slane %v1061, 1
    %v1063 = vadd.f32 %v1061, %v1062
    %v1064 = vsel %vm181, %v179, 0.0
    %v1065 = vrot.slane %v1064, 4
    %v1066 = vadd.f32 %v1064, %v1065
    %v1067 = vrot.slane %v1066, 2
    %v1068 = vadd.f32 %v1066, %v1067
    %v1069 = vrot.slane %v1068, 1
    %v1070 = vadd.f32 %v1068, %v1069
    %v1071 = vsel %vm181, %v180, 0.0
    %v1072 = vrot.slane %v1071, 4
    %v1073 = vadd.f32 %v1071, %v1072
    %v1074 = vrot.slane %v1073, 2
    %v1075 = vadd.f32 %v1073, %v1074
    %v1076 = vrot.slane %v1075, 1
    %v1077 = vadd.f32 %v1075, %v1076
    %v1078 = vrcp.pop 8.0
    %v1079 = vmul.f32 %v188, %v1078
    %v1080 = vmul.f32 %v195, %v1078
    %v1081 = vmul.f32 %v202, %v1078
    %v1082 = vmul.f32 %v209, %v1078
    %v1083 = vmul.f32 %v216, %v1078
    %v1084 = vmul.f32 %v223, %v1078
    %v1085 = vmul.f32 %v230, %v1078
    %v1086 = vmul.f32 %v237, %v1078
    %v1087 = vmul.f32 %v244, %v1078
    %v1088 = vmul.f32 %v251, %v1078
    %v1089 = vmul.f32 %v258, %v1078
    %v1090 = vmul.f32 %v265, %v1078
    %v1091 = vmul.f32 %v272, %v1078
    %v1092 = vmul.f32 %v279, %v1078
    %v1093 = vmul.f32 %v286, %v1078
    %v1094 = vmul.f32 %v293, %v1078
    %v1095 = vmul.f32 %v300, %v1078
    %v1096 = vmul.f32 %v307, %v1078
    %v1097 = vmul.f32 %v314, %v1078
    %v1098 = vmul.f32 %v321, %v1078
    %v1099 = vmul.f32 %v328, %v1078
    %v1100 = vmul.f32 %v335, %v1078
    %v1101 = vmul.f32 %v342, %v1078
    %v1102 = vmul.f32 %v349, %v1078
    %v1103 = vmul.f32 %v356, %v1078
    %v1104 = vmul.f32 %v363, %v1078
    %v1105 = vmul.f32 %v370, %v1078
    %v1106 = vmul.f32 %v377, %v1078
    %v1107 = vmul.f32 %v384, %v1078
    %v1108 = vmul.f32 %v391, %v1078
    %v1109 = vmul.f32 %v398, %v1078
    %v1110 = vmul.f32 %v405, %v1078
    %v1111 = vmul.f32 %v412, %v1078
    %v1112 = vmul.f32 %v419, %v1078
    %v1113 = vmul.f32 %v426, %v1078
    %v1114 = vmul.f32 %v433, %v1078
    %v1115 = vmul.f32 %v440, %v1078
    %v1116 = vmul.f32 %v447, %v1078
    %v1117 = vmul.f32 %v454, %v1078
    %v1118 = vmul.f32 %v461, %v1078
    %v1119 = vmul.f32 %v468, %v1078
    %v1120 = vmul.f32 %v475, %v1078
    %v1121 = vmul.f32 %v482, %v1078
    %v1122 = vmul.f32 %v489, %v1078
    %v1123 = vmul.f32 %v496, %v1078
    %v1124 = vmul.f32 %v503, %v1078
    %v1125 = vmul.f32 %v510, %v1078
    %v1126 = vmul.f32 %v517, %v1078
    %v1127 = vmul.f32 %v524, %v1078
    %v1128 = vmul.f32 %v531, %v1078
    %v1129 = vmul.f32 %v538, %v1078
    %v1130 = vmul.f32 %v545, %v1078
    %v1131 = vmul.f32 %v552, %v1078
    %v1132 = vmul.f32 %v559, %v1078
    %v1133 = vmul.f32 %v566, %v1078
    %v1134 = vmul.f32 %v573, %v1078
    %v1135 = vmul.f32 %v580, %v1078
    %v1136 = vmul.f32 %v587, %v1078
    %v1137 = vmul.f32 %v594, %v1078
    %v1138 = vmul.f32 %v601, %v1078
    %v1139 = vmul.f32 %v608, %v1078
    %v1140 = vmul.f32 %v615, %v1078
    %v1141 = vmul.f32 %v622, %v1078
    %v1142 = vmul.f32 %v629, %v1078
    %v1143 = vmul.f32 %v636, %v1078
    %v1144 = vmul.f32 %v643, %v1078
    %v1145 = vmul.f32 %v650, %v1078
    %v1146 = vmul.f32 %v657, %v1078
    %v1147 = vmul.f32 %v664, %v1078
    %v1148 = vmul.f32 %v671, %v1078
    %v1149 = vmul.f32 %v678, %v1078
    %v1150 = vmul.f32 %v685, %v1078
    %v1151 = vmul.f32 %v692, %v1078
    %v1152 = vmul.f32 %v699, %v1078
    %v1153 = vmul.f32 %v706, %v1078
    %v1154 = vmul.f32 %v713, %v1078
    %v1155 = vmul.f32 %v720, %v1078
    %v1156 = vmul.f32 %v727, %v1078
    %v1157 = vmul.f32 %v734, %v1078
    %v1158 = vmul.f32 %v741, %v1078
    %v1159 = vmul.f32 %v748, %v1078
    %v1160 = vmul.f32 %v755, %v1078
    %v1161 = vmul.f32 %v762, %v1078
    %v1162 = vmul.f32 %v769, %v1078
    %v1163 = vmul.f32 %v776, %v1078
    %v1164 = vmul.f32 %v783, %v1078
    %v1165 = vmul.f32 %v790, %v1078
    %v1166 = vmul.f32 %v797, %v1078
    %v1167 = vmul.f32 %v804, %v1078
    %v1168 = vmul.f32 %v811, %v1078
    %v1169 = vmul.f32 %v818, %v1078
    %v1170 = vmul.f32 %v825, %v1078
    %v1171 = vmul.f32 %v832, %v1078
    %v1172 = vmul.f32 %v839, %v1078
    %v1173 = vmul.f32 %v846, %v1078
    %v1174 = vmul.f32 %v853, %v1078
    %v1175 = vmul.f32 %v860, %v1078
    %v1176 = vmul.f32 %v867, %v1078
    %v1177 = vmul.f32 %v874, %v1078
    %v1178 = vmul.f32 %v881, %v1078
    %v1179 = vmul.f32 %v888, %v1078
    %v1180 = vmul.f32 %v895, %v1078
    %v1181 = vmul.f32 %v902, %v1078
    %v1182 = vmul.f32 %v909, %v1078
    %v1183 = vmul.f32 %v916, %v1078
    %v1184 = vmul.f32 %v923, %v1078
    %v1185 = vmul.f32 %v930, %v1078
    %v1186 = vmul.f32 %v937, %v1078
    %v1187 = vmul.f32 %v944, %v1078
    %v1188 = vmul.f32 %v951, %v1078
    %v1189 = vmul.f32 %v958, %v1078
    %v1190 = vmul.f32 %v965, %v1078
    %v1191 = vmul.f32 %v972, %v1078
    %v1192 = vmul.f32 %v979, %v1078
    %v1193 = vmul.f32 %v986, %v1078
    %v1194 = vmul.f32 %v993, %v1078
    %v1195 = vmul.f32 %v1000, %v1078
    %v1196 = vmul.f32 %v1007, %v1078
    %v1197 = vmul.f32 %v1014, %v1078
    %v1198 = vmul.f32 %v1021, %v1078
    %v1199 = vmul.f32 %v1028, %v1078
    %v1200 = vmul.f32 %v1035, %v1078
    %v1201 = vmul.f32 %v1042, %v1078
    %v1202 = vmul.f32 %v1049, %v1078
    %v1203 = vmul.f32 %v1056, %v1078
    %v1204 = vmul.f32 %v1063, %v1078
    %v1205 = vmul.f32 %v1070, %v1078
    %v1206 = vmul.f32 %v1077, %v1078
    %v1207 = vld [vmem:[%s4] sm:$0xff]
    %vm1336 = vcmask 1041409
    %v1337 = vsel %vm1336, %v1080, %v1079
    %vm1338 = vcmask 1042434
    %v1339 = vsel %vm1338, %v1081, %v1337
    %vm1340 = vcmask 1043459
    %v1341 = vsel %vm1340, %v1082, %v1339
    %vm1342 = vcmask 1044484
    %v1343 = vsel %vm1342, %v1083, %v1341
    %vm1344 = vcmask 1045509
    %v1345 = vsel %vm1344, %v1084, %v1343
    %vm1346 = vcmask 1046534
    %v1347 = vsel %vm1346, %v1085, %v1345
    %vm1348 = vcmask 1047559
    %v1349 = vsel %vm1348, %v1086, %v1347
    %v1350 = vsel %vm1336, %v1088, %v1087
    %v1351 = vsel %vm1338, %v1089, %v1350
    %v1352 = vsel %vm1340, %v1090, %v1351
    %v1353 = vsel %vm1342, %v1091, %v1352
    %v1354 = vsel %vm1344, %v1092, %v1353
    %v1355 = vsel %vm1346, %v1093, %v1354
    %v1356 = vsel %vm1348, %v1094, %v1355
    %v1357 = vsel %vm1336, %v1096, %v1095
    %v1358 = vsel %vm1338, %v1097, %v1357
    %v1359 = vsel %vm1340, %v1098, %v1358
    %v1360 = vsel %vm1342, %v1099, %v1359
    %v1361 = vsel %vm1344, %v1100, %v1360
    %v1362 = vsel %vm1346, %v1101, %v1361
    %v1363 = vsel %vm1348, %v1102, %v1362
    %v1364 = vsel %vm1336, %v1104, %v1103
    %v1365 = vsel %vm1338, %v1105, %v1364
    %v1366 = vsel %vm1340, %v1106, %v1365
    %v1367 = vsel %vm1342, %v1107, %v1366
    %v1368 = vsel %vm1344, %v1108, %v1367
    %v1369 = vsel %vm1346, %v1109, %v1368
    %v1370 = vsel %vm1348, %v1110, %v1369
    %v1371 = vsel %vm1336, %v1112, %v1111
    %v1372 = vsel %vm1338, %v1113, %v1371
    %v1373 = vsel %vm1340, %v1114, %v1372
    %v1374 = vsel %vm1342, %v1115, %v1373
    %v1375 = vsel %vm1344, %v1116, %v1374
    %v1376 = vsel %vm1346, %v1117, %v1375
    %v1377 = vsel %vm1348, %v1118, %v1376
    %v1378 = vsel %vm1336, %v1120, %v1119
    %v1379 = vsel %vm1338, %v1121, %v1378
    %v1380 = vsel %vm1340, %v1122, %v1379
    %v1381 = vsel %vm1342, %v1123, %v1380
    %v1382 = vsel %vm1344, %v1124, %v1381
    %v1383 = vsel %vm1346, %v1125, %v1382
    %v1384 = vsel %vm1348, %v1126, %v1383
    %v1385 = vsel %vm1336, %v1128, %v1127
    %v1386 = vsel %vm1338, %v1129, %v1385
    %v1387 = vsel %vm1340, %v1130, %v1386
    %v1388 = vsel %vm1342, %v1131, %v1387
    %v1389 = vsel %vm1344, %v1132, %v1388
    %v1390 = vsel %vm1346, %v1133, %v1389
    %v1391 = vsel %vm1348, %v1134, %v1390
    %v1392 = vsel %vm1336, %v1136, %v1135
    %v1393 = vsel %vm1338, %v1137, %v1392
    %v1394 = vsel %vm1340, %v1138, %v1393
    %v1395 = vsel %vm1342, %v1139, %v1394
    %v1396 = vsel %vm1344, %v1140, %v1395
    %v1397 = vsel %vm1346, %v1141, %v1396
    %v1398 = vsel %vm1348, %v1142, %v1397
    %v1399 = vsel %vm1336, %v1144, %v1143
    %v1400 = vsel %vm1338, %v1145, %v1399
    %v1401 = vsel %vm1340, %v1146, %v1400
    %v1402 = vsel %vm1342, %v1147, %v1401
    %v1403 = vsel %vm1344, %v1148, %v1402
    %v1404 = vsel %vm1346, %v1149, %v1403
    %v1405 = vsel %vm1348, %v1150, %v1404
    %v1406 = vsel %vm1336, %v1152, %v1151
    %v1407 = vsel %vm1338, %v1153, %v1406
    %v1408 = vsel %vm1340, %v1154, %v1407
    %v1409 = vsel %vm1342, %v1155, %v1408
    %v1410 = vsel %vm1344, %v1156, %v1409
    %v1411 = vsel %vm1346, %v1157, %v1410
    %v1412 = vsel %vm1348, %v1158, %v1411
    %v1413 = vsel %vm1336, %v1160, %v1159
    %v1414 = vsel %vm1338, %v1161, %v1413
    %v1415 = vsel %vm1340, %v1162, %v1414
    %v1416 = vsel %vm1342, %v1163, %v1415
    %v1417 = vsel %vm1344, %v1164, %v1416
    %v1418 = vsel %vm1346, %v1165, %v1417
    %v1419 = vsel %vm1348, %v1166, %v1418
    %v1420 = vsel %vm1336, %v1168, %v1167
    %v1421 = vsel %vm1338, %v1169, %v1420
    %v1422 = vsel %vm1340, %v1170, %v1421
    %v1423 = vsel %vm1342, %v1171, %v1422
    %v1424 = vsel %vm1344, %v1172, %v1423
    %v1425 = vsel %vm1346, %v1173, %v1424
    %v1426 = vsel %vm1348, %v1174, %v1425
    %v1427 = vsel %vm1336, %v1176, %v1175
    %v1428 = vsel %vm1338, %v1177, %v1427
    %v1429 = vsel %vm1340, %v1178, %v1428
    %v1430 = vsel %vm1342, %v1179, %v1429
    %v1431 = vsel %vm1344, %v1180, %v1430
    %v1432 = vsel %vm1346, %v1181, %v1431
    %v1433 = vsel %vm1348, %v1182, %v1432
    %v1434 = vsel %vm1336, %v1184, %v1183
    %v1435 = vsel %vm1338, %v1185, %v1434
    %v1436 = vsel %vm1340, %v1186, %v1435
    %v1437 = vsel %vm1342, %v1187, %v1436
    %v1438 = vsel %vm1344, %v1188, %v1437
    %v1439 = vsel %vm1346, %v1189, %v1438
    %v1440 = vsel %vm1348, %v1190, %v1439
    %v1441 = vsel %vm1336, %v1192, %v1191
    %v1442 = vsel %vm1338, %v1193, %v1441
    %v1443 = vsel %vm1340, %v1194, %v1442
    %v1444 = vsel %vm1342, %v1195, %v1443
    %v1445 = vsel %vm1344, %v1196, %v1444
    %v1446 = vsel %vm1346, %v1197, %v1445
    %v1447 = vsel %vm1348, %v1198, %v1446
    %v1448 = vsel %vm1336, %v1200, %v1199
    %v1449 = vsel %vm1338, %v1201, %v1448
    %v1450 = vsel %vm1340, %v1202, %v1449
    %v1451 = vsel %vm1342, %v1203, %v1450
    %v1452 = vsel %vm1344, %v1204, %v1451
    %v1453 = vsel %vm1346, %v1205, %v1452
    %v1454 = vsel %vm1348, %v1206, %v1453
    %v1456 = vsel %vm181, %v1207, 0
    %v1458 = vsel %vm181, %v1349, 0
    %v1460 = vsel %vm181, %v1356, 0
    %v1462 = vsel %vm181, %v1363, 0
    %v1464 = vsel %vm181, %v1370, 0
    %v1466 = vsel %vm181, %v1377, 0
    %v1468 = vsel %vm181, %v1384, 0
    %v1470 = vsel %vm181, %v1391, 0
    %v1472 = vsel %vm181, %v1398, 0
    %v1474 = vsel %vm181, %v1405, 0
    %v1476 = vsel %vm181, %v1412, 0
    %v1478 = vsel %vm181, %v1419, 0
    %v1480 = vsel %vm181, %v1426, 0
    %v1482 = vsel %vm181, %v1433, 0
    %v1484 = vsel %vm181, %v1440, 0
    %v1486 = vsel %vm181, %v1447, 0
    %v1488 = vsel %vm181, %v1454, 0
    %1490 = vmatprep.subr.mxu0 0.0
    %1491 = vmatpush1.xpose.msra.mxu0 %v1458
    %1492 = vmatprep.subr.mxu0 0.0
    %1493 = vmatpush1.xpose.msra.mxu0 %v1460
    %1494 = vmatprep.subr.mxu0 0.0
    %1495 = vmatpush1.xpose.msra.mxu0 %v1462
    %1496 = vmatprep.subr.mxu0 0.0
    %1497 = vmatpush1.xpose.msra.mxu0 %v1464
    %1498 = vmatprep.subr.mxu0 0.0
    %1499 = vmatpush1.xpose.msra.mxu0 %v1466
    %1500 = vmatprep.subr.mxu0 0.0
    %1501 = vmatpush1.xpose.msra.mxu0 %v1468
    %1502 = vmatprep.subr.mxu0 0.0
    %1503 = vmatpush1.xpose.msra.mxu0 %v1470
    %1504 = vmatprep.subr.mxu0 0.0
    %1505 = vmatpush1.xpose.msra.mxu0 %v1472
    %1506 = vmatprep.subr.mxu0 0.0
    %1507 = vmatpush1.xpose.msra.mxu0 %v1474
    %1508 = vmatprep.subr.mxu0 0.0
    %1509 = vmatpush1.xpose.msra.mxu0 %v1476
    %1510 = vmatprep.subr.mxu0 0.0
    %1511 = vmatpush1.xpose.msra.mxu0 %v1478
    %1512 = vmatprep.subr.mxu0 0.0
    %1513 = vmatpush1.xpose.msra.mxu0 %v1480
    %1514 = vmatprep.subr.mxu0 0.0
    %1515 = vmatpush1.xpose.msra.mxu0 %v1482
    %1516 = vmatprep.subr.mxu0 0.0
    %1517 = vmatpush1.xpose.msra.mxu0 %v1484
    %1518 = vmatprep.subr.mxu0 0.0
    %1519 = vmatpush1.xpose.msra.mxu0 %v1486
    %1520 = vmatprep.subr.mxu0 0.0
    %1521 = vmatpush1.xpose.msra.mxu0 %v1488
    %1522 = vmatprep.subr.mxu0 0.0
    %1523 = vmatpush1.xpose.msra.mxu0 0.0
    %1524 = vmatprep.subr.mxu0 0.0
    %1525 = vmatpush1.xpose.msra.mxu0 0.0
    %1526 = vmatprep.subr.mxu0 0.0
    %1527 = vmatpush1.xpose.msra.mxu0 0.0
    %1528 = vmatprep.subr.mxu0 0.0
    %1529 = vmatpush1.xpose.msra.mxu0 0.0
    %1530 = vmatprep.subr.mxu0 0.0
    %1531 = vmatpush1.xpose.msra.mxu0 0.0
    %1532 = vmatprep.subr.mxu0 0.0
    %1533 = vmatpush1.xpose.msra.mxu0 0.0
    %1534 = vmatprep.subr.mxu0 0.0
    %1535 = vmatpush1.xpose.msra.mxu0 0.0
    %1536 = vmatprep.subr.mxu0 0.0
    %1537 = vmatpush1.xpose.msra.mxu0 0.0
    %1538 = vmatprep.subr.mxu0 0.0
    %1539 = vmatpush1.xpose.msra.mxu0 0.0
    %1540 = vmatprep.subr.mxu0 0.0
    %1541 = vmatpush1.xpose.msra.mxu0 0.0
    %1542 = vmatprep.subr.mxu0 0.0
    %1543 = vmatpush1.xpose.msra.mxu0 0.0
    %1544 = vmatprep.subr.mxu0 0.0
    %1545 = vmatpush1.xpose.msra.mxu0 0.0
    %1546 = vmatprep.subr.mxu0 0.0
    %1547 = vmatpush1.xpose.msra.mxu0 0.0
    %1548 = vmatprep.subr.mxu0 0.0
    %1549 = vmatpush1.xpose.msra.mxu0 0.0
    %1550 = vmatprep.subr.mxu0 0.0
    %1551 = vmatpush1.xpose.msra.mxu0 0.0
    %1552 = vmatprep.subr.mxu0 0.0
    %1553 = vmatpush1.xpose.msra.mxu0 0.0
    %1554 = vmatprep.mubr.f32.mxu0 0.0
    %1555 = vmatmul.mubr.f32.gmra.mrb[0].mxu0 %v1456
    %v1556 = vpop.f32.mrb[0].mxu0
    %v1557 = vadd.f32 0.0, %v1556
    %v1558 = vpop.f32.mrb[0].mxu0
    %1559 = vdwg.mxu0
    %v1560 = vld [vmem:[%s7] sm:$0xff]
    %v1561 = vld [vmem:[%s7 + $0x8] sm:$0xff]
    %v1563 = vsel %vm181, %v1560, 0
    %v1566 = vsel %vm181, %v1561, 0
    %1568 = vmatprep.subr.mxu0 0.0
    %1569 = vmatpush1.xpose.msra.mxu0 %v1458
    %1570 = vmatprep.subr.mxu0 0.0
    %1571 = vmatpush1.xpose.msra.mxu0 %v1460
    %1572 = vmatprep.subr.mxu0 0.0
    %1573 = vmatpush1.xpose.msra.mxu0 %v1462
    %1574 = vmatprep.subr.mxu0 0.0
    %1575 = vmatpush1.xpose.msra.mxu0 %v1464
    %1576 = vmatprep.subr.mxu0 0.0
    %1577 = vmatpush1.xpose.msra.mxu0 %v1466
    %1578 = vmatprep.subr.mxu0 0.0
    %1579 = vmatpush1.xpose.msra.mxu0 %v1468
    %1580 = vmatprep.subr.mxu0 0.0
    %1581 = vmatpush1.xpose.msra.mxu0 %v1470
    %1582 = vmatprep.subr.mxu0 0.0
    %1583 = vmatpush1.xpose.msra.mxu0 %v1472
    %1584 = vmatprep.subr.mxu0 0.0
    %1585 = vmatpush1.xpose.msra.mxu0 %v1474
    %1586 = vmatprep.subr.mxu0 0.0
    %1587 = vmatpush1.xpose.msra.mxu0 %v1476
    %1588 = vmatprep.subr.mxu0 0.0
    %1589 = vmatpush1.xpose.msra.mxu0 %v1478
    %1590 = vmatprep.subr.mxu0 0.0
    %1591 = vmatpush1.xpose.msra.mxu0 %v1480
    %1592 = vmatprep.subr.mxu0 0.0
    %1593 = vmatpush1.xpose.msra.mxu0 %v1482
    %1594 = vmatprep.subr.mxu0 0.0
    %1595 = vmatpush1.xpose.msra.mxu0 %v1484
    %1596 = vmatprep.subr.mxu0 0.0
    %1597 = vmatpush1.xpose.msra.mxu0 %v1486
    %1598 = vmatprep.subr.mxu0 0.0
    %1599 = vmatpush1.xpose.msra.mxu0 %v1488
    %1600 = vmatprep.subr.mxu0 0.0
    %1601 = vmatpush1.xpose.msra.mxu0 0.0
    %1602 = vmatprep.subr.mxu0 0.0
    %1603 = vmatpush1.xpose.msra.mxu0 0.0
    %1604 = vmatprep.subr.mxu0 0.0
    %1605 = vmatpush1.xpose.msra.mxu0 0.0
    %1606 = vmatprep.subr.mxu0 0.0
    %1607 = vmatpush1.xpose.msra.mxu0 0.0
    %1608 = vmatprep.subr.mxu0 0.0
    %1609 = vmatpush1.xpose.msra.mxu0 0.0
    %1610 = vmatprep.subr.mxu0 0.0
    %1611 = vmatpush1.xpose.msra.mxu0 0.0
    %1612 = vmatprep.subr.mxu0 0.0
    %1613 = vmatpush1.xpose.msra.mxu0 0.0
    %1614 = vmatprep.subr.mxu0 0.0
    %1615 = vmatpush1.xpose.msra.mxu0 0.0
    %1616 = vmatprep.subr.mxu0 0.0
    %1617 = vmatpush1.xpose.msra.mxu0 0.0
    %1618 = vmatprep.subr.mxu0 0.0
    %1619 = vmatpush1.xpose.msra.mxu0 0.0
    %1620 = vmatprep.subr.mxu0 0.0
    %1621 = vmatpush1.xpose.msra.mxu0 0.0
    %1622 = vmatprep.subr.mxu0 0.0
    %1623 = vmatpush1.xpose.msra.mxu0 0.0
    %1624 = vmatprep.subr.mxu0 0.0
    %1625 = vmatpush1.xpose.msra.mxu0 0.0
    %1626 = vmatprep.subr.mxu0 0.0
    %1627 = vmatpush1.xpose.msra.mxu0 0.0
    %1628 = vmatprep.subr.mxu0 0.0
    %1629 = vmatpush1.xpose.msra.mxu0 0.0
    %1630 = vmatprep.subr.mxu0 0.0
    %1631 = vmatpush1.xpose.msra.mxu0 0.0
    %1632 = vmatprep.mubr.f32.mxu0 0.0
    %1633 = vmatmul.mubr.f32.gmra.mrb[0].mxu0 %v1563
    %v1634 = vpop.f32.mrb[0].mxu0
    %v1635 = vadd.f32 0.0, %v1634
    %v1636 = vpop.f32.mrb[0].mxu0
    %1637 = vmatprep.mubr.f32.mxu0 0.0
    %1638 = vmatmul.mubr.f32.gmra.mrb[0].mxu0 %v1566
    %v1639 = vpop.f32.mrb[0].mxu0
    %v1640 = vadd.f32 0.0, %v1639
    %v1641 = vpop.f32.mrb[0].mxu0
    %1642 = vdwg.mxu0
    %v1643 = vld [vmem:[%s0] sm:$0xff]
    %v1644 = vld [vmem:[%s3] sm:$0xf]
    %1646 = vrot.lane.b32.xlu0 %v1644, 1
    %v1647 = vpop.permute.xlu0 %1646
    %v1649 = vsub.f32 %v1644, %v1647
    %v1651 = vlaneseq
    %v1652 = vshrl.u32 %v1651, 7
    %v1653 = vsub.s32 0, %v1652
    %v1654 = vrot.slane %v1643, %v1653
    %v1655 = vlaneseq
    %v1656 = vshrl.u32 %v1655, 7
    %v1657 = vsub.s32 1, %v1656
    %v1658 = vrot.slane %v1643, %v1657
    %v1659 = vlaneseq
    %v1660 = vshrl.u32 %v1659, 7
    %v1661 = vsub.s32 2, %v1660
    %v1662 = vrot.slane %v1643, %v1661
    %v1663 = vlaneseq
    %v1664 = vshrl.u32 %v1663, 7
    %v1665 = vsub.s32 3, %v1664
    %v1666 = vrot.slane %v1643, %v1665
    %v1667 = vlaneseq
    %v1668 = vshrl.u32 %v1667, 7
    %v1669 = vsub.s32 4, %v1668
    %v1670 = vrot.slane %v1643, %v1669
    %v1671 = vlaneseq
    %v1672 = vshrl.u32 %v1671, 7
    %v1673 = vsub.s32 5, %v1672
    %v1674 = vrot.slane %v1643, %v1673
    %v1675 = vlaneseq
    %v1676 = vshrl.u32 %v1675, 7
    %v1677 = vsub.s32 6, %v1676
    %v1678 = vrot.slane %v1643, %v1677
    %v1679 = vlaneseq
    %v1680 = vshrl.u32 %v1679, 7
    %v1681 = vsub.s32 7, %v1680
    %v1682 = vrot.slane %v1643, %v1681
    %1692 = vset.pattern.permute.xlu0 1
    %1693 = vperm.xlu0 %1692, %v1649
    %v1694 = vpop.permute.xlu0 %1693
    %v1696 = vmul.f32 %v1654, %v1694
    %v1697 = vmul.f32 %v1658, %v1694
    %v1698 = vmul.f32 %v1662, %v1694
    %v1699 = vmul.f32 %v1666, %v1694
    %v1700 = vmul.f32 %v1670, %v1694
    %v1701 = vmul.f32 %v1674, %v1694
    %v1702 = vmul.f32 %v1678, %v1694
    %v1703 = vmul.f32 %v1682, %v1694
    %1704 = vset.pattern.permute.xlu0 0
    %1705 = vperm.xlu0 %1704, %v1644
    %v1706 = vpop.permute.xlu0 %1705
    %v1708 = vadd.f32 %v1706, %v1696
    %v1709 = vadd.f32 %v1706, %v1697
    %v1710 = vadd.f32 %v1706, %v1698
    %v1711 = vadd.f32 %v1706, %v1699
    %v1712 = vadd.f32 %v1706, %v1700
    %v1713 = vadd.f32 %v1706, %v1701
    %v1714 = vadd.f32 %v1706, %v1702
    %v1715 = vadd.f32 %v1706, %v1703
    %v1716 = vld [vmem:[%s2] sm:$0xff]
    %v1717 = vld [vmem:[%s2 + $0x8] sm:$0xff]
    %v1718 = vld [vmem:[%s2 + $0x10] sm:$0xff]
    %v1719 = vld [vmem:[%s2 + $0x18] sm:$0xff]
    %v1724 = vcombine.high %v1716, %v1716
    %v1725 = vcombine.high %v1717, %v1717
    %v1726 = vcombine.high %v1718, %v1718
    %v1727 = vcombine.high %v1719, %v1719
    %v1740 = vrot.slane %v1708, 4
    %v1741 = vrot.slane %v1709, 4
    %v1742 = vrot.slane %v1710, 4
    %v1743 = vrot.slane %v1711, 4
    %v1744 = vrot.slane %v1712, 4
    %v1745 = vrot.slane %v1713, 4
    %v1746 = vrot.slane %v1714, 4
    %v1747 = vrot.slane %v1715, 4
    %vm1756 = vcmask 1043456
    %v1757 = vsel %vm1756, %v1716, %v1740
    %v1758 = vsel %vm1756, %v1724, %v1741
    %v1759 = vsel %vm1756, %v1717, %v1742
    %v1760 = vsel %vm1756, %v1725, %v1743
    %v1761 = vsel %vm1756, %v1718, %v1744
    %v1762 = vsel %vm1756, %v1726, %v1745
    %v1763 = vsel %vm1756, %v1719, %v1746
    %v1764 = vsel %vm1756, %v1727, %v1747
    %v1765 = vld [vmem:[%s5] sm:$0xff]
    %vm1766 = vcmask 64512
    %v1768 = vsel %vm1766, %v1765, 0
    %1770 = vmatprep.subr.mxu0 %v1758
    %1771 = vmatpush1.msra.mxu0 %v1757
    %1772 = vmatprep.subr.mxu0 0.0
    %1773 = vmatpush1.msra.mxu0 0.0
    %1774 = vmatprep.subr.mxu0 0.0
    %1775 = vmatpush1.msra.mxu0 0.0
    %1776 = vmatprep.subr.mxu0 0.0
    %1777 = vmatpush1.msra.mxu0 0.0
    %1778 = vmatprep.subr.mxu0 0.0
    %1779 = vmatpush1.msra.mxu0 0.0
    %1780 = vmatprep.subr.mxu0 0.0
    %1781 = vmatpush1.msra.mxu0 0.0
    %1782 = vmatprep.subr.mxu0 0.0
    %1783 = vmatpush1.msra.mxu0 0.0
    %1784 = vmatprep.subr.mxu0 0.0
    %1785 = vmatpush1.msra.mxu0 0.0
    %1786 = vmatprep.subr.mxu0 0.0
    %1787 = vmatpush1.msra.mxu0 0.0
    %1788 = vmatprep.subr.mxu0 0.0
    %1789 = vmatpush1.msra.mxu0 0.0
    %1790 = vmatprep.subr.mxu0 0.0
    %1791 = vmatpush1.msra.mxu0 0.0
    %1792 = vmatprep.subr.mxu0 0.0
    %1793 = vmatpush1.msra.mxu0 0.0
    %1794 = vmatprep.subr.mxu0 0.0
    %1795 = vmatpush1.msra.mxu0 0.0
    %1796 = vmatprep.subr.mxu0 0.0
    %1797 = vmatpush1.msra.mxu0 0.0
    %1798 = vmatprep.subr.mxu0 0.0
    %1799 = vmatpush1.msra.mxu0 0.0
    %1800 = vmatprep.subr.mxu0 0.0
    %1801 = vmatpush1.msra.mxu0 0.0
    %1802 = vmatprep.subr.mxu0 0.0
    %1803 = vmatpush1.msra.mxu0 0.0
    %1804 = vmatprep.subr.mxu0 0.0
    %1805 = vmatpush1.msra.mxu0 0.0
    %1806 = vmatprep.subr.mxu0 0.0
    %1807 = vmatpush1.msra.mxu0 0.0
    %1808 = vmatprep.subr.mxu0 0.0
    %1809 = vmatpush1.msra.mxu0 0.0
    %1810 = vmatprep.subr.mxu0 0.0
    %1811 = vmatpush1.msra.mxu0 0.0
    %1812 = vmatprep.subr.mxu0 0.0
    %1813 = vmatpush1.msra.mxu0 0.0
    %1814 = vmatprep.subr.mxu0 0.0
    %1815 = vmatpush1.msra.mxu0 0.0
    %1816 = vmatprep.subr.mxu0 0.0
    %1817 = vmatpush1.msra.mxu0 0.0
    %1818 = vmatprep.subr.mxu0 0.0
    %1819 = vmatpush1.msra.mxu0 0.0
    %1820 = vmatprep.subr.mxu0 0.0
    %1821 = vmatpush1.msra.mxu0 0.0
    %1822 = vmatprep.subr.mxu0 0.0
    %1823 = vmatpush1.msra.mxu0 0.0
    %1824 = vmatprep.subr.mxu0 0.0
    %1825 = vmatpush1.msra.mxu0 0.0
    %1826 = vmatprep.subr.mxu0 0.0
    %1827 = vmatpush1.msra.mxu0 0.0
    %1828 = vmatprep.subr.mxu0 0.0
    %1829 = vmatpush1.msra.mxu0 0.0
    %1830 = vmatprep.subr.mxu0 0.0
    %1831 = vmatpush1.msra.mxu0 0.0
    %1832 = vmatprep.subr.mxu0 0.0
    %1833 = vmatpush1.msra.mxu0 0.0
    %1834 = vmatprep.mubr.f32.mxu0 0.0
    %1835 = vmatmul.mubr.f32.gmra.mrb[0].mxu0 %v1768
    %v1836 = vpop.f32.mrb[0].mxu0
    %v1837 = vadd.f32 %v1557, %v1836
    %v1838 = vpop.f32.mrb[0].mxu0
    %v1839 = vadd.f32 %v1557, %v1838
    %1840 = vdwg.mxu0
    %1841 = vmatprep.subr.mxu0 %v1760
    %1842 = vmatpush1.msra.mxu0 %v1759
    %1843 = vmatprep.subr.mxu0 0.0
    %1844 = vmatpush1.msra.mxu0 0.0
    %1845 = vmatprep.subr.mxu0 0.0
    %1846 = vmatpush1.msra.mxu0 0.0
    %1847 = vmatprep.subr.mxu0 0.0
    %1848 = vmatpush1.msra.mxu0 0.0
    %1849 = vmatprep.subr.mxu0 0.0
    %1850 = vmatpush1.msra.mxu0 0.0
    %1851 = vmatprep.subr.mxu0 0.0
    %1852 = vmatpush1.msra.mxu0 0.0
    %1853 = vmatprep.subr.mxu0 0.0
    %1854 = vmatpush1.msra.mxu0 0.0
    %1855 = vmatprep.subr.mxu0 0.0
    %1856 = vmatpush1.msra.mxu0 0.0
    %1857 = vmatprep.subr.mxu0 0.0
    %1858 = vmatpush1.msra.mxu0 0.0
    %1859 = vmatprep.subr.mxu0 0.0
    %1860 = vmatpush1.msra.mxu0 0.0
    %1861 = vmatprep.subr.mxu0 0.0
    %1862 = vmatpush1.msra.mxu0 0.0
    %1863 = vmatprep.subr.mxu0 0.0
    %1864 = vmatpush1.msra.mxu0 0.0
    %1865 = vmatprep.subr.mxu0 0.0
    %1866 = vmatpush1.msra.mxu0 0.0
    %1867 = vmatprep.subr.mxu0 0.0
    %1868 = vmatpush1.msra.mxu0 0.0
    %1869 = vmatprep.subr.mxu0 0.0
    %1870 = vmatpush1.msra.mxu0 0.0
    %1871 = vmatprep.subr.mxu0 0.0
    %1872 = vmatpush1.msra.mxu0 0.0
    %1873 = vmatprep.subr.mxu0 0.0
    %1874 = vmatpush1.msra.mxu0 0.0
    %1875 = vmatprep.subr.mxu0 0.0
    %1876 = vmatpush1.msra.mxu0 0.0
    %1877 = vmatprep.subr.mxu0 0.0
    %1878 = vmatpush1.msra.mxu0 0.0
    %1879 = vmatprep.subr.mxu0 0.0
    %1880 = vmatpush1.msra.mxu0 0.0
    %1881 = vmatprep.subr.mxu0 0.0
    %1882 = vmatpush1.msra.mxu0 0.0
    %1883 = vmatprep.subr.mxu0 0.0
    %1884 = vmatpush1.msra.mxu0 0.0
    %1885 = vmatprep.subr.mxu0 0.0
    %1886 = vmatpush1.msra.mxu0 0.0
    %1887 = vmatprep.subr.mxu0 0.0
    %1888 = vmatpush1.msra.mxu0 0.0
    %1889 = vmatprep.subr.mxu0 0.0
    %1890 = vmatpush1.msra.mxu0 0.0
    %1891 = vmatprep.subr.mxu0 0.0
    %1892 = vmatpush1.msra.mxu0 0.0
    %1893 = vmatprep.subr.mxu0 0.0
    %1894 = vmatpush1.msra.mxu0 0.0
    %1895 = vmatprep.subr.mxu0 0.0
    %1896 = vmatpush1.msra.mxu0 0.0
    %1897 = vmatprep.subr.mxu0 0.0
    %1898 = vmatpush1.msra.mxu0 0.0
    %1899 = vmatprep.subr.mxu0 0.0
    %1900 = vmatpush1.msra.mxu0 0.0
    %1901 = vmatprep.subr.mxu0 0.0
    %1902 = vmatpush1.msra.mxu0 0.0
    %1903 = vmatprep.subr.mxu0 0.0
    %1904 = vmatpush1.msra.mxu0 0.0
    %1905 = vmatprep.mubr.f32.mxu0 0.0
    %1906 = vmatmul.mubr.f32.gmra.mrb[0].mxu0 %v1768
    %v1907 = vpop.f32.mrb[0].mxu0
    %v1908 = vadd.f32 %v1557, %v1907
    %v1909 = vpop.f32.mrb[0].mxu0
    %v1910 = vadd.f32 %v1557, %v1909
    %1911 = vdwg.mxu0
    %1912 = vmatprep.subr.mxu0 %v1762
    %1913 = vmatpush1.msra.mxu0 %v1761
    %1914 = vmatprep.subr.mxu0 0.0
    %1915 = vmatpush1.msra.mxu0 0.0
    %1916 = vmatprep.subr.mxu0 0.0
    %1917 = vmatpush1.msra.mxu0 0.0
    %1918 = vmatprep.subr.mxu0 0.0
    %1919 = vmatpush1.msra.mxu0 0.0
    %1920 = vmatprep.subr.mxu0 0.0
    %1921 = vmatpush1.msra.mxu0 0.0
    %1922 = vmatprep.subr.mxu0 0.0
    %1923 = vmatpush1.msra.mxu0 0.0
    %1924 = vmatprep.subr.mxu0 0.0
    %1925 = vmatpush1.msra.mxu0 0.0
    %1926 = vmatprep.subr.mxu0 0.0
    %1927 = vmatpush1.msra.mxu0 0.0
    %1928 = vmatprep.subr.mxu0 0.0
    %1929 = vmatpush1.msra.mxu0 0.0
    %1930 = vmatprep.subr.mxu0 0.0
    %1931 = vmatpush1.msra.mxu0 0.0
    %1932 = vmatprep.subr.mxu0 0.0
    %1933 = vmatpush1.msra.mxu0 0.0
    %1934 = vmatprep.subr.mxu0 0.0
    %1935 = vmatpush1.msra.mxu0 0.0
    %1936 = vmatprep.subr.mxu0 0.0
    %1937 = vmatpush1.msra.mxu0 0.0
    %1938 = vmatprep.subr.mxu0 0.0
    %1939 = vmatpush1.msra.mxu0 0.0
    %1940 = vmatprep.subr.mxu0 0.0
    %1941 = vmatpush1.msra.mxu0 0.0
    %1942 = vmatprep.subr.mxu0 0.0
    %1943 = vmatpush1.msra.mxu0 0.0
    %1944 = vmatprep.subr.mxu0 0.0
    %1945 = vmatpush1.msra.mxu0 0.0
    %1946 = vmatprep.subr.mxu0 0.0
    %1947 = vmatpush1.msra.mxu0 0.0
    %1948 = vmatprep.subr.mxu0 0.0
    %1949 = vmatpush1.msra.mxu0 0.0
    %1950 = vmatprep.subr.mxu0 0.0
    %1951 = vmatpush1.msra.mxu0 0.0
    %1952 = vmatprep.subr.mxu0 0.0
    %1953 = vmatpush1.msra.mxu0 0.0
    %1954 = vmatprep.subr.mxu0 0.0
    %1955 = vmatpush1.msra.mxu0 0.0
    %1956 = vmatprep.subr.mxu0 0.0
    %1957 = vmatpush1.msra.mxu0 0.0
    %1958 = vmatprep.subr.mxu0 0.0
    %1959 = vmatpush1.msra.mxu0 0.0
    %1960 = vmatprep.subr.mxu0 0.0
    %1961 = vmatpush1.msra.mxu0 0.0
    %1962 = vmatprep.subr.mxu0 0.0
    %1963 = vmatpush1.msra.mxu0 0.0
    %1964 = vmatprep.subr.mxu0 0.0
    %1965 = vmatpush1.msra.mxu0 0.0
    %1966 = vmatprep.subr.mxu0 0.0
    %1967 = vmatpush1.msra.mxu0 0.0
    %1968 = vmatprep.subr.mxu0 0.0
    %1969 = vmatpush1.msra.mxu0 0.0
    %1970 = vmatprep.subr.mxu0 0.0
    %1971 = vmatpush1.msra.mxu0 0.0
    %1972 = vmatprep.subr.mxu0 0.0
    %1973 = vmatpush1.msra.mxu0 0.0
    %1974 = vmatprep.subr.mxu0 0.0
    %1975 = vmatpush1.msra.mxu0 0.0
    %1976 = vmatprep.mubr.f32.mxu0 0.0
    %1977 = vmatmul.mubr.f32.gmra.mrb[0].mxu0 %v1768
    %v1978 = vpop.f32.mrb[0].mxu0
    %v1979 = vadd.f32 %v1557, %v1978
    %v1980 = vpop.f32.mrb[0].mxu0
    %v1981 = vadd.f32 %v1557, %v1980
    %1982 = vdwg.mxu0
    %1983 = vmatprep.subr.mxu0 %v1764
    %1984 = vmatpush1.msra.mxu0 %v1763
    %1985 = vmatprep.subr.mxu0 0.0
    %1986 = vmatpush1.msra.mxu0 0.0
    %1987 = vmatprep.subr.mxu0 0.0
    %1988 = vmatpush1.msra.mxu0 0.0
    %1989 = vmatprep.subr.mxu0 0.0
    %1990 = vmatpush1.msra.mxu0 0.0
    %1991 = vmatprep.subr.mxu0 0.0
    %1992 = vmatpush1.msra.mxu0 0.0
    %1993 = vmatprep.subr.mxu0 0.0
    %1994 = vmatpush1.msra.mxu0 0.0
    %1995 = vmatprep.subr.mxu0 0.0
    %1996 = vmatpush1.msra.mxu0 0.0
    %1997 = vmatprep.subr.mxu0 0.0
    %1998 = vmatpush1.msra.mxu0 0.0
    %1999 = vmatprep.subr.mxu0 0.0
    %2000 = vmatpush1.msra.mxu0 0.0
    %2001 = vmatprep.subr.mxu0 0.0
    %2002 = vmatpush1.msra.mxu0 0.0
    %2003 = vmatprep.subr.mxu0 0.0
    %2004 = vmatpush1.msra.mxu0 0.0
    %2005 = vmatprep.subr.mxu0 0.0
    %2006 = vmatpush1.msra.mxu0 0.0
    %2007 = vmatprep.subr.mxu0 0.0
    %2008 = vmatpush1.msra.mxu0 0.0
    %2009 = vmatprep.subr.mxu0 0.0
    %2010 = vmatpush1.msra.mxu0 0.0
    %2011 = vmatprep.subr.mxu0 0.0
    %2012 = vmatpush1.msra.mxu0 0.0
    %2013 = vmatprep.subr.mxu0 0.0
    %2014 = vmatpush1.msra.mxu0 0.0
    %2015 = vmatprep.subr.mxu0 0.0
    %2016 = vmatpush1.msra.mxu0 0.0
    %2017 = vmatprep.subr.mxu0 0.0
    %2018 = vmatpush1.msra.mxu0 0.0
    %2019 = vmatprep.subr.mxu0 0.0
    %2020 = vmatpush1.msra.mxu0 0.0
    %2021 = vmatprep.subr.mxu0 0.0
    %2022 = vmatpush1.msra.mxu0 0.0
    %2023 = vmatprep.subr.mxu0 0.0
    %2024 = vmatpush1.msra.mxu0 0.0
    %2025 = vmatprep.subr.mxu0 0.0
    %2026 = vmatpush1.msra.mxu0 0.0
    %2027 = vmatprep.subr.mxu0 0.0
    %2028 = vmatpush1.msra.mxu0 0.0
    %2029 = vmatprep.subr.mxu0 0.0
    %2030 = vmatpush1.msra.mxu0 0.0
    %2031 = vmatprep.subr.mxu0 0.0
    %2032 = vmatpush1.msra.mxu0 0.0
    %2033 = vmatprep.subr.mxu0 0.0
    %2034 = vmatpush1.msra.mxu0 0.0
    %2035 = vmatprep.subr.mxu0 0.0
    %2036 = vmatpush1.msra.mxu0 0.0
    %2037 = vmatprep.subr.mxu0 0.0
    %2038 = vmatpush1.msra.mxu0 0.0
    %2039 = vmatprep.subr.mxu0 0.0
    %2040 = vmatpush1.msra.mxu0 0.0
    %2041 = vmatprep.subr.mxu0 0.0
    %2042 = vmatpush1.msra.mxu0 0.0
    %2043 = vmatprep.subr.mxu0 0.0
    %2044 = vmatpush1.msra.mxu0 0.0
    %2045 = vmatprep.subr.mxu0 0.0
    %2046 = vmatpush1.msra.mxu0 0.0
    %2047 = vmatprep.mubr.f32.mxu0 0.0
    %2048 = vmatmul.mubr.f32.gmra.mrb[0].mxu0 %v1768
    %v2049 = vpop.f32.mrb[0].mxu0
    %v2050 = vadd.f32 %v1557, %v2049
    %v2051 = vpop.f32.mrb[0].mxu0
    %v2052 = vadd.f32 %v1557, %v2051
    %2053 = vdwg.mxu0
    %v2054 = vld [vmem:[%s6] sm:$0xff]
    %2056 = vset.pattern.permute.xlu0 0
    %2057 = vperm.xlu0 %2056, %v2054
    %v2058 = vpop.permute.xlu0 %2057
    %v2060 = vadd.f32 %v1837, %v2058
    %v2061 = vadd.f32 %v1839, %v2058
    %v2062 = vadd.f32 %v1908, %v2058
    %v2063 = vadd.f32 %v1910, %v2058
    %v2064 = vadd.f32 %v1979, %v2058
    %v2065 = vadd.f32 %v1981, %v2058
    %v2066 = vadd.f32 %v2050, %v2058
    %v2067 = vadd.f32 %v2052, %v2058
    %v2068 = vtanh.pop %v2060
    %v2069 = vtanh.pop %v2061
    %v2070 = vtanh.pop %v2062
    %v2071 = vtanh.pop %v2063
    %v2072 = vtanh.pop %v2064
    %v2073 = vtanh.pop %v2065
    %v2074 = vtanh.pop %v2066
    %v2075 = vtanh.pop %v2067
    %v2076 = vrot.slane %v2068, 4
    %v2077 = vmax.f32 %v2068, %v2076
    %v2078 = vrot.slane %v2077, 2
    %v2079 = vmax.f32 %v2077, %v2078
    %v2080 = vrot.slane %v2079, 1
    %v2081 = vmax.f32 %v2079, %v2080
    %v2082 = vrot.slane %v2069, 4
    %v2083 = vmax.f32 %v2069, %v2082
    %v2084 = vrot.slane %v2083, 2
    %v2085 = vmax.f32 %v2083, %v2084
    %v2086 = vrot.slane %v2085, 1
    %v2087 = vmax.f32 %v2085, %v2086
    %v2088 = vrot.slane %v2070, 4
    %v2089 = vmax.f32 %v2070, %v2088
    %v2090 = vrot.slane %v2089, 2
    %v2091 = vmax.f32 %v2089, %v2090
    %v2092 = vrot.slane %v2091, 1
    %v2093 = vmax.f32 %v2091, %v2092
    %v2094 = vrot.slane %v2071, 4
    %v2095 = vmax.f32 %v2071, %v2094
    %v2096 = vrot.slane %v2095, 2
    %v2097 = vmax.f32 %v2095, %v2096
    %v2098 = vrot.slane %v2097, 1
    %v2099 = vmax.f32 %v2097, %v2098
    %v2100 = vrot.slane %v2072, 4
    %v2101 = vmax.f32 %v2072, %v2100
    %v2102 = vrot.slane %v2101, 2
    %v2103 = vmax.f32 %v2101, %v2102
    %v2104 = vrot.slane %v2103, 1
    %v2105 = vmax.f32 %v2103, %v2104
    %v2106 = vrot.slane %v2073, 4
    %v2107 = vmax.f32 %v2073, %v2106
    %v2108 = vrot.slane %v2107, 2
    %v2109 = vmax.f32 %v2107, %v2108
    %v2110 = vrot.slane %v2109, 1
    %v2111 = vmax.f32 %v2109, %v2110
    %v2112 = vrot.slane %v2074, 4
    %v2113 = vmax.f32 %v2074, %v2112
    %v2114 = vrot.slane %v2113, 2
    %v2115 = vmax.f32 %v2113, %v2114
    %v2116 = vrot.slane %v2115, 1
    %v2117 = vmax.f32 %v2115, %v2116
    %v2118 = vrot.slane %v2075, 4
    %v2119 = vmax.f32 %v2075, %v2118
    %v2120 = vrot.slane %v2119, 2
    %v2121 = vmax.f32 %v2119, %v2120
    %v2122 = vrot.slane %v2121, 1
    %v2123 = vmax.f32 %v2121, %v2122
    %v2124 = vsub.f32 %v2068, %v2081
    %v2125 = vsub.f32 %v2069, %v2087
    %v2126 = vsub.f32 %v2070, %v2093
    %v2127 = vsub.f32 %v2071, %v2099
    %v2128 = vsub.f32 %v2072, %v2105
    %v2129 = vsub.f32 %v2073, %v2111
    %v2130 = vsub.f32 %v2074, %v2117
    %v2131 = vsub.f32 %v2075, %v2123
    %v2132 = vmul.f32 %v2124, 1.442695
    %v2133 = vpow.pop %v2132
    %v2134 = vmul.f32 %v2125, 1.442695
    %v2135 = vpow.pop %v2134
    %v2136 = vmul.f32 %v2126, 1.442695
    %v2137 = vpow.pop %v2136
    %v2138 = vmul.f32 %v2127, 1.442695
    %v2139 = vpow.pop %v2138
    %v2140 = vmul.f32 %v2128, 1.442695
    %v2141 = vpow.pop %v2140
    %v2142 = vmul.f32 %v2129, 1.442695
    %v2143 = vpow.pop %v2142
    %v2144 = vmul.f32 %v2130, 1.442695
    %v2145 = vpow.pop %v2144
    %v2146 = vmul.f32 %v2131, 1.442695
    %v2147 = vpow.pop %v2146
    %v2148 = vrot.slane %v2133, 4
    %v2149 = vadd.f32 %v2133, %v2148
    %v2150 = vrot.slane %v2149, 2
    %v2151 = vadd.f32 %v2149, %v2150
    %v2152 = vrot.slane %v2151, 1
    %v2153 = vadd.f32 %v2151, %v2152
    %v2154 = vrot.slane %v2135, 4
    %v2155 = vadd.f32 %v2135, %v2154
    %v2156 = vrot.slane %v2155, 2
    %v2157 = vadd.f32 %v2155, %v2156
    %v2158 = vrot.slane %v2157, 1
    %v2159 = vadd.f32 %v2157, %v2158
    %v2160 = vrot.slane %v2137, 4
    %v2161 = vadd.f32 %v2137, %v2160
    %v2162 = vrot.slane %v2161, 2
    %v2163 = vadd.f32 %v2161, %v2162
    %v2164 = vrot.slane %v2163, 1
    %v2165 = vadd.f32 %v2163, %v2164
    %v2166 = vrot.slane %v2139, 4
    %v2167 = vadd.f32 %v2139, %v2166
    %v2168 = vrot.slane %v2167, 2
    %v2169 = vadd.f32 %v2167, %v2168
    %v2170 = vrot.slane %v2169, 1
    %v2171 = vadd.f32 %v2169, %v2170
    %v2172 = vrot.slane %v2141, 4
    %v2173 = vadd.f32 %v2141, %v2172
    %v2174 = vrot.slane %v2173, 2
    %v2175 = vadd.f32 %v2173, %v2174
    %v2176 = vrot.slane %v2175, 1
    %v2177 = vadd.f32 %v2175, %v2176
    %v2178 = vrot.slane %v2143, 4
    %v2179 = vadd.f32 %v2143, %v2178
    %v2180 = vrot.slane %v2179, 2
    %v2181 = vadd.f32 %v2179, %v2180
    %v2182 = vrot.slane %v2181, 1
    %v2183 = vadd.f32 %v2181, %v2182
    %v2184 = vrot.slane %v2145, 4
    %v2185 = vadd.f32 %v2145, %v2184
    %v2186 = vrot.slane %v2185, 2
    %v2187 = vadd.f32 %v2185, %v2186
    %v2188 = vrot.slane %v2187, 1
    %v2189 = vadd.f32 %v2187, %v2188
    %v2190 = vrot.slane %v2147, 4
    %v2191 = vadd.f32 %v2147, %v2190
    %v2192 = vrot.slane %v2191, 2
    %v2193 = vadd.f32 %v2191, %v2192
    %v2194 = vrot.slane %v2193, 1
    %v2195 = vadd.f32 %v2193, %v2194
    %v2196 = vrcp.pop %v2153
    %v2197 = vmul.f32 %v2133, %v2196
    %v2198 = vrcp.pop %v2159
    %v2199 = vmul.f32 %v2135, %v2198
    %v2200 = vrcp.pop %v2165
    %v2201 = vmul.f32 %v2137, %v2200
    %v2202 = vrcp.pop %v2171
    %v2203 = vmul.f32 %v2139, %v2202
    %v2204 = vrcp.pop %v2177
    %v2205 = vmul.f32 %v2141, %v2204
    %v2206 = vrcp.pop %v2183
    %v2207 = vmul.f32 %v2143, %v2206
    %v2208 = vrcp.pop %v2189
    %v2209 = vmul.f32 %v2145, %v2208
    %v2210 = vrcp.pop %v2195
    %v2211 = vmul.f32 %v2147, %v2210
    %v2212 = vmul.f32 %v2197, 8.0
    %v2213 = vmul.f32 %v2199, 8.0
    %v2214 = vmul.f32 %v2201, 8.0
    %v2215 = vmul.f32 %v2203, 8.0
    %v2216 = vmul.f32 %v2205, 8.0
    %v2217 = vmul.f32 %v2207, 8.0
    %v2218 = vmul.f32 %v2209, 8.0
    %v2219 = vmul.f32 %v2211, 8.0
    %v2220 = vmul.f32 %v2212, %v1757
    %v2221 = vmul.f32 %v2213, %v1758
    %v2222 = vmul.f32 %v2214, %v1759
    %v2223 = vmul.f32 %v2215, %v1760
    %v2224 = vmul.f32 %v2216, %v1761
    %v2225 = vmul.f32 %v2217, %v1762
    %v2226 = vmul.f32 %v2218, %v1763
    %v2227 = vmul.f32 %v2219, %v1764
    %v2228 = vld [vmem:[%s12] sm:$0xff]
    %v2229 = vld [vmem:[%s12 + $0x8] sm:$0xff]
    %v2230 = vld [vmem:[%s12 + $0x10] sm:$0xff]
    %v2231 = vld [vmem:[%s12 + $0x18] sm:$0xff]
    %v2232 = vld [vmem:[%s14] sm:$0xff]
    %v2233 = vld [vmem:[%s14 + $0x8] sm:$0xff]
    %v2234 = vld [vmem:[%s14 + $0x10] sm:$0xff]
    %v2235 = vld [vmem:[%s14 + $0x18] sm:$0xff]
    %2237 = vset.pattern.permute.xlu0 0
    %2238 = vperm.xlu0 %2237, %v2232
    %v2239 = vpop.permute.xlu0 %2238
    %2242 = vset.pattern.permute.xlu0 0
    %2243 = vperm.xlu0 %2242, %v2233
    %v2244 = vpop.permute.xlu0 %2243
    %2247 = vset.pattern.permute.xlu0 0
    %2248 = vperm.xlu0 %2247, %v2234
    %v2249 = vpop.permute.xlu0 %2248
    %2252 = vset.pattern.permute.xlu0 0
    %2253 = vperm.xlu0 %2252, %v2235
    %v2254 = vpop.permute.xlu0 %2253
    %v2257 = vsel %vm1766, %v2228, 0
    %v2260 = vsel %vm1766, %v2229, 0
    %v2263 = vsel %vm1766, %v2230, 0
    %v2266 = vsel %vm1766, %v2231, 0
    %2268 = vmatprep.subr.mxu0 %v2221
    %2269 = vmatpush1.msra.mxu0 %v2220
    %2270 = vmatprep.subr.mxu0 0.0
    %2271 = vmatpush1.msra.mxu0 0.0
    %2272 = vmatprep.subr.mxu0 0.0
    %2273 = vmatpush1.msra.mxu0 0.0
    %2274 = vmatprep.subr.mxu0 0.0
    %2275 = vmatpush1.msra.mxu0 0.0
    %2276 = vmatprep.subr.mxu0 0.0
    %2277 = vmatpush1.msra.mxu0 0.0
    %2278 = vmatprep.subr.mxu0 0.0
    %2279 = vmatpush1.msra.mxu0 0.0
    %2280 = vmatprep.subr.mxu0 0.0
    %2281 = vmatpush1.msra.mxu0 0.0
    %2282 = vmatprep.subr.mxu0 0.0
    %2283 = vmatpush1.msra.mxu0 0.0
    %2284 = vmatprep.subr.mxu0 0.0
    %2285 = vmatpush1.msra.mxu0 0.0
    %2286 = vmatprep.subr.mxu0 0.0
    %2287 = vmatpush1.msra.mxu0 0.0
    %2288 = vmatprep.subr.mxu0 0.0
    %2289 = vmatpush1.msra.mxu0 0.0
    %2290 = vmatprep.subr.mxu0 0.0
    %2291 = vmatpush1.msra.mxu0 0.0
    %2292 = vmatprep.subr.mxu0 0.0
    %2293 = vmatpush1.msra.mxu0 0.0
    %2294 = vmatprep.subr.mxu0 0.0
    %2295 = vmatpush1.msra.mxu0 0.0
    %2296 = vmatprep.subr.mxu0 0.0
    %2297 = vmatpush1.msra.mxu0 0.0
    %2298 = vmatprep.subr.mxu0 0.0
    %2299 = vmatpush1.msra.mxu0 0.0
    %2300 = vmatprep.subr.mxu0 0.0
    %2301 = vmatpush1.msra.mxu0 0.0
    %2302 = vmatprep.subr.mxu0 0.0
    %2303 = vmatpush1.msra.mxu0 0.0
    %2304 = vmatprep.subr.mxu0 0.0
    %2305 = vmatpush1.msra.mxu0 0.0
    %2306 = vmatprep.subr.mxu0 0.0
    %2307 = vmatpush1.msra.mxu0 0.0
    %2308 = vmatprep.subr.mxu0 0.0
    %2309 = vmatpush1.msra.mxu0 0.0
    %2310 = vmatprep.subr.mxu0 0.0
    %2311 = vmatpush1.msra.mxu0 0.0
    %2312 = vmatprep.subr.mxu0 0.0
    %2313 = vmatpush1.msra.mxu0 0.0
    %2314 = vmatprep.subr.mxu0 0.0
    %2315 = vmatpush1.msra.mxu0 0.0
    %2316 = vmatprep.subr.mxu0 0.0
    %2317 = vmatpush1.msra.mxu0 0.0
    %2318 = vmatprep.subr.mxu0 0.0
    %2319 = vmatpush1.msra.mxu0 0.0
    %2320 = vmatprep.subr.mxu0 0.0
    %2321 = vmatpush1.msra.mxu0 0.0
    %2322 = vmatprep.subr.mxu0 0.0
    %2323 = vmatpush1.msra.mxu0 0.0
    %2324 = vmatprep.subr.mxu0 0.0
    %2325 = vmatpush1.msra.mxu0 0.0
    %2326 = vmatprep.subr.mxu0 0.0
    %2327 = vmatpush1.msra.mxu0 0.0
    %2328 = vmatprep.subr.mxu0 0.0
    %2329 = vmatpush1.msra.mxu0 0.0
    %2330 = vmatprep.subr.mxu0 0.0
    %2331 = vmatpush1.msra.mxu0 0.0
    %2332 = vmatprep.mubr.f32.mxu0 0.0
    %2333 = vmatmul.mubr.f32.gmra.mrb[0].mxu0 %v2257
    %v2334 = vpop.f32.mrb[0].mxu0
    %v2335 = vadd.f32 %v2239, %v2334
    %v2336 = vpop.f32.mrb[0].mxu0
    %v2337 = vadd.f32 %v2239, %v2336
    %2338 = vmatprep.mubr.f32.mxu0 0.0
    %2339 = vmatmul.mubr.f32.gmra.mrb[0].mxu0 %v2260
    %v2340 = vpop.f32.mrb[0].mxu0
    %v2341 = vadd.f32 %v2244, %v2340
    %v2342 = vpop.f32.mrb[0].mxu0
    %v2343 = vadd.f32 %v2244, %v2342
    %2344 = vmatprep.mubr.f32.mxu0 0.0
    %2345 = vmatmul.mubr.f32.gmra.mrb[0].mxu0 %v2263
    %v2346 = vpop.f32.mrb[0].mxu0
    %v2347 = vadd.f32 %v2249, %v2346
    %v2348 = vpop.f32.mrb[0].mxu0
    %v2349 = vadd.f32 %v2249, %v2348
    %2350 = vmatprep.mubr.f32.mxu0 0.0
    %2351 = vmatmul.mubr.f32.gmra.mrb[0].mxu0 %v2266
    %v2352 = vpop.f32.mrb[0].mxu0
    %v2353 = vadd.f32 %v2254, %v2352
    %v2354 = vpop.f32.mrb[0].mxu0
    %v2355 = vadd.f32 %v2254, %v2354
    %2356 = vdwg.mxu0
    %2357 = vmatprep.subr.mxu0 %v2223
    %2358 = vmatpush1.msra.mxu0 %v2222
    %2359 = vmatprep.subr.mxu0 0.0
    %2360 = vmatpush1.msra.mxu0 0.0
    %2361 = vmatprep.subr.mxu0 0.0
    %2362 = vmatpush1.msra.mxu0 0.0
    %2363 = vmatprep.subr.mxu0 0.0
    %2364 = vmatpush1.msra.mxu0 0.0
    %2365 = vmatprep.subr.mxu0 0.0
    %2366 = vmatpush1.msra.mxu0 0.0
    %2367 = vmatprep.subr.mxu0 0.0
    %2368 = vmatpush1.msra.mxu0 0.0
    %2369 = vmatprep.subr.mxu0 0.0
    %2370 = vmatpush1.msra.mxu0 0.0
    %2371 = vmatprep.subr.mxu0 0.0
    %2372 = vmatpush1.msra.mxu0 0.0
    %2373 = vmatprep.subr.mxu0 0.0
    %2374 = vmatpush1.msra.mxu0 0.0
    %2375 = vmatprep.subr.mxu0 0.0
    %2376 = vmatpush1.msra.mxu0 0.0
    %2377 = vmatprep.subr.mxu0 0.0
    %2378 = vmatpush1.msra.mxu0 0.0
    %2379 = vmatprep.subr.mxu0 0.0
    %2380 = vmatpush1.msra.mxu0 0.0
    %2381 = vmatprep.subr.mxu0 0.0
    %2382 = vmatpush1.msra.mxu0 0.0
    %2383 = vmatprep.subr.mxu0 0.0
    %2384 = vmatpush1.msra.mxu0 0.0
    %2385 = vmatprep.subr.mxu0 0.0
    %2386 = vmatpush1.msra.mxu0 0.0
    %2387 = vmatprep.subr.mxu0 0.0
    %2388 = vmatpush1.msra.mxu0 0.0
    %2389 = vmatprep.subr.mxu0 0.0
    %2390 = vmatpush1.msra.mxu0 0.0
    %2391 = vmatprep.subr.mxu0 0.0
    %2392 = vmatpush1.msra.mxu0 0.0
    %2393 = vmatprep.subr.mxu0 0.0
    %2394 = vmatpush1.msra.mxu0 0.0
    %2395 = vmatprep.subr.mxu0 0.0
    %2396 = vmatpush1.msra.mxu0 0.0
    %2397 = vmatprep.subr.mxu0 0.0
    %2398 = vmatpush1.msra.mxu0 0.0
    %2399 = vmatprep.subr.mxu0 0.0
    %2400 = vmatpush1.msra.mxu0 0.0
    %2401 = vmatprep.subr.mxu0 0.0
    %2402 = vmatpush1.msra.mxu0 0.0
    %2403 = vmatprep.subr.mxu0 0.0
    %2404 = vmatpush1.msra.mxu0 0.0
    %2405 = vmatprep.subr.mxu0 0.0
    %2406 = vmatpush1.msra.mxu0 0.0
    %2407 = vmatprep.subr.mxu0 0.0
    %2408 = vmatpush1.msra.mxu0 0.0
    %2409 = vmatprep.subr.mxu0 0.0
    %2410 = vmatpush1.msra.mxu0 0.0
    %2411 = vmatprep.subr.mxu0 0.0
    %2412 = vmatpush1.msra.mxu0 0.0
    %2413 = vmatprep.subr.mxu0 0.0
    %2414 = vmatpush1.msra.mxu0 0.0
    %2415 = vmatprep.subr.mxu0 0.0
    %2416 = vmatpush1.msra.mxu0 0.0
    %2417 = vmatprep.subr.mxu0 0.0
    %2418 = vmatpush1.msra.mxu0 0.0
    %2419 = vmatprep.subr.mxu0 0.0
    %2420 = vmatpush1.msra.mxu0 0.0
    %2421 = vmatprep.mubr.f32.mxu0 0.0
    %2422 = vmatmul.mubr.f32.gmra.mrb[0].mxu0 %v2257
    %v2423 = vpop.f32.mrb[0].mxu0
    %v2424 = vadd.f32 %v2239, %v2423
    %v2425 = vpop.f32.mrb[0].mxu0
    %v2426 = vadd.f32 %v2239, %v2425
    %2427 = vmatprep.mubr.f32.mxu0 0.0
    %2428 = vmatmul.mubr.f32.gmra.mrb[0].mxu0 %v2260
    %v2429 = vpop.f32.mrb[0].mxu0
    %v2430 = vadd.f32 %v2244, %v2429
    %v2431 = vpop.f32.mrb[0].mxu0
    %v2432 = vadd.f32 %v2244, %v2431
    %2433 = vmatprep.mubr.f32.mxu0 0.0
    %2434 = vmatmul.mubr.f32.gmra.mrb[0].mxu0 %v2263
    %v2435 = vpop.f32.mrb[0].mxu0
    %v2436 = vadd.f32 %v2249, %v2435
    %v2437 = vpop.f32.mrb[0].mxu0
    %v2438 = vadd.f32 %v2249, %v2437
    %2439 = vmatprep.mubr.f32.mxu0 0.0
    %2440 = vmatmul.mubr.f32.gmra.mrb[0].mxu0 %v2266
    %v2441 = vpop.f32.mrb[0].mxu0
    %v2442 = vadd.f32 %v2254, %v2441
    %v2443 = vpop.f32.mrb[0].mxu0
    %v2444 = vadd.f32 %v2254, %v2443
    %2445 = vdwg.mxu0
    %2446 = vmatprep.subr.mxu0 %v2225
    %2447 = vmatpush1.msra.mxu0 %v2224
    %2448 = vmatprep.subr.mxu0 0.0
    %2449 = vmatpush1.msra.mxu0 0.0
    %2450 = vmatprep.subr.mxu0 0.0
    %2451 = vmatpush1.msra.mxu0 0.0
    %2452 = vmatprep.subr.mxu0 0.0
    %2453 = vmatpush1.msra.mxu0 0.0
    %2454 = vmatprep.subr.mxu0 0.0
    %2455 = vmatpush1.msra.mxu0 0.0
    %2456 = vmatprep.subr.mxu0 0.0
    %2457 = vmatpush1.msra.mxu0 0.0
    %2458 = vmatprep.subr.mxu0 0.0
    %2459 = vmatpush1.msra.mxu0 0.0
    %2460 = vmatprep.subr.mxu0 0.0
    %2461 = vmatpush1.msra.mxu0 0.0
    %2462 = vmatprep.subr.mxu0 0.0
    %2463 = vmatpush1.msra.mxu0 0.0
    %2464 = vmatprep.subr.mxu0 0.0
    %2465 = vmatpush1.msra.mxu0 0.0
    %2466 = vmatprep.subr.mxu0 0.0
    %2467 = vmatpush1.msra.mxu0 0.0
    %2468 = vmatprep.subr.mxu0 0.0
    %2469 = vmatpush1.msra.mxu0 0.0
    %2470 = vmatprep.subr.mxu0 0.0
    %2471 = vmatpush1.msra.mxu0 0.0
    %2472 = vmatprep.subr.mxu0 0.0
    %2473 = vmatpush1.msra.mxu0 0.0
    %2474 = vmatprep.subr.mxu0 0.0
    %2475 = vmatpush1.msra.mxu0 0.0
    %2476 = vmatprep.subr.mxu0 0.0
    %2477 = vmatpush1.msra.mxu0 0.0
    %2478 = vmatprep.subr.mxu0 0.0
    %2479 = vmatpush1.msra.mxu0 0.0
    %2480 = vmatprep.subr.mxu0 0.0
    %2481 = vmatpush1.msra.mxu0 0.0
    %2482 = vmatprep.subr.mxu0 0.0
    %2483 = vmatpush1.msra.mxu0 0.0
    %2484 = vmatprep.subr.mxu0 0.0
    %2485 = vmatpush1.msra.mxu0 0.0
    %2486 = vmatprep.subr.mxu0 0.0
    %2487 = vmatpush1.msra.mxu0 0.0
    %2488 = vmatprep.subr.mxu0 0.0
    %2489 = vmatpush1.msra.mxu0 0.0
    %2490 = vmatprep.subr.mxu0 0.0
    %2491 = vmatpush1.msra.mxu0 0.0
    %2492 = vmatprep.subr.mxu0 0.0
    %2493 = vmatpush1.msra.mxu0 0.0
    %2494 = vmatprep.subr.mxu0 0.0
    %2495 = vmatpush1.msra.mxu0 0.0
    %2496 = vmatprep.subr.mxu0 0.0
    %2497 = vmatpush1.msra.mxu0 0.0
    %2498 = vmatprep.subr.mxu0 0.0
    %2499 = vmatpush1.msra.mxu0 0.0
    %2500 = vmatprep.subr.mxu0 0.0
    %2501 = vmatpush1.msra.mxu0 0.0
    %2502 = vmatprep.subr.mxu0 0.0
    %2503 = vmatpush1.msra.mxu0 0.0
    %2504 = vmatprep.subr.mxu0 0.0
    %2505 = vmatpush1.msra.mxu0 0.0
    %2506 = vmatprep.subr.mxu0 0.0
    %2507 = vmatpush1.msra.mxu0 0.0
    %2508 = vmatprep.subr.mxu0 0.0
    %2509 = vmatpush1.msra.mxu0 0.0
    %2510 = vmatprep.mubr.f32.mxu0 0.0
    %2511 = vmatmul.mubr.f32.gmra.mrb[0].mxu0 %v2257
    %v2512 = vpop.f32.mrb[0].mxu0
    %v2513 = vadd.f32 %v2239, %v2512
    %v2514 = vpop.f32.mrb[0].mxu0
    %v2515 = vadd.f32 %v2239, %v2514
    %2516 = vmatprep.mubr.f32.mxu0 0.0
    %2517 = vmatmul.mubr.f32.gmra.mrb[0].mxu0 %v2260
    %v2518 = vpop.f32.mrb[0].mxu0
    %v2519 = vadd.f32 %v2244, %v2518
    %v2520 = vpop.f32.mrb[0].mxu0
    %v2521 = vadd.f32 %v2244, %v2520
    %2522 = vmatprep.mubr.f32.mxu0 0.0
    %2523 = vmatmul.mubr.f32.gmra.mrb[0].mxu0 %v2263
    %v2524 = vpop.f32.mrb[0].mxu0
    %v2525 = vadd.f32 %v2249, %v2524
    %v2526 = vpop.f32.mrb[0].mxu0
    %v2527 = vadd.f32 %v2249, %v2526
    %2528 = vmatprep.mubr.f32.mxu0 0.0
    %2529 = vmatmul.mubr.f32.gmra.mrb[0].mxu0 %v2266
    %v2530 = vpop.f32.mrb[0].mxu0
    %v2531 = vadd.f32 %v2254, %v2530
    %v2532 = vpop.f32.mrb[0].mxu0
    %v2533 = vadd.f32 %v2254, %v2532
    %2534 = vdwg.mxu0
    %2535 = vmatprep.subr.mxu0 %v2227
    %2536 = vmatpush1.msra.mxu0 %v2226
    %2537 = vmatprep.subr.mxu0 0.0
    %2538 = vmatpush1.msra.mxu0 0.0
    %2539 = vmatprep.subr.mxu0 0.0
    %2540 = vmatpush1.msra.mxu0 0.0
    %2541 = vmatprep.subr.mxu0 0.0
    %2542 = vmatpush1.msra.mxu0 0.0
    %2543 = vmatprep.subr.mxu0 0.0
    %2544 = vmatpush1.msra.mxu0 0.0
    %2545 = vmatprep.subr.mxu0 0.0
    %2546 = vmatpush1.msra.mxu0 0.0
    %2547 = vmatprep.subr.mxu0 0.0
    %2548 = vmatpush1.msra.mxu0 0.0
    %2549 = vmatprep.subr.mxu0 0.0
    %2550 = vmatpush1.msra.mxu0 0.0
    %2551 = vmatprep.subr.mxu0 0.0
    %2552 = vmatpush1.msra.mxu0 0.0
    %2553 = vmatprep.subr.mxu0 0.0
    %2554 = vmatpush1.msra.mxu0 0.0
    %2555 = vmatprep.subr.mxu0 0.0
    %2556 = vmatpush1.msra.mxu0 0.0
    %2557 = vmatprep.subr.mxu0 0.0
    %2558 = vmatpush1.msra.mxu0 0.0
    %2559 = vmatprep.subr.mxu0 0.0
    %2560 = vmatpush1.msra.mxu0 0.0
    %2561 = vmatprep.subr.mxu0 0.0
    %2562 = vmatpush1.msra.mxu0 0.0
    %2563 = vmatprep.subr.mxu0 0.0
    %2564 = vmatpush1.msra.mxu0 0.0
    %2565 = vmatprep.subr.mxu0 0.0
    %2566 = vmatpush1.msra.mxu0 0.0
    %2567 = vmatprep.subr.mxu0 0.0
    %2568 = vmatpush1.msra.mxu0 0.0
    %2569 = vmatprep.subr.mxu0 0.0
    %2570 = vmatpush1.msra.mxu0 0.0
    %2571 = vmatprep.subr.mxu0 0.0
    %2572 = vmatpush1.msra.mxu0 0.0
    %2573 = vmatprep.subr.mxu0 0.0
    %2574 = vmatpush1.msra.mxu0 0.0
    %2575 = vmatprep.subr.mxu0 0.0
    %2576 = vmatpush1.msra.mxu0 0.0
    %2577 = vmatprep.subr.mxu0 0.0
    %2578 = vmatpush1.msra.mxu0 0.0
    %2579 = vmatprep.subr.mxu0 0.0
    %2580 = vmatpush1.msra.mxu0 0.0
    %2581 = vmatprep.subr.mxu0 0.0
    %2582 = vmatpush1.msra.mxu0 0.0
    %2583 = vmatprep.subr.mxu0 0.0
    %2584 = vmatpush1.msra.mxu0 0.0
    %2585 = vmatprep.subr.mxu0 0.0
    %2586 = vmatpush1.msra.mxu0 0.0
    %2587 = vmatprep.subr.mxu0 0.0
    %2588 = vmatpush1.msra.mxu0 0.0
    %2589 = vmatprep.subr.mxu0 0.0
    %2590 = vmatpush1.msra.mxu0 0.0
    %2591 = vmatprep.subr.mxu0 0.0
    %2592 = vmatpush1.msra.mxu0 0.0
    %2593 = vmatprep.subr.mxu0 0.0
    %2594 = vmatpush1.msra.mxu0 0.0
    %2595 = vmatprep.subr.mxu0 0.0
    %2596 = vmatpush1.msra.mxu0 0.0
    %2597 = vmatprep.subr.mxu0 0.0
    %2598 = vmatpush1.msra.mxu0 0.0
    %2599 = vmatprep.mubr.f32.mxu0 0.0
    %2600 = vmatmul.mubr.f32.gmra.mrb[0].mxu0 %v2257
    %v2601 = vpop.f32.mrb[0].mxu0
    %v2602 = vadd.f32 %v2239, %v2601
    %v2603 = vpop.f32.mrb[0].mxu0
    %v2604 = vadd.f32 %v2239, %v2603
    %2605 = vmatprep.mubr.f32.mxu0 0.0
    %2606 = vmatmul.mubr.f32.gmra.mrb[0].mxu0 %v2260
    %v2607 = vpop.f32.mrb[0].mxu0
    %v2608 = vadd.f32 %v2244, %v2607
    %v2609 = vpop.f32.mrb[0].mxu0
    %v2610 = vadd.f32 %v2244, %v2609
    %2611 = vmatprep.mubr.f32.mxu0 0.0
    %2612 = vmatmul.mubr.f32.gmra.mrb[0].mxu0 %v2263
    %v2613 = vpop.f32.mrb[0].mxu0
    %v2614 = vadd.f32 %v2249, %v2613
    %v2615 = vpop.f32.mrb[0].mxu0
    %v2616 = vadd.f32 %v2249, %v2615
    %2617 = vmatprep.mubr.f32.mxu0 0.0
    %2618 = vmatmul.mubr.f32.gmra.mrb[0].mxu0 %v2266
    %v2619 = vpop.f32.mrb[0].mxu0
    %v2620 = vadd.f32 %v2254, %v2619
    %v2621 = vpop.f32.mrb[0].mxu0
    %v2622 = vadd.f32 %v2254, %v2621
    %2623 = vdwg.mxu0
    %2624 = vst [vmem:[#allocation3] sm:$0xff] %v2335
    %2625 = vst [vmem:[#allocation3 + $0x8] sm:$0xff] %v2337
    %2626 = vst [vmem:[#allocation3 + $0x10] sm:$0xff] %v2424
    %2627 = vst [vmem:[#allocation3 + $0x18] sm:$0xff] %v2426
    %2628 = vst [vmem:[#allocation3 + $0x20] sm:$0xff] %v2513
    %2629 = vst [vmem:[#allocation3 + $0x28] sm:$0xff] %v2515
    %2630 = vst [vmem:[#allocation3 + $0x30] sm:$0xff] %v2602
    %2631 = vst [vmem:[#allocation3 + $0x38] sm:$0xff] %v2604
    %2632 = vst [vmem:[#allocation3 + $0x40] sm:$0xff] %v2341
    %2633 = vst [vmem:[#allocation3 + $0x48] sm:$0xff] %v2343
    %2634 = vst [vmem:[#allocation3 + $0x50] sm:$0xff] %v2430
    %2635 = vst [vmem:[#allocation3 + $0x58] sm:$0xff] %v2432
    %2636 = vst [vmem:[#allocation3 + $0x60] sm:$0xff] %v2519
    %2637 = vst [vmem:[#allocation3 + $0x68] sm:$0xff] %v2521
    %2638 = vst [vmem:[#allocation3 + $0x70] sm:$0xff] %v2608
    %2639 = vst [vmem:[#allocation3 + $0x78] sm:$0xff] %v2610
    %2640 = vst [vmem:[#allocation3 + $0x80] sm:$0xff] %v2347
    %2641 = vst [vmem:[#allocation3 + $0x88] sm:$0xff] %v2349
    %2642 = vst [vmem:[#allocation3 + $0x90] sm:$0xff] %v2436
    %2643 = vst [vmem:[#allocation3 + $0x98] sm:$0xff] %v2438
    %2644 = vst [vmem:[#allocation3 + $0xa0] sm:$0xff] %v2525
    %2645 = vst [vmem:[#allocation3 + $0xa8] sm:$0xff] %v2527
    %2646 = vst [vmem:[#allocation3 + $0xb0] sm:$0xff] %v2614
    %2647 = vst [vmem:[#allocation3 + $0xb8] sm:$0xff] %v2616
    %2648 = vst [vmem:[#allocation3 + $0xc0] sm:$0xff] %v2353
    %2649 = vst [vmem:[#allocation3 + $0xc8] sm:$0xff] %v2355
    %2650 = vst [vmem:[#allocation3 + $0xd0] sm:$0xff] %v2442
    %2651 = vst [vmem:[#allocation3 + $0xd8] sm:$0xff] %v2444
    %2652 = vst [vmem:[#allocation3 + $0xe0] sm:$0xff] %v2531
    %2653 = vst [vmem:[#allocation3 + $0xe8] sm:$0xff] %v2533
    %2654 = vst [vmem:[#allocation3 + $0xf0] sm:$0xff] %v2620
    %2655 = vst [vmem:[#allocation3 + $0xf8] sm:$0xff] %v2622
    %v2656 = vld [vmem:[%s13] sm:$0xff]
    %v2657 = vld [vmem:[%s13 + $0x8] sm:$0xff]
    %v2658 = vld [vmem:[%s13 + $0x10] sm:$0xff]
    %v2659 = vld [vmem:[%s13 + $0x18] sm:$0xff]
    %v2660 = vld [vmem:[%s14] sm:$0xff]
    %v2661 = vld [vmem:[%s14 + $0x8] sm:$0xff]
    %v2662 = vld [vmem:[%s14 + $0x10] sm:$0xff]
    %v2663 = vld [vmem:[%s14 + $0x18] sm:$0xff]
    %2665 = vset.pattern.permute.xlu0 0
    %2666 = vperm.xlu0 %2665, %v2660
    %v2667 = vpop.permute.xlu0 %2666
    %2670 = vset.pattern.permute.xlu0 0
    %2671 = vperm.xlu0 %2670, %v2661
    %v2672 = vpop.permute.xlu0 %2671
    %2675 = vset.pattern.permute.xlu0 0
    %2676 = vperm.xlu0 %2675, %v2662
    %v2677 = vpop.permute.xlu0 %2676
    %2680 = vset.pattern.permute.xlu0 0
    %2681 = vperm.xlu0 %2680, %v2663
    %v2682 = vpop.permute.xlu0 %2681
    %v2685 = vsel %vm1766, %v2656, 0
    %v2688 = vsel %vm1766, %v2657, 0
    %v2691 = vsel %vm1766, %v2658, 0
    %v2694 = vsel %vm1766, %v2659, 0
    %2696 = vmatprep.subr.mxu0 0.0
    %2697 = vmatpush1.msra.mxu0 0.0
    %2698 = vmatprep.subr.mxu0 0.0
    %2699 = vmatpush1.msra.mxu0 0.0
    %2700 = vmatprep.subr.mxu0 0.0
    %2701 = vmatpush1.msra.mxu0 0.0
    %2702 = vmatprep.subr.mxu0 0.0
    %2703 = vmatpush1.msra.mxu0 0.0
    %2704 = vmatprep.subr.mxu0 0.0
    %2705 = vmatpush1.msra.mxu0 0.0
    %2706 = vmatprep.subr.mxu0 0.0
    %2707 = vmatpush1.msra.mxu0 0.0
    %2708 = vmatprep.subr.mxu0 0.0
    %2709 = vmatpush1.msra.mxu0 0.0
    %2710 = vmatprep.subr.mxu0 0.0
    %2711 = vmatpush1.msra.mxu0 0.0
    %2712 = vmatprep.subr.mxu0 0.0
    %2713 = vmatpush1.msra.mxu0 0.0
    %2714 = vmatprep.subr.mxu0 0.0
    %2715 = vmatpush1.msra.mxu0 0.0
    %2716 = vmatprep.subr.mxu0 0.0
    %2717 = vmatpush1.msra.mxu0 0.0
    %2718 = vmatprep.subr.mxu0 0.0
    %2719 = vmatpush1.msra.mxu0 0.0
    %2720 = vmatprep.subr.mxu0 0.0
    %2721 = vmatpush1.msra.mxu0 0.0
    %2722 = vmatprep.subr.mxu0 0.0
    %2723 = vmatpush1.msra.mxu0 0.0
    %2724 = vmatprep.subr.mxu0 0.0
    %2725 = vmatpush1.msra.mxu0 0.0
    %2726 = vmatprep.subr.mxu0 0.0
    %2727 = vmatpush1.msra.mxu0 0.0
    %2728 = vmatprep.subr.mxu0 0.0
    %2729 = vmatpush1.msra.mxu0 0.0
    %2730 = vmatprep.subr.mxu0 0.0
    %2731 = vmatpush1.msra.mxu0 0.0
    %2732 = vmatprep.subr.mxu0 0.0
    %2733 = vmatpush1.msra.mxu0 0.0
    %2734 = vmatprep.subr.mxu0 0.0
    %2735 = vmatpush1.msra.mxu0 0.0
    %2736 = vmatprep.subr.mxu0 0.0
    %2737 = vmatpush1.msra.mxu0 0.0
    %2738 = vmatprep.subr.mxu0 0.0
    %2739 = vmatpush1.msra.mxu0 0.0
    %2740 = vmatprep.subr.mxu0 0.0
    %2741 = vmatpush1.msra.mxu0 0.0
    %2742 = vmatprep.subr.mxu0 0.0
    %2743 = vmatpush1.msra.mxu0 0.0
    %2744 = vmatprep.subr.mxu0 0.0
    %2745 = vmatpush1.msra.mxu0 0.0
    %2746 = vmatprep.subr.mxu0 0.0
    %2747 = vmatpush1.msra.mxu0 0.0
    %2748 = vmatprep.subr.mxu0 0.0
    %2749 = vmatpush1.msra.mxu0 0.0
    %2750 = vmatprep.subr.mxu0 0.0
    %2751 = vmatpush1.msra.mxu0 0.0
    %2752 = vmatprep.subr.mxu0 0.0
    %2753 = vmatpush1.msra.mxu0 0.0
    %2754 = vmatprep.subr.mxu0 0.0
    %2755 = vmatpush1.msra.mxu0 0.0
    %2756 = vmatprep.subr.mxu0 0.0
    %2757 = vmatpush1.msra.mxu0 0.0
    %2758 = vmatprep.subr.mxu0 0.0
    %2759 = vmatpush1.msra.mxu0 0.0
    %2760 = vmatprep.mubr.f32.mxu0 0.0
    %2761 = vmatmul.mubr.f32.gmra.mrb[0].mxu0 %v2685
    %v2762 = vpop.f32.mrb[0].mxu0
    %v2763 = vadd.f32 0.0, %v2762
    %v2764 = vpop.f32.mrb[0].mxu0
    %v2765 = vadd.f32 0.0, %v2764
    %2766 = vmatprep.mubr.f32.mxu0 0.0
    %2767 = vmatmul.mubr.f32.gmra.mrb[0].mxu0 %v2688
    %v2768 = vpop.f32.mrb[0].mxu0
    %v2769 = vadd.f32 0.0, %v2768
    %v2770 = vpop.f32.mrb[0].mxu0
    %v2771 = vadd.f32 0.0, %v2770
    %2772 = vmatprep.mubr.f32.mxu0 0.0
    %2773 = vmatmul.mubr.f32.gmra.mrb[0].mxu0 %v2691
    %v2774 = vpop.f32.mrb[0].mxu0
    %v2775 = vadd.f32 0.0, %v2774
    %v2776 = vpop.f32.mrb[0].mxu0
    %v2777 = vadd.f32 0.0, %v2776
    %2778 = vmatprep.mubr.f32.mxu0 0.0
    %2779 = vmatmul.mubr.f32.gmra.mrb[0].mxu0 %v2694
    %v2780 = vpop.f32.mrb[0].mxu0
    %v2781 = vadd.f32 0.0, %v2780
    %v2782 = vpop.f32.mrb[0].mxu0
    %v2783 = vadd.f32 0.0, %v2782
    %2784 = vdwg.mxu0
    %v2785 = vadd.f32 %v2667, %v2763
    %v2786 = vadd.f32 %v2667, %v2765
    %v2787 = vadd.f32 %v2672, %v2769
    %v2788 = vadd.f32 %v2672, %v2771
    %v2789 = vadd.f32 %v2677, %v2775
    %v2790 = vadd.f32 %v2677, %v2777
    %v2791 = vadd.f32 %v2682, %v2781
    %v2792 = vadd.f32 %v2682, %v2783
    %v2793 = vsub.f32 0.0, %v2785
    %v2794 = vsub.f32 0.0, %v2786
    %v2795 = vmul.f32 %v2793, 1.442695
    %v2796 = vpow.pop %v2795
    %v2797 = vmul.f32 %v2794, 1.442695
    %v2798 = vpow.pop %v2797
    %v2799 = vadd.f32 %v2796, 1.0
    %v2800 = vadd.f32 %v2798, 1.0
    %v2801 = vrcp.pop %v2799
    %v2802 = vmul.f32 1.0, %v2801
    %v2803 = vrcp.pop %v2800
    %v2804 = vmul.f32 1.0, %v2803
    %v2805 = vsub.f32 0.0, %v2787
    %v2806 = vsub.f32 0.0, %v2788
    %v2807 = vmul.f32 %v2805, 1.442695
    %v2808 = vpow.pop %v2807
    %v2809 = vmul.f32 %v2806, 1.442695
    %v2810 = vpow.pop %v2809
    %v2811 = vadd.f32 %v2808, 1.0
    %v2812 = vadd.f32 %v2810, 1.0
    %v2813 = vrcp.pop %v2811
    %v2814 = vmul.f32 1.0, %v2813
    %v2815 = vrcp.pop %v2812
    %v2816 = vmul.f32 1.0, %v2815
    %v2817 = vtanh.pop %v2789
    %v2818 = vtanh.pop %v2790
    %v2819 = vsub.f32 0.0, %v2791
    %v2820 = vsub.f32 0.0, %v2792
    %v2821 = vmul.f32 %v2819, 1.442695
    %v2822 = vpow.pop %v2821
    %v2823 = vmul.f32 %v2820, 1.442695
    %v2824 = vpow.pop %v2823
    %v2825 = vadd.f32 %v2822, 1.0
    %v2826 = vadd.f32 %v2824, 1.0
    %v2827 = vrcp.pop %v2825
    %v2828 = vmul.f32 1.0, %v2827
    %v2829 = vrcp.pop %v2826
    %v2830 = vmul.f32 1.0, %v2829
    %v2831 = vmul.f32 %v2814, 0.0
    %v2832 = vmul.f32 %v2816, 0.0
    %v2833 = vmul.f32 %v2802, %v2817
    %v2834 = vmul.f32 %v2804, %v2818
    %v2835 = vadd.f32 %v2831, %v2833
    %v2836 = vadd.f32 %v2832, %v2834
    %v2837 = vtanh.pop %v2835
    %v2838 = vtanh.pop %v2836
    %v2839 = vmul.f32 %v2828, %v2837
    %v2840 = vmul.f32 %v2830, %v2838
    %2841 = vst [vmem:[#allocation2] sm:$0xff] %v2839
    %2842 = vst [vmem:[#allocation2 + $0x78] sm:$0xff] %v2840
    %v2843 = vld [vmem:[#allocation3] sm:$0xff]
    %v2844 = vld [vmem:[#allocation3 + $0x40] sm:$0xff]
    %v2845 = vld [vmem:[#allocation3 + $0x80] sm:$0xff]
    %v2846 = vld [vmem:[#allocation3 + $0xc0] sm:$0xff]
    %v2847 = vld [vmem:[#allocation3 + $0x38] sm:$0xff]
    %v2848 = vld [vmem:[#allocation3 + $0x78] sm:$0xff]
    %v2849 = vld [vmem:[#allocation3 + $0xb8] sm:$0xff]
    %v2850 = vld [vmem:[#allocation3 + $0xf8] sm:$0xff]
    %2851 = vmatprep.subr.mxu0 %v2840
    %2852 = vmatpush1.msra.mxu0 %v2839
    %2853 = vmatprep.subr.mxu0 0.0
    %2854 = vmatpush1.msra.mxu0 0.0
    %2855 = vmatprep.subr.mxu0 0.0
    %2856 = vmatpush1.msra.mxu0 0.0
    %2857 = vmatprep.subr.mxu0 0.0
    %2858 = vmatpush1.msra.mxu0 0.0
    %2859 = vmatprep.subr.mxu0 0.0
    %2860 = vmatpush1.msra.mxu0 0.0
    %2861 = vmatprep.subr.mxu0 0.0
    %2862 = vmatpush1.msra.mxu0 0.0
    %2863 = vmatprep.subr.mxu0 0.0
    %2864 = vmatpush1.msra.mxu0 0.0
    %2865 = vmatprep.subr.mxu0 0.0
    %2866 = vmatpush1.msra.mxu0 0.0
    %2867 = vmatprep.subr.mxu0 0.0
    %2868 = vmatpush1.msra.mxu0 0.0
    %2869 = vmatprep.subr.mxu0 0.0
    %2870 = vmatpush1.msra.mxu0 0.0
    %2871 = vmatprep.subr.mxu0 0.0
    %2872 = vmatpush1.msra.mxu0 0.0
    %2873 = vmatprep.subr.mxu0 0.0
    %2874 = vmatpush1.msra.mxu0 0.0
    %2875 = vmatprep.subr.mxu0 0.0
    %2876 = vmatpush1.msra.mxu0 0.0
    %2877 = vmatprep.subr.mxu0 0.0
    %2878 = vmatpush1.msra.mxu0 0.0
    %2879 = vmatprep.subr.mxu0 0.0
    %2880 = vmatpush1.msra.mxu0 0.0
    %2881 = vmatprep.subr.mxu0 0.0
    %2882 = vmatpush1.msra.mxu0 0.0
    %2883 = vmatprep.subr.mxu0 0.0
    %2884 = vmatpush1.msra.mxu0 0.0
    %2885 = vmatprep.subr.mxu0 0.0
    %2886 = vmatpush1.msra.mxu0 0.0
    %2887 = vmatprep.subr.mxu0 0.0
    %2888 = vmatpush1.msra.mxu0 0.0
    %2889 = vmatprep.subr.mxu0 0.0
    %2890 = vmatpush1.msra.mxu0 0.0
    %2891 = vmatprep.subr.mxu0 0.0
    %2892 = vmatpush1.msra.mxu0 0.0
    %2893 = vmatprep.subr.mxu0 0.0
    %2894 = vmatpush1.msra.mxu0 0.0
    %2895 = vmatprep.subr.mxu0 0.0
    %2896 = vmatpush1.msra.mxu0 0.0
    %2897 = vmatprep.subr.mxu0 0.0
    %2898 = vmatpush1.msra.mxu0 0.0
    %2899 = vmatprep.subr.mxu0 0.0
    %2900 = vmatpush1.msra.mxu0 0.0
    %2901 = vmatprep.subr.mxu0 0.0
    %2902 = vmatpush1.msra.mxu0 0.0
    %2903 = vmatprep.subr.mxu0 0.0
    %2904 = vmatpush1.msra.mxu0 0.0
    %2905 = vmatprep.subr.mxu0 0.0
    %2906 = vmatpush1.msra.mxu0 0.0
    %2907 = vmatprep.subr.mxu0 0.0
    %2908 = vmatpush1.msra.mxu0 0.0
    %2909 = vmatprep.subr.mxu0 0.0
    %2910 = vmatpush1.msra.mxu0 0.0
    %2911 = vmatprep.subr.mxu0 0.0
    %2912 = vmatpush1.msra.mxu0 0.0
    %2913 = vmatprep.subr.mxu0 0.0
    %2914 = vmatpush1.msra.mxu0 0.0
    %2915 = vmatprep.mubr.f32.mxu0 0.0
    %2916 = vmatmul.mubr.f32.gmra.mrb[0].mxu0 %v2685
    %v2917 = vpop.f32.mrb[0].mxu0
    %v2918 = vadd.f32 0.0, %v2917
    %v2919 = vpop.f32.mrb[0].mxu0
    %v2920 = vadd.f32 0.0, %v2919
    %2921 = vmatprep.mubr.f32.mxu0 0.0
    %2922 = vmatmul.mubr.f32.gmra.mrb[0].mxu0 %v2688
    %v2923 = vpop.f32.mrb[0].mxu0
    %v2924 = vadd.f32 0.0, %v2923
    %v2925 = vpop.f32.mrb[0].mxu0
    %v2926 = vadd.f32 0.0, %v2925
    %2927 = vmatprep.mubr.f32.mxu0 0.0
    %2928 = vmatmul.mubr.f32.gmra.mrb[0].mxu0 %v2691
    %v2929 = vpop.f32.mrb[0].mxu0
    %v2930 = vadd.f32 0.0, %v2929
    %v2931 = vpop.f32.mrb[0].mxu0
    %v2932 = vadd.f32 0.0, %v2931
    %2933 = vmatprep.mubr.f32.mxu0 0.0
    %2934 = vmatmul.mubr.f32.gmra.mrb[0].mxu0 %v2694
    %v2935 = vpop.f32.mrb[0].mxu0
    %v2936 = vadd.f32 0.0, %v2935
    %v2937 = vpop.f32.mrb[0].mxu0
    %v2938 = vadd.f32 0.0, %v2937
    %2939 = vdwg.mxu0
    %v2940 = vadd.f32 %v2843, %v2918
    %v2941 = vadd.f32 %v2847, %v2920
    %v2942 = vadd.f32 %v2844, %v2924
    %v2943 = vadd.f32 %v2848, %v2926
    %v2944 = vadd.f32 %v2845, %v2930
    %v2945 = vadd.f32 %v2849, %v2932
    %v2946 = vadd.f32 %v2846, %v2936
    %v2947 = vadd.f32 %v2850, %v2938
    %v2948 = vsub.f32 0.0, %v2940
    %v2949 = vsub.f32 0.0, %v2941
    %v2950 = vmul.f32 %v2948, 1.442695
    %v2951 = vpow.pop %v2950
    %v2952 = vmul.f32 %v2949, 1.442695
    %v2953 = vpow.pop %v2952
    %v2954 = vadd.f32 %v2951, 1.0
    %v2955 = vadd.f32 %v2953, 1.0
    %v2956 = vrcp.pop %v2954
    %v2957 = vmul.f32 1.0, %v2956
    %v2958 = vrcp.pop %v2955
    %v2959 = vmul.f32 1.0, %v2958
    %v2960 = vsub.f32 0.0, %v2942
    %v2961 = vsub.f32 0.0, %v2943
    %v2962 = vmul.f32 %v2960, 1.442695
    %v2963 = vpow.pop %v2962
    %v2964 = vmul.f32 %v2961, 1.442695
    %v2965 = vpow.pop %v2964
    %v2966 = vadd.f32 %v2963, 1.0
    %v2967 = vadd.f32 %v2965, 1.0
    %v2968 = vrcp.pop %v2966
    %v2969 = vmul.f32 1.0, %v2968
    %v2970 = vrcp.pop %v2967
    %v2971 = vmul.f32 1.0, %v2970
    %v2972 = vtanh.pop %v2944
    %v2973 = vtanh.pop %v2945
    %v2974 = vsub.f32 0.0, %v2946
    %v2975 = vsub.f32 0.0, %v2947
    %v2976 = vmul.f32 %v2974, 1.442695
    %v2977 = vpow.pop %v2976
    %v2978 = vmul.f32 %v2975, 1.442695
    %v2979 = vpow.pop %v2978
    %v2980 = vadd.f32 %v2977, 1.0
    %v2981 = vadd.f32 %v2979, 1.0
    %v2982 = vrcp.pop %v2980
    %v2983 = vmul.f32 1.0, %v2982
    %v2984 = vrcp.pop %v2981
    %v2985 = vmul.f32 1.0, %v2984
    %v2986 = vmul.f32 %v2969, %v2835
    %v2987 = vmul.f32 %v2971, %v2836
    %v2988 = vmul.f32 %v2957, %v2972
    %v2989 = vmul.f32 %v2959, %v2973
    %v2990 = vadd.f32 %v2986, %v2988
    %v2991 = vadd.f32 %v2987, %v2989
    %v2992 = vtanh.pop %v2990
    %v2993 = vtanh.pop %v2991
    %v2994 = vmul.f32 %v2983, %v2992
    %v2995 = vmul.f32 %v2985, %v2993
    %2996 = vst [vmem:[#allocation2 + $0x8] sm:$0xff] %v2994
    %2997 = vst [vmem:[#allocation2 + $0x70] sm:$0xff] %v2995
    %v2998 = vld [vmem:[#allocation3 + $0x8] sm:$0xff]
    %v2999 = vld [vmem:[#allocation3 + $0x48] sm:$0xff]
    %v3000 = vld [vmem:[#allocation3 + $0x88] sm:$0xff]
    %v3001 = vld [vmem:[#allocation3 + $0xc8] sm:$0xff]
    %v3002 = vld [vmem:[#allocation3 + $0x30] sm:$0xff]
    %v3003 = vld [vmem:[#allocation3 + $0x70] sm:$0xff]
    %v3004 = vld [vmem:[#allocation3 + $0xb0] sm:$0xff]
    %v3005 = vld [vmem:[#allocation3 + $0xf0] sm:$0xff]
    %3006 = vmatprep.subr.mxu0 %v2995
    %3007 = vmatpush1.msra.mxu0 %v2994
    %3008 = vmatprep.subr.mxu0 0.0
    %3009 = vmatpush1.msra.mxu0 0.0
    %3010 = vmatprep.subr.mxu0 0.0
    %3011 = vmatpush1.msra.mxu0 0.0
    %3012 = vmatprep.subr.mxu0 0.0
    %3013 = vmatpush1.msra.mxu0 0.0
    %3014 = vmatprep.subr.mxu0 0.0
    %3015 = vmatpush1.msra.mxu0 0.0
    %3016 = vmatprep.subr.mxu0 0.0
    %3017 = vmatpush1.msra.mxu0 0.0
    %3018 = vmatprep.subr.mxu0 0.0
    %3019 = vmatpush1.msra.mxu0 0.0
    %3020 = vmatprep.subr.mxu0 0.0
    %3021 = vmatpush1.msra.mxu0 0.0
    %3022 = vmatprep.subr.mxu0 0.0
    %3023 = vmatpush1.msra.mxu0 0.0
    %3024 = vmatprep.subr.mxu0 0.0
    %3025 = vmatpush1.msra.mxu0 0.0
    %3026 = vmatprep.subr.mxu0 0.0
    %3027 = vmatpush1.msra.mxu0 0.0
    %3028 = vmatprep.subr.mxu0 0.0
    %3029 = vmatpush1.msra.mxu0 0.0
    %3030 = vmatprep.subr.mxu0 0.0
    %3031 = vmatpush1.msra.mxu0 0.0
    %3032 = vmatprep.subr.mxu0 0.0
    %3033 = vmatpush1.msra.mxu0 0.0
    %3034 = vmatprep.subr.mxu0 0.0
    %3035 = vmatpush1.msra.mxu0 0.0
    %3036 = vmatprep.subr.mxu0 0.0
    %3037 = vmatpush1.msra.mxu0 0.0
    %3038 = vmatprep.subr.mxu0 0.0
    %3039 = vmatpush1.msra.mxu0 0.0
    %3040 = vmatprep.subr.mxu0 0.0
    %3041 = vmatpush1.msra.mxu0 0.0
    %3042 = vmatprep.subr.mxu0 0.0
    %3043 = vmatpush1.msra.mxu0 0.0
    %3044 = vmatprep.subr.mxu0 0.0
    %3045 = vmatpush1.msra.mxu0 0.0
    %3046 = vmatprep.subr.mxu0 0.0
    %3047 = vmatpush1.msra.mxu0 0.0
    %3048 = vmatprep.subr.mxu0 0.0
    %3049 = vmatpush1.msra.mxu0 0.0
    %3050 = vmatprep.subr.mxu0 0.0
    %3051 = vmatpush1.msra.mxu0 0.0
    %3052 = vmatprep.subr.mxu0 0.0
    %3053 = vmatpush1.msra.mxu0 0.0
    %3054 = vmatprep.subr.mxu0 0.0
    %3055 = vmatpush1.msra.mxu0 0.0
    %3056 = vmatprep.subr.mxu0 0.0
    %3057 = vmatpush1.msra.mxu0 0.0
    %3058 = vmatprep.subr.mxu0 0.0
    %3059 = vmatpush1.msra.mxu0 0.0
    %3060 = vmatprep.subr.mxu0 0.0
    %3061 = vmatpush1.msra.mxu0 0.0
    %3062 = vmatprep.subr.mxu0 0.0
    %3063 = vmatpush1.msra.mxu0 0.0
    %3064 = vmatprep.subr.mxu0 0.0
    %3065 = vmatpush1.msra.mxu0 0.0
    %3066 = vmatprep.subr.mxu0 0.0
    %3067 = vmatpush1.msra.mxu0 0.0
    %3068 = vmatprep.subr.mxu0 0.0
    %3069 = vmatpush1.msra.mxu0 0.0
    %3070 = vmatprep.mubr.f32.mxu0 0.0
    %3071 = vmatmul.mubr.f32.gmra.mrb[0].mxu0 %v2685
    %v3072 = vpop.f32.mrb[0].mxu0
    %v3073 = vadd.f32 0.0, %v3072
    %v3074 = vpop.f32.mrb[0].mxu0
    %v3075 = vadd.f32 0.0, %v3074
    %3076 = vmatprep.mubr.f32.mxu0 0.0
    %3077 = vmatmul.mubr.f32.gmra.mrb[0].mxu0 %v2688
    %v3078 = vpop.f32.mrb[0].mxu0
    %v3079 = vadd.f32 0.0, %v3078
    %v3080 = vpop.f32.mrb[0].mxu0
    %v3081 = vadd.f32 0.0, %v3080
    %3082 = vmatprep.mubr.f32.mxu0 0.0
    %3083 = vmatmul.mubr.f32.gmra.mrb[0].mxu0 %v2691
    %v3084 = vpop.f32.mrb[0].mxu0
    %v3085 = vadd.f32 0.0, %v3084
    %v3086 = vpop.f32.mrb[0].mxu0
    %v3087 = vadd.f32 0.0, %v3086
    %3088 = vmatprep.mubr.f32.mxu0 0.0
    %3089 = vmatmul.mubr.f32.gmra.mrb[0].mxu0 %v2694
    %v3090 = vpop.f32.mrb[0].mxu0
    %v3091 = vadd.f32 0.0, %v3090
    %v3092 = vpop.f32.mrb[0].mxu0
    %v3093 = vadd.f32 0.0, %v3092
    %3094 = vdwg.mxu0
    %v3095 = vadd.f32 %v2998, %v3073
    %v3096 = vadd.f32 %v3002, %v3075
    %v3097 = vadd.f32 %v2999, %v3079
    %v3098 = vadd.f32 %v3003, %v3081
    %v3099 = vadd.f32 %v3000, %v3085
    %v3100 = vadd.f32 %v3004, %v3087
    %v3101 = vadd.f32 %v3001, %v3091
    %v3102 = vadd.f32 %v3005, %v3093
    %v3103 = vsub.f32 0.0, %v3095
    %v3104 = vsub.f32 0.0, %v3096
    %v3105 = vmul.f32 %v3103, 1.442695
    %v3106 = vpow.pop %v3105
    %v3107 = vmul.f32 %v3104, 1.442695
    %v3108 = vpow.pop %v3107
    %v3109 = vadd.f32 %v3106, 1.0
    %v3110 = vadd.f32 %v3108, 1.0
    %v3111 = vrcp.pop %v3109
    %v3112 = vmul.f32 1.0, %v3111
    %v3113 = vrcp.pop %v3110
    %v3114 = vmul.f32 1.0, %v3113
    %v3115 = vsub.f32 0.0, %v3097
    %v3116 = vsub.f32 0.0, %v3098
    %v3117 = vmul.f32 %v3115, 1.442695
    %v3118 = vpow.pop %v3117
    %v3119 = vmul.f32 %v3116, 1.442695
    %v3120 = vpow.pop %v3119
    %v3121 = vadd.f32 %v3118, 1.0
    %v3122 = vadd.f32 %v3120, 1.0
    %v3123 = vrcp.pop %v3121
    %v3124 = vmul.f32 1.0, %v3123
    %v3125 = vrcp.pop %v3122
    %v3126 = vmul.f32 1.0, %v3125
    %v3127 = vtanh.pop %v3099
    %v3128 = vtanh.pop %v3100
    %v3129 = vsub.f32 0.0, %v3101
    %v3130 = vsub.f32 0.0, %v3102
    %v3131 = vmul.f32 %v3129, 1.442695
    %v3132 = vpow.pop %v3131
    %v3133 = vmul.f32 %v3130, 1.442695
    %v3134 = vpow.pop %v3133
    %v3135 = vadd.f32 %v3132, 1.0
    %v3136 = vadd.f32 %v3134, 1.0
    %v3137 = vrcp.pop %v3135
    %v3138 = vmul.f32 1.0, %v3137
    %v3139 = vrcp.pop %v3136
    %v3140 = vmul.f32 1.0, %v3139
    %v3141 = vmul.f32 %v3124, %v2990
    %v3142 = vmul.f32 %v3126, %v2991
    %v3143 = vmul.f32 %v3112, %v3127
    %v3144 = vmul.f32 %v3114, %v3128
    %v3145 = vadd.f32 %v3141, %v3143
    %v3146 = vadd.f32 %v3142, %v3144
    %v3147 = vtanh.pop %v3145
    %v3148 = vtanh.pop %v3146
    %v3149 = vmul.f32 %v3138, %v3147
    %v3150 = vmul.f32 %v3140, %v3148
    %3151 = vst [vmem:[#allocation2 + $0x10] sm:$0xff] %v3149
    %3152 = vst [vmem:[#allocation2 + $0x68] sm:$0xff] %v3150
    %v3153 = vld [vmem:[#allocation3 + $0x10] sm:$0xff]
    %v3154 = vld [vmem:[#allocation3 + $0x50] sm:$0xff]
    %v3155 = vld [vmem:[#allocation3 + $0x90] sm:$0xff]
    %v3156 = vld [vmem:[#allocation3 + $0xd0] sm:$0xff]
    %v3157 = vld [vmem:[#allocation3 + $0x28] sm:$0xff]
    %v3158 = vld [vmem:[#allocation3 + $0x68] sm:$0xff]
    %v3159 = vld [vmem:[#allocation3 + $0xa8] sm:$0xff]
    %v3160 = vld [vmem:[#allocation3 + $0xe8] sm:$0xff]
    %3161 = vmatprep.subr.mxu0 %v3150
    %3162 = vmatpush1.msra.mxu0 %v3149
    %3163 = vmatprep.subr.mxu0 0.0
    %3164 = vmatpush1.msra.mxu0 0.0
    %3165 = vmatprep.subr.mxu0 0.0
    %3166 = vmatpush1.msra.mxu0 0.0
    %3167 = vmatprep.subr.mxu0 0.0
    %3168 = vmatpush1.msra.mxu0 0.0
    %3169 = vmatprep.subr.mxu0 0.0
    %3170 = vmatpush1.msra.mxu0 0.0
    %3171 = vmatprep.subr.mxu0 0.0
    %3172 = vmatpush1.msra.mxu0 0.0
    %3173 = vmatprep.subr.mxu0 0.0
    %3174 = vmatpush1.msra.mxu0 0.0
    %3175 = vmatprep.subr.mxu0 0.0
    %3176 = vmatpush1.msra.mxu0 0.0
    %3177 = vmatprep.subr.mxu0 0.0
    %3178 = vmatpush1.msra.mxu0 0.0
    %3179 = vmatprep.subr.mxu0 0.0
    %3180 = vmatpush1.msra.mxu0 0.0
    %3181 = vmatprep.subr.mxu0 0.0
    %3182 = vmatpush1.msra.mxu0 0.0
    %3183 = vmatprep.subr.mxu0 0.0
    %3184 = vmatpush1.msra.mxu0 0.0
    %3185 = vmatprep.subr.mxu0 0.0
    %3186 = vmatpush1.msra.mxu0 0.0
    %3187 = vmatprep.subr.mxu0 0.0
    %3188 = vmatpush1.msra.mxu0 0.0
    %3189 = vmatprep.subr.mxu0 0.0
    %3190 = vmatpush1.msra.mxu0 0.0
    %3191 = vmatprep.subr.mxu0 0.0
    %3192 = vmatpush1.msra.mxu0 0.0
    %3193 = vmatprep.subr.mxu0 0.0
    %3194 = vmatpush1.msra.mxu0 0.0
    %3195 = vmatprep.subr.mxu0 0.0
    %3196 = vmatpush1.msra.mxu0 0.0
    %3197 = vmatprep.subr.mxu0 0.0
    %3198 = vmatpush1.msra.mxu0 0.0
    %3199 = vmatprep.subr.mxu0 0.0
    %3200 = vmatpush1.msra.mxu0 0.0
    %3201 = vmatprep.subr.mxu0 0.0
    %3202 = vmatpush1.msra.mxu0 0.0
    %3203 = vmatprep.subr.mxu0 0.0
    %3204 = vmatpush1.msra.mxu0 0.0
    %3205 = vmatprep.subr.mxu0 0.0
    %3206 = vmatpush1.msra.mxu0 0.0
    %3207 = vmatprep.subr.mxu0 0.0
    %3208 = vmatpush1.msra.mxu0 0.0
    %3209 = vmatprep.subr.mxu0 0.0
    %3210 = vmatpush1.msra.mxu0 0.0
    %3211 = vmatprep.subr.mxu0 0.0
    %3212 = vmatpush1.msra.mxu0 0.0
    %3213 = vmatprep.subr.mxu0 0.0
    %3214 = vmatpush1.msra.mxu0 0.0
    %3215 = vmatprep.subr.mxu0 0.0
    %3216 = vmatpush1.msra.mxu0 0.0
    %3217 = vmatprep.subr.mxu0 0.0
    %3218 = vmatpush1.msra.mxu0 0.0
    %3219 = vmatprep.subr.mxu0 0.0
    %3220 = vmatpush1.msra.mxu0 0.0
    %3221 = vmatprep.subr.mxu0 0.0
    %3222 = vmatpush1.msra.mxu0 0.0
    %3223 = vmatprep.subr.mxu0 0.0
    %3224 = vmatpush1.msra.mxu0 0.0
    %3225 = vmatprep.mubr.f32.mxu0 0.0
    %3226 = vmatmul.mubr.f32.gmra.mrb[0].mxu0 %v2685
    %v3227 = vpop.f32.mrb[0].mxu0
    %v3228 = vadd.f32 0.0, %v3227
    %v3229 = vpop.f32.mrb[0].mxu0
    %v3230 = vadd.f32 0.0, %v3229
    %3231 = vmatprep.mubr.f32.mxu0 0.0
    %3232 = vmatmul.mubr.f32.gmra.mrb[0].mxu0 %v2688
    %v3233 = vpop.f32.mrb[0].mxu0
    %v3234 = vadd.f32 0.0, %v3233
    %v3235 = vpop.f32.mrb[0].mxu0
    %v3236 = vadd.f32 0.0, %v3235
    %3237 = vmatprep.mubr.f32.mxu0 0.0
    %3238 = vmatmul.mubr.f32.gmra.mrb[0].mxu0 %v2691
    %v3239 = vpop.f32.mrb[0].mxu0
    %v3240 = vadd.f32 0.0, %v3239
    %v3241 = vpop.f32.mrb[0].mxu0
    %v3242 = vadd.f32 0.0, %v3241
    %3243 = vmatprep.mubr.f32.mxu0 0.0
    %3244 = vmatmul.mubr.f32.gmra.mrb[0].mxu0 %v2694
    %v3245 = vpop.f32.mrb[0].mxu0
    %v3246 = vadd.f32 0.0, %v3245
    %v3247 = vpop.f32.mrb[0].mxu0
    %v3248 = vadd.f32 0.0, %v3247
    %3249 = vdwg.mxu0
    %v3250 = vadd.f32 %v3153, %v3228
    %v3251 = vadd.f32 %v3157, %v3230
    %v3252 = vadd.f32 %v3154, %v3234
    %v3253 = vadd.f32 %v3158, %v3236
    %v3254 = vadd.f32 %v3155, %v3240
    %v3255 = vadd.f32 %v3159, %v3242
    %v3256 = vadd.f32 %v3156, %v3246
    %v3257 = vadd.f32 %v3160, %v3248
    %v3258 = vsub.f32 0.0, %v3250
    %v3259 = vsub.f32 0.0, %v3251
    %v3260 = vmul.f32 %v3258, 1.442695
    %v3261 = vpow.pop %v3260
    %v3262 = vmul.f32 %v3259, 1.442695
    %v3263 = vpow.pop %v3262
    %v3264 = vadd.f32 %v3261, 1.0
    %v3265 = vadd.f32 %v3263, 1.0
    %v3266 = vrcp.pop %v3264
    %v3267 = vmul.f32 1.0, %v3266
    %v3268 = vrcp.pop %v3265
    %v3269 = vmul.f32 1.0, %v3268
    %v3270 = vsub.f32 0.0, %v3252
    %v3271 = vsub.f32 0.0, %v3253
    %v3272 = vmul.f32 %v3270, 1.442695
    %v3273 = vpow.pop %v3272
    %v3274 = vmul.f32 %v3271, 1.442695
    %v3275 = vpow.pop %v3274
    %v3276 = vadd.f32 %v3273, 1.0
    %v3277 = vadd.f32 %v3275, 1.0
    %v3278 = vrcp.pop %v3276
    %v3279 = vmul.f32 1.0, %v3278
    %v3280 = vrcp.pop %v3277
    %v3281 = vmul.f32 1.0, %v3280
    %v3282 = vtanh.pop %v3254
    %v3283 = vtanh.pop %v3255
    %v3284 = vsub.f32 0.0, %v3256
    %v3285 = vsub.f32 0.0, %v3257
    %v3286 = vmul.f32 %v3284, 1.442695
    %v3287 = vpow.pop %v3286
    %v3288 = vmul.f32 %v3285, 1.442695
    %v3289 = vpow.pop %v3288
    %v3290 = vadd.f32 %v3287, 1.0
    %v3291 = vadd.f32 %v3289, 1.0
    %v3292 = vrcp.pop %v3290
    %v3293 = vmul.f32 1.0, %v3292
    %v3294 = vrcp.pop %v3291
    %v3295 = vmul.f32 1.0, %v3294
    %v3296 = vmul.f32 %v3279, %v3145
    %v3297 = vmul.f32 %v3281, %v3146
    %v3298 = vmul.f32 %v3267, %v3282
    %v3299 = vmul.f32 %v3269, %v3283
    %v3300 = vadd.f32 %v3296, %v3298
    %v3301 = vadd.f32 %v3297, %v3299
    %v3302 = vtanh.pop %v3300
    %v3303 = vtanh.pop %v3301
    %v3304 = vmul.f32 %v3293, %v3302
    %v3305 = vmul.f32 %v3295, %v3303
    %3306 = vst [vmem:[#allocation2 + $0x18] sm:$0xff] %v3304
    %3307 = vst [vmem:[#allocation2 + $0x60] sm:$0xff] %v3305
    %v3308 = vld [vmem:[#allocation3 + $0x18] sm:$0xff]
    %v3309 = vld [vmem:[#allocation3 + $0x58] sm:$0xff]
    %v3310 = vld [vmem:[#allocation3 + $0x98] sm:$0xff]
    %v3311 = vld [vmem:[#allocation3 + $0xd8] sm:$0xff]
    %v3312 = vld [vmem:[#allocation3 + $0x20] sm:$0xff]
    %v3313 = vld [vmem:[#allocation3 + $0x60] sm:$0xff]
    %v3314 = vld [vmem:[#allocation3 + $0xa0] sm:$0xff]
    %v3315 = vld [vmem:[#allocation3 + $0xe0] sm:$0xff]
    %3316 = vmatprep.subr.mxu0 %v3305
    %3317 = vmatpush1.msra.mxu0 %v3304
    %3318 = vmatprep.subr.mxu0 0.0
    %3319 = vmatpush1.msra.mxu0 0.0
    %3320 = vmatprep.subr.mxu0 0.0
    %3321 = vmatpush1.msra.mxu0 0.0
    %3322 = vmatprep.subr.mxu0 0.0
    %3323 = vmatpush1.msra.mxu0 0.0
    %3324 = vmatprep.subr.mxu0 0.0
    %3325 = vmatpush1.msra.mxu0 0.0
    %3326 = vmatprep.subr.mxu0 0.0
    %3327 = vmatpush1.msra.mxu0 0.0
    %3328 = vmatprep.subr.mxu0 0.0
    %3329 = vmatpush1.msra.mxu0 0.0
    %3330 = vmatprep.subr.mxu0 0.0
    %3331 = vmatpush1.msra.mxu0 0.0
    %3332 = vmatprep.subr.mxu0 0.0
    %3333 = vmatpush1.msra.mxu0 0.0
    %3334 = vmatprep.subr.mxu0 0.0
    %3335 = vmatpush1.msra.mxu0 0.0
    %3336 = vmatprep.subr.mxu0 0.0
    %3337 = vmatpush1.msra.mxu0 0.0
    %3338 = vmatprep.subr.mxu0 0.0
    %3339 = vmatpush1.msra.mxu0 0.0
    %3340 = vmatprep.subr.mxu0 0.0
    %3341 = vmatpush1.msra.mxu0 0.0
    %3342 = vmatprep.subr.mxu0 0.0
    %3343 = vmatpush1.msra.mxu0 0.0
    %3344 = vmatprep.subr.mxu0 0.0
    %3345 = vmatpush1.msra.mxu0 0.0
    %3346 = vmatprep.subr.mxu0 0.0
    %3347 = vmatpush1.msra.mxu0 0.0
    %3348 = vmatprep.subr.mxu0 0.0
    %3349 = vmatpush1.msra.mxu0 0.0
    %3350 = vmatprep.subr.mxu0 0.0
    %3351 = vmatpush1.msra.mxu0 0.0
    %3352 = vmatprep.subr.mxu0 0.0
    %3353 = vmatpush1.msra.mxu0 0.0
    %3354 = vmatprep.subr.mxu0 0.0
    %3355 = vmatpush1.msra.mxu0 0.0
    %3356 = vmatprep.subr.mxu0 0.0
    %3357 = vmatpush1.msra.mxu0 0.0
    %3358 = vmatprep.subr.mxu0 0.0
    %3359 = vmatpush1.msra.mxu0 0.0
    %3360 = vmatprep.subr.mxu0 0.0
    %3361 = vmatpush1.msra.mxu0 0.0
    %3362 = vmatprep.subr.mxu0 0.0
    %3363 = vmatpush1.msra.mxu0 0.0
    %3364 = vmatprep.subr.mxu0 0.0
    %3365 = vmatpush1.msra.mxu0 0.0
    %3366 = vmatprep.subr.mxu0 0.0
    %3367 = vmatpush1.msra.mxu0 0.0
    %3368 = vmatprep.subr.mxu0 0.0
    %3369 = vmatpush1.msra.mxu0 0.0
    %3370 = vmatprep.subr.mxu0 0.0
    %3371 = vmatpush1.msra.mxu0 0.0
    %3372 = vmatprep.subr.mxu0 0.0
    %3373 = vmatpush1.msra.mxu0 0.0
    %3374 = vmatprep.subr.mxu0 0.0
    %3375 = vmatpush1.msra.mxu0 0.0
    %3376 = vmatprep.subr.mxu0 0.0
    %3377 = vmatpush1.msra.mxu0 0.0
    %3378 = vmatprep.subr.mxu0 0.0
    %3379 = vmatpush1.msra.mxu0 0.0
    %3380 = vmatprep.mubr.f32.mxu0 0.0
    %3381 = vmatmul.mubr.f32.gmra.mrb[0].mxu0 %v2685
    %v3382 = vpop.f32.mrb[0].mxu0
    %v3383 = vadd.f32 0.0, %v3382
    %v3384 = vpop.f32.mrb[0].mxu0
    %v3385 = vadd.f32 0.0, %v3384
    %3386 = vmatprep.mubr.f32.mxu0 0.0
    %3387 = vmatmul.mubr.f32.gmra.mrb[0].mxu0 %v2688
    %v3388 = vpop.f32.mrb[0].mxu0
    %v3389 = vadd.f32 0.0, %v3388
    %v3390 = vpop.f32.mrb[0].mxu0
    %v3391 = vadd.f32 0.0, %v3390
    %3392 = vmatprep.mubr.f32.mxu0 0.0
    %3393 = vmatmul.mubr.f32.gmra.mrb[0].mxu0 %v2691
    %v3394 = vpop.f32.mrb[0].mxu0
    %v3395 = vadd.f32 0.0, %v3394
    %v3396 = vpop.f32.mrb[0].mxu0
    %v3397 = vadd.f32 0.0, %v3396
    %3398 = vmatprep.mubr.f32.mxu0 0.0
    %3399 = vmatmul.mubr.f32.gmra.mrb[0].mxu0 %v2694
    %v3400 = vpop.f32.mrb[0].mxu0
    %v3401 = vadd.f32 0.0, %v3400
    %v3402 = vpop.f32.mrb[0].mxu0
    %v3403 = vadd.f32 0.0, %v3402
    %3404 = vdwg.mxu0
    %v3405 = vadd.f32 %v3308, %v3383
    %v3406 = vadd.f32 %v3312, %v3385
    %v3407 = vadd.f32 %v3309, %v3389
    %v3408 = vadd.f32 %v3313, %v3391
    %v3409 = vadd.f32 %v3310, %v3395
    %v3410 = vadd.f32 %v3314, %v3397
    %v3411 = vadd.f32 %v3311, %v3401
    %v3412 = vadd.f32 %v3315, %v3403
    %v3413 = vsub.f32 0.0, %v3405
    %v3414 = vsub.f32 0.0, %v3406
    %v3415 = vmul.f32 %v3413, 1.442695
    %v3416 = vpow.pop %v3415
    %v3417 = vmul.f32 %v3414, 1.442695
    %v3418 = vpow.pop %v3417
    %v3419 = vadd.f32 %v3416, 1.0
    %v3420 = vadd.f32 %v3418, 1.0
    %v3421 = vrcp.pop %v3419
    %v3422 = vmul.f32 1.0, %v3421
    %v3423 = vrcp.pop %v3420
    %v3424 = vmul.f32 1.0, %v3423
    %v3425 = vsub.f32 0.0, %v3407
    %v3426 = vsub.f32 0.0, %v3408
    %v3427 = vmul.f32 %v3425, 1.442695
    %v3428 = vpow.pop %v3427
    %v3429 = vmul.f32 %v3426, 1.442695
    %v3430 = vpow.pop %v3429
    %v3431 = vadd.f32 %v3428, 1.0
    %v3432 = vadd.f32 %v3430, 1.0
    %v3433 = vrcp.pop %v3431
    %v3434 = vmul.f32 1.0, %v3433
    %v3435 = vrcp.pop %v3432
    %v3436 = vmul.f32 1.0, %v3435
    %v3437 = vtanh.pop %v3409
    %v3438 = vtanh.pop %v3410
    %v3439 = vsub.f32 0.0, %v3411
    %v3440 = vsub.f32 0.0, %v3412
    %v3441 = vmul.f32 %v3439, 1.442695
    %v3442 = vpow.pop %v3441
    %v3443 = vmul.f32 %v3440, 1.442695
    %v3444 = vpow.pop %v3443
    %v3445 = vadd.f32 %v3442, 1.0
    %v3446 = vadd.f32 %v3444, 1.0
    %v3447 = vrcp.pop %v3445
    %v3448 = vmul.f32 1.0, %v3447
    %v3449 = vrcp.pop %v3446
    %v3450 = vmul.f32 1.0, %v3449
    %v3451 = vmul.f32 %v3434, %v3300
    %v3452 = vmul.f32 %v3436, %v3301
    %v3453 = vmul.f32 %v3422, %v3437
    %v3454 = vmul.f32 %v3424, %v3438
    %v3455 = vadd.f32 %v3451, %v3453
    %v3456 = vadd.f32 %v3452, %v3454
    %v3457 = vtanh.pop %v3455
    %v3458 = vtanh.pop %v3456
    %v3459 = vmul.f32 %v3448, %v3457
    %v3460 = vmul.f32 %v3450, %v3458
    %3461 = vst [vmem:[#allocation2 + $0x20] sm:$0xff] %v3459
    %3462 = vst [vmem:[#allocation2 + $0x58] sm:$0xff] %v3460
    %v3463 = vld [vmem:[#allocation3 + $0x20] sm:$0xff]
    %v3464 = vld [vmem:[#allocation3 + $0x60] sm:$0xff]
    %v3465 = vld [vmem:[#allocation3 + $0xa0] sm:$0xff]
    %v3466 = vld [vmem:[#allocation3 + $0xe0] sm:$0xff]
    %v3467 = vld [vmem:[#allocation3 + $0x18] sm:$0xff]
    %v3468 = vld [vmem:[#allocation3 + $0x58] sm:$0xff]
    %v3469 = vld [vmem:[#allocation3 + $0x98] sm:$0xff]
    %v3470 = vld [vmem:[#allocation3 + $0xd8] sm:$0xff]
    %3471 = vmatprep.subr.mxu0 %v3460
    %3472 = vmatpush1.msra.mxu0 %v3459
    %3473 = vmatprep.subr.mxu0 0.0
    %3474 = vmatpush1.msra.mxu0 0.0
    %3475 = vmatprep.subr.mxu0 0.0
    %3476 = vmatpush1.msra.mxu0 0.0
    %3477 = vmatprep.subr.mxu0 0.0
    %3478 = vmatpush1.msra.mxu0 0.0
    %3479 = vmatprep.subr.mxu0 0.0
    %3480 = vmatpush1.msra.mxu0 0.0
    %3481 = vmatprep.subr.mxu0 0.0
    %3482 = vmatpush1.msra.mxu0 0.0
    %3483 = vmatprep.subr.mxu0 0.0
    %3484 = vmatpush1.msra.mxu0 0.0
    %3485 = vmatprep.subr.mxu0 0.0
    %3486 = vmatpush1.msra.mxu0 0.0
    %3487 = vmatprep.subr.mxu0 0.0
    %3488 = vmatpush1.msra.mxu0 0.0
    %3489 = vmatprep.subr.mxu0 0.0
    %3490 = vmatpush1.msra.mxu0 0.0
    %3491 = vmatprep.subr.mxu0 0.0
    %3492 = vmatpush1.msra.mxu0 0.0
    %3493 = vmatprep.subr.mxu0 0.0
    %3494 = vmatpush1.msra.mxu0 0.0
    %3495 = vmatprep.subr.mxu0 0.0
    %3496 = vmatpush1.msra.mxu0 0.0
    %3497 = vmatprep.subr.mxu0 0.0
    %3498 = vmatpush1.msra.mxu0 0.0
    %3499 = vmatprep.subr.mxu0 0.0
    %3500 = vmatpush1.msra.mxu0 0.0
    %3501 = vmatprep.subr.mxu0 0.0
    %3502 = vmatpush1.msra.mxu0 0.0
    %3503 = vmatprep.subr.mxu0 0.0
    %3504 = vmatpush1.msra.mxu0 0.0
    %3505 = vmatprep.subr.mxu0 0.0
    %3506 = vmatpush1.msra.mxu0 0.0
    %3507 = vmatprep.subr.mxu0 0.0
    %3508 = vmatpush1.msra.mxu0 0.0
    %3509 = vmatprep.subr.mxu0 0.0
    %3510 = vmatpush1.msra.mxu0 0.0
    %3511 = vmatprep.subr.mxu0 0.0
    %3512 = vmatpush1.msra.mxu0 0.0
    %3513 = vmatprep.subr.mxu0 0.0
    %3514 = vmatpush1.msra.mxu0 0.0
    %3515 = vmatprep.subr.mxu0 0.0
    %3516 = vmatpush1.msra.mxu0 0.0
    %3517 = vmatprep.subr.mxu0 0.0
    %3518 = vmatpush1.msra.mxu0 0.0
    %3519 = vmatprep.subr.mxu0 0.0
    %3520 = vmatpush1.msra.mxu0 0.0
    %3521 = vmatprep.subr.mxu0 0.0
    %3522 = vmatpush1.msra.mxu0 0.0
    %3523 = vmatprep.subr.mxu0 0.0
    %3524 = vmatpush1.msra.mxu0 0.0
    %3525 = vmatprep.subr.mxu0 0.0
    %3526 = vmatpush1.msra.mxu0 0.0
    %3527 = vmatprep.subr.mxu0 0.0
    %3528 = vmatpush1.msra.mxu0 0.0
    %3529 = vmatprep.subr.mxu0 0.0
    %3530 = vmatpush1.msra.mxu0 0.0
    %3531 = vmatprep.subr.mxu0 0.0
    %3532 = vmatpush1.msra.mxu0 0.0
    %3533 = vmatprep.subr.mxu0 0.0
    %3534 = vmatpush1.msra.mxu0 0.0
    %3535 = vmatprep.mubr.f32.mxu0 0.0
    %3536 = vmatmul.mubr.f32.gmra.mrb[0].mxu0 %v2685
    %v3537 = vpop.f32.mrb[0].mxu0
    %v3538 = vadd.f32 0.0, %v3537
    %v3539 = vpop.f32.mrb[0].mxu0
    %v3540 = vadd.f32 0.0, %v3539
    %3541 = vmatprep.mubr.f32.mxu0 0.0
    %3542 = vmatmul.mubr.f32.gmra.mrb[0].mxu0 %v2688
    %v3543 = vpop.f32.mrb[0].mxu0
    %v3544 = vadd.f32 0.0, %v3543
    %v3545 = vpop.f32.mrb[0].mxu0
    %v3546 = vadd.f32 0.0, %v3545
    %3547 = vmatprep.mubr.f32.mxu0 0.0
    %3548 = vmatmul.mubr.f32.gmra.mrb[0].mxu0 %v2691
    %v3549 = vpop.f32.mrb[0].mxu0
    %v3550 = vadd.f32 0.0, %v3549
    %v3551 = vpop.f32.mrb[0].mxu0
    %v3552 = vadd.f32 0.0, %v3551
    %3553 = vmatprep.mubr.f32.mxu0 0.0
    %3554 = vmatmul.mubr.f32.gmra.mrb[0].mxu0 %v2694
    %v3555 = vpop.f32.mrb[0].mxu0
    %v3556 = vadd.f32 0.0, %v3555
    %v3557 = vpop.f32.mrb[0].mxu0
    %v3558 = vadd.f32 0.0, %v3557
    %3559 = vdwg.mxu0
    %v3560 = vadd.f32 %v3463, %v3538
    %v3561 = vadd.f32 %v3467, %v3540
    %v3562 = vadd.f32 %v3464, %v3544
    %v3563 = vadd.f32 %v3468, %v3546
    %v3564 = vadd.f32 %v3465, %v3550
    %v3565 = vadd.f32 %v3469, %v3552
    %v3566 = vadd.f32 %v3466, %v3556
    %v3567 = vadd.f32 %v3470, %v3558
    %v3568 = vsub.f32 0.0, %v3560
    %v3569 = vsub.f32 0.0, %v3561
    %v3570 = vmul.f32 %v3568, 1.442695
    %v3571 = vpow.pop %v3570
    %v3572 = vmul.f32 %v3569, 1.442695
    %v3573 = vpow.pop %v3572
    %v3574 = vadd.f32 %v3571, 1.0
    %v3575 = vadd.f32 %v3573, 1.0
    %v3576 = vrcp.pop %v3574
    %v3577 = vmul.f32 1.0, %v3576
    %v3578 = vrcp.pop %v3575
    %v3579 = vmul.f32 1.0, %v3578
    %v3580 = vsub.f32 0.0, %v3562
    %v3581 = vsub.f32 0.0, %v3563
    %v3582 = vmul.f32 %v3580, 1.442695
    %v3583 = vpow.pop %v3582
    %v3584 = vmul.f32 %v3581, 1.442695
    %v3585 = vpow.pop %v3584
    %v3586 = vadd.f32 %v3583, 1.0
    %v3587 = vadd.f32 %v3585, 1.0
    %v3588 = vrcp.pop %v3586
    %v3589 = vmul.f32 1.0, %v3588
    %v3590 = vrcp.pop %v3587
    %v3591 = vmul.f32 1.0, %v3590
    %v3592 = vtanh.pop %v3564
    %v3593 = vtanh.pop %v3565
    %v3594 = vsub.f32 0.0, %v3566
    %v3595 = vsub.f32 0.0, %v3567
    %v3596 = vmul.f32 %v3594, 1.442695
    %v3597 = vpow.pop %v3596
    %v3598 = vmul.f32 %v3595, 1.442695
    %v3599 = vpow.pop %v3598
    %v3600 = vadd.f32 %v3597, 1.0
    %v3601 = vadd.f32 %v3599, 1.0
    %v3602 = vrcp.pop %v3600
    %v3603 = vmul.f32 1.0, %v3602
    %v3604 = vrcp.pop %v3601
    %v3605 = vmul.f32 1.0, %v3604
    %v3606 = vmul.f32 %v3589, %v3455
    %v3607 = vmul.f32 %v3591, %v3456
    %v3608 = vmul.f32 %v3577, %v3592
    %v3609 = vmul.f32 %v3579, %v3593
    %v3610 = vadd.f32 %v3606, %v3608
    %v3611 = vadd.f32 %v3607, %v3609
    %v3612 = vtanh.pop %v3610
    %v3613 = vtanh.pop %v3611
    %v3614 = vmul.f32 %v3603, %v3612
    %v3615 = vmul.f32 %v3605, %v3613
    %3616 = vst [vmem:[#allocation2 + $0x28] sm:$0xff] %v3614
    %3617 = vst [vmem:[#allocation2 + $0x50] sm:$0xff] %v3615
    %v3618 = vld [vmem:[#allocation3 + $0x28] sm:$0xff]
    %v3619 = vld [vmem:[#allocation3 + $0x68] sm:$0xff]
    %v3620 = vld [vmem:[#allocation3 + $0xa8] sm:$0xff]
    %v3621 = vld [vmem:[#allocation3 + $0xe8] sm:$0xff]
    %v3622 = vld [vmem:[#allocation3 + $0x10] sm:$0xff]
    %v3623 = vld [vmem:[#allocation3 + $0x50] sm:$0xff]
    %v3624 = vld [vmem:[#allocation3 + $0x90] sm:$0xff]
    %v3625 = vld [vmem:[#allocation3 + $0xd0] sm:$0xff]
    %3626 = vmatprep.subr.mxu0 %v3615
    %3627 = vmatpush1.msra.mxu0 %v3614
    %3628 = vmatprep.subr.mxu0 0.0
    %3629 = vmatpush1.msra.mxu0 0.0
    %3630 = vmatprep.subr.mxu0 0.0
    %3631 = vmatpush1.msra.mxu0 0.0
    %3632 = vmatprep.subr.mxu0 0.0
    %3633 = vmatpush1.msra.mxu0 0.0
    %3634 = vmatprep.subr.mxu0 0.0
    %3635 = vmatpush1.msra.mxu0 0.0
    %3636 = vmatprep.subr.mxu0 0.0
    %3637 = vmatpush1.msra.mxu0 0.0
    %3638 = vmatprep.subr.mxu0 0.0
    %3639 = vmatpush1.msra.mxu0 0.0
    %3640 = vmatprep.subr.mxu0 0.0
    %3641 = vmatpush1.msra.mxu0 0.0
    %3642 = vmatprep.subr.mxu0 0.0
    %3643 = vmatpush1.msra.mxu0 0.0
    %3644 = vmatprep.subr.mxu0 0.0
    %3645 = vmatpush1.msra.mxu0 0.0
    %3646 = vmatprep.subr.mxu0 0.0
    %3647 = vmatpush1.msra.mxu0 0.0
    %3648 = vmatprep.subr.mxu0 0.0
    %3649 = vmatpush1.msra.mxu0 0.0
    %3650 = vmatprep.subr.mxu0 0.0
    %3651 = vmatpush1.msra.mxu0 0.0
    %3652 = vmatprep.subr.mxu0 0.0
    %3653 = vmatpush1.msra.mxu0 0.0
    %3654 = vmatprep.subr.mxu0 0.0
    %3655 = vmatpush1.msra.mxu0 0.0
    %3656 = vmatprep.subr.mxu0 0.0
    %3657 = vmatpush1.msra.mxu0 0.0
    %3658 = vmatprep.subr.mxu0 0.0
    %3659 = vmatpush1.msra.mxu0 0.0
    %3660 = vmatprep.subr.mxu0 0.0
    %3661 = vmatpush1.msra.mxu0 0.0
    %3662 = vmatprep.subr.mxu0 0.0
    %3663 = vmatpush1.msra.mxu0 0.0
    %3664 = vmatprep.subr.mxu0 0.0
    %3665 = vmatpush1.msra.mxu0 0.0
    %3666 = vmatprep.subr.mxu0 0.0
    %3667 = vmatpush1.msra.mxu0 0.0
    %3668 = vmatprep.subr.mxu0 0.0
    %3669 = vmatpush1.msra.mxu0 0.0
    %3670 = vmatprep.subr.mxu0 0.0
    %3671 = vmatpush1.msra.mxu0 0.0
    %3672 = vmatprep.subr.mxu0 0.0
    %3673 = vmatpush1.msra.mxu0 0.0
    %3674 = vmatprep.subr.mxu0 0.0
    %3675 = vmatpush1.msra.mxu0 0.0
    %3676 = vmatprep.subr.mxu0 0.0
    %3677 = vmatpush1.msra.mxu0 0.0
    %3678 = vmatprep.subr.mxu0 0.0
    %3679 = vmatpush1.msra.mxu0 0.0
    %3680 = vmatprep.subr.mxu0 0.0
    %3681 = vmatpush1.msra.mxu0 0.0
    %3682 = vmatprep.subr.mxu0 0.0
    %3683 = vmatpush1.msra.mxu0 0.0
    %3684 = vmatprep.subr.mxu0 0.0
    %3685 = vmatpush1.msra.mxu0 0.0
    %3686 = vmatprep.subr.mxu0 0.0
    %3687 = vmatpush1.msra.mxu0 0.0
    %3688 = vmatprep.subr.mxu0 0.0
    %3689 = vmatpush1.msra.mxu0 0.0
    %3690 = vmatprep.mubr.f32.mxu0 0.0
    %3691 = vmatmul.mubr.f32.gmra.mrb[0].mxu0 %v2685
    %v3692 = vpop.f32.mrb[0].mxu0
    %v3693 = vadd.f32 0.0, %v3692
    %v3694 = vpop.f32.mrb[0].mxu0
    %v3695 = vadd.f32 0.0, %v3694
    %3696 = vmatprep.mubr.f32.mxu0 0.0
    %3697 = vmatmul.mubr.f32.gmra.mrb[0].mxu0 %v2688
    %v3698 = vpop.f32.mrb[0].mxu0
    %v3699 = vadd.f32 0.0, %v3698
    %v3700 = vpop.f32.mrb[0].mxu0
    %v3701 = vadd.f32 0.0, %v3700
    %3702 = vmatprep.mubr.f32.mxu0 0.0
    %3703 = vmatmul.mubr.f32.gmra.mrb[0].mxu0 %v2691
    %v3704 = vpop.f32.mrb[0].mxu0
    %v3705 = vadd.f32 0.0, %v3704
    %v3706 = vpop.f32.mrb[0].mxu0
    %v3707 = vadd.f32 0.0, %v3706
    %3708 = vmatprep.mubr.f32.mxu0 0.0
    %3709 = vmatmul.mubr.f32.gmra.mrb[0].mxu0 %v2694
    %v3710 = vpop.f32.mrb[0].mxu0
    %v3711 = vadd.f32 0.0, %v3710
    %v3712 = vpop.f32.mrb[0].mxu0
    %v3713 = vadd.f32 0.0, %v3712
    %3714 = vdwg.mxu0
    %v3715 = vadd.f32 %v3618, %v3693
    %v3716 = vadd.f32 %v3622, %v3695
    %v3717 = vadd.f32 %v3619, %v3699
    %v3718 = vadd.f32 %v3623, %v3701
    %v3719 = vadd.f32 %v3620, %v3705
    %v3720 = vadd.f32 %v3624, %v3707
    %v3721 = vadd.f32 %v3621, %v3711
    %v3722 = vadd.f32 %v3625, %v3713
    %v3723 = vsub.f32 0.0, %v3715
    %v3724 = vsub.f32 0.0, %v3716
    %v3725 = vmul.f32 %v3723, 1.442695
    %v3726 = vpow.pop %v3725
    %v3727 = vmul.f32 %v3724, 1.442695
    %v3728 = vpow.pop %v3727
    %v3729 = vadd.f32 %v3726, 1.0
    %v3730 = vadd.f32 %v3728, 1.0
    %v3731 = vrcp.pop %v3729
    %v3732 = vmul.f32 1.0, %v3731
    %v3733 = vrcp.pop %v3730
    %v3734 = vmul.f32 1.0, %v3733
    %v3735 = vsub.f32 0.0, %v3717
    %v3736 = vsub.f32 0.0, %v3718
    %v3737 = vmul.f32 %v3735, 1.442695
    %v3738 = vpow.pop %v3737
    %v3739 = vmul.f32 %v3736, 1.442695
    %v3740 = vpow.pop %v3739
    %v3741 = vadd.f32 %v3738, 1.0
    %v3742 = vadd.f32 %v3740, 1.0
    %v3743 = vrcp.pop %v3741
    %v3744 = vmul.f32 1.0, %v3743
    %v3745 = vrcp.pop %v3742
    %v3746 = vmul.f32 1.0, %v3745
    %v3747 = vtanh.pop %v3719
    %v3748 = vtanh.pop %v3720
    %v3749 = vsub.f32 0.0, %v3721
    %v3750 = vsub.f32 0.0, %v3722
    %v3751 = vmul.f32 %v3749, 1.442695
    %v3752 = vpow.pop %v3751
    %v3753 = vmul.f32 %v3750, 1.442695
    %v3754 = vpow.pop %v3753
    %v3755 = vadd.f32 %v3752, 1.0
    %v3756 = vadd.f32 %v3754, 1.0
    %v3757 = vrcp.pop %v3755
    %v3758 = vmul.f32 1.0, %v3757
    %v3759 = vrcp.pop %v3756
    %v3760 = vmul.f32 1.0, %v3759
    %v3761 = vmul.f32 %v3744, %v3610
    %v3762 = vmul.f32 %v3746, %v3611
    %v3763 = vmul.f32 %v3732, %v3747
    %v3764 = vmul.f32 %v3734, %v3748
    %v3765 = vadd.f32 %v3761, %v3763
    %v3766 = vadd.f32 %v3762, %v3764
    %v3767 = vtanh.pop %v3765
    %v3768 = vtanh.pop %v3766
    %v3769 = vmul.f32 %v3758, %v3767
    %v3770 = vmul.f32 %v3760, %v3768
    %3771 = vst [vmem:[#allocation2 + $0x30] sm:$0xff] %v3769
    %3772 = vst [vmem:[#allocation2 + $0x48] sm:$0xff] %v3770
    %v3773 = vld [vmem:[#allocation3 + $0x30] sm:$0xff]
    %v3774 = vld [vmem:[#allocation3 + $0x70] sm:$0xff]
    %v3775 = vld [vmem:[#allocation3 + $0xb0] sm:$0xff]
    %v3776 = vld [vmem:[#allocation3 + $0xf0] sm:$0xff]
    %v3777 = vld [vmem:[#allocation3 + $0x8] sm:$0xff]
    %v3778 = vld [vmem:[#allocation3 + $0x48] sm:$0xff]
    %v3779 = vld [vmem:[#allocation3 + $0x88] sm:$0xff]
    %v3780 = vld [vmem:[#allocation3 + $0xc8] sm:$0xff]
    %3781 = vmatprep.subr.mxu0 %v3770
    %3782 = vmatpush1.msra.mxu0 %v3769
    %3783 = vmatprep.subr.mxu0 0.0
    %3784 = vmatpush1.msra.mxu0 0.0
    %3785 = vmatprep.subr.mxu0 0.0
    %3786 = vmatpush1.msra.mxu0 0.0
    %3787 = vmatprep.subr.mxu0 0.0
    %3788 = vmatpush1.msra.mxu0 0.0
    %3789 = vmatprep.subr.mxu0 0.0
    %3790 = vmatpush1.msra.mxu0 0.0
    %3791 = vmatprep.subr.mxu0 0.0
    %3792 = vmatpush1.msra.mxu0 0.0
    %3793 = vmatprep.subr.mxu0 0.0
    %3794 = vmatpush1.msra.mxu0 0.0
    %3795 = vmatprep.subr.mxu0 0.0
    %3796 = vmatpush1.msra.mxu0 0.0
    %3797 = vmatprep.subr.mxu0 0.0
    %3798 = vmatpush1.msra.mxu0 0.0
    %3799 = vmatprep.subr.mxu0 0.0
    %3800 = vmatpush1.msra.mxu0 0.0
    %3801 = vmatprep.subr.mxu0 0.0
    %3802 = vmatpush1.msra.mxu0 0.0
    %3803 = vmatprep.subr.mxu0 0.0
    %3804 = vmatpush1.msra.mxu0 0.0
    %3805 = vmatprep.subr.mxu0 0.0
    %3806 = vmatpush1.msra.mxu0 0.0
    %3807 = vmatprep.subr.mxu0 0.0
    %3808 = vmatpush1.msra.mxu0 0.0
    %3809 = vmatprep.subr.mxu0 0.0
    %3810 = vmatpush1.msra.mxu0 0.0
    %3811 = vmatprep.subr.mxu0 0.0
    %3812 = vmatpush1.msra.mxu0 0.0
    %3813 = vmatprep.subr.mxu0 0.0
    %3814 = vmatpush1.msra.mxu0 0.0
    %3815 = vmatprep.subr.mxu0 0.0
    %3816 = vmatpush1.msra.mxu0 0.0
    %3817 = vmatprep.subr.mxu0 0.0
    %3818 = vmatpush1.msra.mxu0 0.0
    %3819 = vmatprep.subr.mxu0 0.0
    %3820 = vmatpush1.msra.mxu0 0.0
    %3821 = vmatprep.subr.mxu0 0.0
    %3822 = vmatpush1.msra.mxu0 0.0
    %3823 = vmatprep.subr.mxu0 0.0
    %3824 = vmatpush1.msra.mxu0 0.0
    %3825 = vmatprep.subr.mxu0 0.0
    %3826 = vmatpush1.msra.mxu0 0.0
    %3827 = vmatprep.subr.mxu0 0.0
    %3828 = vmatpush1.msra.mxu0 0.0
    %3829 = vmatprep.subr.mxu0 0.0
    %3830 = vmatpush1.msra.mxu0 0.0
    %3831 = vmatprep.subr.mxu0 0.0
    %3832 = vmatpush1.msra.mxu0 0.0
    %3833 = vmatprep.subr.mxu0 0.0
    %3834 = vmatpush1.msra.mxu0 0.0
    %3835 = vmatprep.subr.mxu0 0.0
    %3836 = vmatpush1.msra.mxu0 0.0
    %3837 = vmatprep.subr.mxu0 0.0
    %3838 = vmatpush1.msra.mxu0 0.0
    %3839 = vmatprep.subr.mxu0 0.0
    %3840 = vmatpush1.msra.mxu0 0.0
    %3841 = vmatprep.subr.mxu0 0.0
    %3842 = vmatpush1.msra.mxu0 0.0
    %3843 = vmatprep.subr.mxu0 0.0
    %3844 = vmatpush1.msra.mxu0 0.0
    %3845 = vmatprep.mubr.f32.mxu0 0.0
    %3846 = vmatmul.mubr.f32.gmra.mrb[0].mxu0 %v2685
    %v3847 = vpop.f32.mrb[0].mxu0
    %v3848 = vadd.f32 0.0, %v3847
    %v3849 = vpop.f32.mrb[0].mxu0
    %v3850 = vadd.f32 0.0, %v3849
    %3851 = vmatprep.mubr.f32.mxu0 0.0
    %3852 = vmatmul.mubr.f32.gmra.mrb[0].mxu0 %v2688
    %v3853 = vpop.f32.mrb[0].mxu0
    %v3854 = vadd.f32 0.0, %v3853
    %v3855 = vpop.f32.mrb[0].mxu0
    %v3856 = vadd.f32 0.0, %v3855
    %3857 = vmatprep.mubr.f32.mxu0 0.0
    %3858 = vmatmul.mubr.f32.gmra.mrb[0].mxu0 %v2691
    %v3859 = vpop.f32.mrb[0].mxu0
    %v3860 = vadd.f32 0.0, %v3859
    %v3861 = vpop.f32.mrb[0].mxu0
    %v3862 = vadd.f32 0.0, %v3861
    %3863 = vmatprep.mubr.f32.mxu0 0.0
    %3864 = vmatmul.mubr.f32.gmra.mrb[0].mxu0 %v2694
    %v3865 = vpop.f32.mrb[0].mxu0
    %v3866 = vadd.f32 0.0, %v3865
    %v3867 = vpop.f32.mrb[0].mxu0
    %v3868 = vadd.f32 0.0, %v3867
    %3869 = vdwg.mxu0
    %v3870 = vadd.f32 %v3773, %v3848
    %v3871 = vadd.f32 %v3777, %v3850
    %v3872 = vadd.f32 %v3774, %v3854
    %v3873 = vadd.f32 %v3778, %v3856
    %v3874 = vadd.f32 %v3775, %v3860
    %v3875 = vadd.f32 %v3779, %v3862
    %v3876 = vadd.f32 %v3776, %v3866
    %v3877 = vadd.f32 %v3780, %v3868
    %v3878 = vsub.f32 0.0, %v3870
    %v3879 = vsub.f32 0.0, %v3871
    %v3880 = vmul.f32 %v3878, 1.442695
    %v3881 = vpow.pop %v3880
    %v3882 = vmul.f32 %v3879, 1.442695
    %v3883 = vpow.pop %v3882
    %v3884 = vadd.f32 %v3881, 1.0
    %v3885 = vadd.f32 %v3883, 1.0
    %v3886 = vrcp.pop %v3884
    %v3887 = vmul.f32 1.0, %v3886
    %v3888 = vrcp.pop %v3885
    %v3889 = vmul.f32 1.0, %v3888
    %v3890 = vsub.f32 0.0, %v3872
    %v3891 = vsub.f32 0.0, %v3873
    %v3892 = vmul.f32 %v3890, 1.442695
    %v3893 = vpow.pop %v3892
    %v3894 = vmul.f32 %v3891, 1.442695
    %v3895 = vpow.pop %v3894
    %v3896 = vadd.f32 %v3893, 1.0
    %v3897 = vadd.f32 %v3895, 1.0
    %v3898 = vrcp.pop %v3896
    %v3899 = vmul.f32 1.0, %v3898
    %v3900 = vrcp.pop %v3897
    %v3901 = vmul.f32 1.0, %v3900
    %v3902 = vtanh.pop %v3874
    %v3903 = vtanh.pop %v3875
    %v3904 = vsub.f32 0.0, %v3876
    %v3905 = vsub.f32 0.0, %v3877
    %v3906 = vmul.f32 %v3904, 1.442695
    %v3907 = vpow.pop %v3906
    %v3908 = vmul.f32 %v3905, 1.442695
    %v3909 = vpow.pop %v3908
    %v3910 = vadd.f32 %v3907, 1.0
    %v3911 = vadd.f32 %v3909, 1.0
    %v3912 = vrcp.pop %v3910
    %v3913 = vmul.f32 1.0, %v3912
    %v3914 = vrcp.pop %v3911
    %v3915 = vmul.f32 1.0, %v3914
    %v3916 = vmul.f32 %v3899, %v3765
    %v3917 = vmul.f32 %v3901, %v3766
    %v3918 = vmul.f32 %v3887, %v3902
    %v3919 = vmul.f32 %v3889, %v3903
    %v3920 = vadd.f32 %v3916, %v3918
    %v3921 = vadd.f32 %v3917, %v3919
    %v3922 = vtanh.pop %v3920
    %v3923 = vtanh.pop %v3921
    %v3924 = vmul.f32 %v3913, %v3922
    %v3925 = vmul.f32 %v3915, %v3923
    %3926 = vst [vmem:[#allocation2 + $0x38] sm:$0xff] %v3924
    %3927 = vst [vmem:[#allocation2 + $0x40] sm:$0xff] %v3925
    %v3928 = vld [vmem:[#allocation2] sm:$0xff]
    %v3929 = vld [vmem:[#allocation2 + $0x8] sm:$0xff]
    %v3930 = vld [vmem:[#allocation2 + $0x10] sm:$0xff]
    %v3931 = vld [vmem:[#allocation2 + $0x18] sm:$0xff]
    %v3932 = vld [vmem:[#allocation2 + $0x20] sm:$0xff]
    %v3933 = vld [vmem:[#allocation2 + $0x28] sm:$0xff]
    %v3934 = vld [vmem:[#allocation2 + $0x30] sm:$0xff]
    %v3935 = vld [vmem:[#allocation2 + $0x38] sm:$0xff]
    %v3936 = vld [vmem:[#allocation2 + $0x40] sm:$0xff]
    %v3937 = vld [vmem:[#allocation2 + $0x48] sm:$0xff]
    %v3938 = vld [vmem:[#allocation2 + $0x50] sm:$0xff]
    %v3939 = vld [vmem:[#allocation2 + $0x58] sm:$0xff]
    %v3940 = vld [vmem:[#allocation2 + $0x60] sm:$0xff]
    %v3941 = vld [vmem:[#allocation2 + $0x68] sm:$0xff]
    %v3942 = vld [vmem:[#allocation2 + $0x70] sm:$0xff]
    %v3943 = vld [vmem:[#allocation2 + $0x78] sm:$0xff]
    %v3944 = vld [vmem:[%s8] sm:$0xff]
    %v3945 = vld [vmem:[%s8 + $0x8] sm:$0xff]
    %v3947 = vsel %vm181, %v3944, 0
    %v3950 = vsel %vm181, %v3945, 0
    %3952 = vmatprep.subr.mxu0 %v3929
    %3953 = vmatpush1.msra.mxu0 %v3928
    %3954 = vmatprep.subr.mxu0 %v3937
    %3955 = vmatpush1.msra.mxu0 %v3936
    %3956 = vmatprep.subr.mxu0 0.0
    %3957 = vmatpush1.msra.mxu0 0.0
    %3958 = vmatprep.subr.mxu0 0.0
    %3959 = vmatpush1.msra.mxu0 0.0
    %3960 = vmatprep.subr.mxu0 0.0
    %3961 = vmatpush1.msra.mxu0 0.0
    %3962 = vmatprep.subr.mxu0 0.0
    %3963 = vmatpush1.msra.mxu0 0.0
    %3964 = vmatprep.subr.mxu0 0.0
    %3965 = vmatpush1.msra.mxu0 0.0
    %3966 = vmatprep.subr.mxu0 0.0
    %3967 = vmatpush1.msra.mxu0 0.0
    %3968 = vmatprep.subr.mxu0 0.0
    %3969 = vmatpush1.msra.mxu0 0.0
    %3970 = vmatprep.subr.mxu0 0.0
    %3971 = vmatpush1.msra.mxu0 0.0
    %3972 = vmatprep.subr.mxu0 0.0
    %3973 = vmatpush1.msra.mxu0 0.0
    %3974 = vmatprep.subr.mxu0 0.0
    %3975 = vmatpush1.msra.mxu0 0.0
    %3976 = vmatprep.subr.mxu0 0.0
    %3977 = vmatpush1.msra.mxu0 0.0
    %3978 = vmatprep.subr.mxu0 0.0
    %3979 = vmatpush1.msra.mxu0 0.0
    %3980 = vmatprep.subr.mxu0 0.0
    %3981 = vmatpush1.msra.mxu0 0.0
    %3982 = vmatprep.subr.mxu0 0.0
    %3983 = vmatpush1.msra.mxu0 0.0
    %3984 = vmatprep.subr.mxu0 0.0
    %3985 = vmatpush1.msra.mxu0 0.0
    %3986 = vmatprep.subr.mxu0 0.0
    %3987 = vmatpush1.msra.mxu0 0.0
    %3988 = vmatprep.subr.mxu0 0.0
    %3989 = vmatpush1.msra.mxu0 0.0
    %3990 = vmatprep.subr.mxu0 0.0
    %3991 = vmatpush1.msra.mxu0 0.0
    %3992 = vmatprep.subr.mxu0 0.0
    %3993 = vmatpush1.msra.mxu0 0.0
    %3994 = vmatprep.subr.mxu0 0.0
    %3995 = vmatpush1.msra.mxu0 0.0
    %3996 = vmatprep.subr.mxu0 0.0
    %3997 = vmatpush1.msra.mxu0 0.0
    %3998 = vmatprep.subr.mxu0 0.0
    %3999 = vmatpush1.msra.mxu0 0.0
    %4000 = vmatprep.subr.mxu0 0.0
    %4001 = vmatpush1.msra.mxu0 0.0
    %4002 = vmatprep.subr.mxu0 0.0
    %4003 = vmatpush1.msra.mxu0 0.0
    %4004 = vmatprep.subr.mxu0 0.0
    %4005 = vmatpush1.msra.mxu0 0.0
    %4006 = vmatprep.subr.mxu0 0.0
    %4007 = vmatpush1.msra.mxu0 0.0
    %4008 = vmatprep.subr.mxu0 0.0
    %4009 = vmatpush1.msra.mxu0 0.0
    %4010 = vmatprep.subr.mxu0 0.0
    %4011 = vmatpush1.msra.mxu0 0.0
    %4012 = vmatprep.subr.mxu0 0.0
    %4013 = vmatpush1.msra.mxu0 0.0
    %4014 = vmatprep.subr.mxu0 0.0
    %4015 = vmatpush1.msra.mxu0 0.0
    %4016 = vmatprep.mubr.f32.mxu0 0.0
    %4017 = vmatmul.mubr.f32.gmra.mrb[0].mxu0 %v3947
    %v4018 = vpop.f32.mrb[0].mxu0
    %v4019 = vadd.f32 %v1635, %v4018
    %v4020 = vpop.f32.mrb[0].mxu0
    %v4021 = vadd.f32 %v1635, %v4020
    %4022 = vmatprep.mubr.f32.mxu0 0.0
    %4023 = vmatmul.mubr.f32.gmra.mrb[0].mxu0 %v3950
    %v4024 = vpop.f32.mrb[0].mxu0
    %v4025 = vadd.f32 %v1640, %v4024
    %v4026 = vpop.f32.mrb[0].mxu0
    %v4027 = vadd.f32 %v1640, %v4026
    %4028 = vdwg.mxu0
    %4029 = vmatprep.subr.mxu0 %v3931
    %4030 = vmatpush1.msra.mxu0 %v3930
    %4031 = vmatprep.subr.mxu0 %v3939
    %4032 = vmatpush1.msra.mxu0 %v3938
    %4033 = vmatprep.subr.mxu0 0.0
    %4034 = vmatpush1.msra.mxu0 0.0
    %4035 = vmatprep.subr.mxu0 0.0
    %4036 = vmatpush1.msra.mxu0 0.0
    %4037 = vmatprep.subr.mxu0 0.0
    %4038 = vmatpush1.msra.mxu0 0.0
    %4039 = vmatprep.subr.mxu0 0.0
    %4040 = vmatpush1.msra.mxu0 0.0
    %4041 = vmatprep.subr.mxu0 0.0
    %4042 = vmatpush1.msra.mxu0 0.0
    %4043 = vmatprep.subr.mxu0 0.0
    %4044 = vmatpush1.msra.mxu0 0.0
    %4045 = vmatprep.subr.mxu0 0.0
    %4046 = vmatpush1.msra.mxu0 0.0
    %4047 = vmatprep.subr.mxu0 0.0
    %4048 = vmatpush1.msra.mxu0 0.0
    %4049 = vmatprep.subr.mxu0 0.0
    %4050 = vmatpush1.msra.mxu0 0.0
    %4051 = vmatprep.subr.mxu0 0.0
    %4052 = vmatpush1.msra.mxu0 0.0
    %4053 = vmatprep.subr.mxu0 0.0
    %4054 = vmatpush1.msra.mxu0 0.0
    %4055 = vmatprep.subr.mxu0 0.0
    %4056 = vmatpush1.msra.mxu0 0.0
    %4057 = vmatprep.subr.mxu0 0.0
    %4058 = vmatpush1.msra.mxu0 0.0
    %4059 = vmatprep.subr.mxu0 0.0
    %4060 = vmatpush1.msra.mxu0 0.0
    %4061 = vmatprep.subr.mxu0 0.0
    %4062 = vmatpush1.msra.mxu0 0.0
    %4063 = vmatprep.subr.mxu0 0.0
    %4064 = vmatpush1.msra.mxu0 0.0
    %4065 = vmatprep.subr.mxu0 0.0
    %4066 = vmatpush1.msra.mxu0 0.0
    %4067 = vmatprep.subr.mxu0 0.0
    %4068 = vmatpush1.msra.mxu0 0.0
    %4069 = vmatprep.subr.mxu0 0.0
    %4070 = vmatpush1.msra.mxu0 0.0
    %4071 = vmatprep.subr.mxu0 0.0
    %4072 = vmatpush1.msra.mxu0 0.0
    %4073 = vmatprep.subr.mxu0 0.0
    %4074 = vmatpush1.msra.mxu0 0.0
    %4075 = vmatprep.subr.mxu0 0.0
    %4076 = vmatpush1.msra.mxu0 0.0
    %4077 = vmatprep.subr.mxu0 0.0
    %4078 = vmatpush1.msra.mxu0 0.0
    %4079 = vmatprep.subr.mxu0 0.0
    %4080 = vmatpush1.msra.mxu0 0.0
    %4081 = vmatprep.subr.mxu0 0.0
    %4082 = vmatpush1.msra.mxu0 0.0
    %4083 = vmatprep.subr.mxu0 0.0
    %4084 = vmatpush1.msra.mxu0 0.0
    %4085 = vmatprep.subr.mxu0 0.0
    %4086 = vmatpush1.msra.mxu0 0.0
    %4087 = vmatprep.subr.mxu0 0.0
    %4088 = vmatpush1.msra.mxu0 0.0
    %4089 = vmatprep.subr.mxu0 0.0
    %4090 = vmatpush1.msra.mxu0 0.0
    %4091 = vmatprep.subr.mxu0 0.0
    %4092 = vmatpush1.msra.mxu0 0.0
    %4093 = vmatprep.mubr.f32.mxu0 0.0
    %4094 = vmatmul.mubr.f32.gmra.mrb[0].mxu0 %v3947
    %v4095 = vpop.f32.mrb[0].mxu0
    %v4096 = vadd.f32 %v1635, %v4095
    %v4097 = vpop.f32.mrb[0].mxu0
    %v4098 = vadd.f32 %v1635, %v4097
    %4099 = vmatprep.mubr.f32.mxu0 0.0
    %4100 = vmatmul.mubr.f32.gmra.mrb[0].mxu0 %v3950
    %v4101 = vpop.f32.mrb[0].mxu0
    %v4102 = vadd.f32 %v1640, %v4101
    %v4103 = vpop.f32.mrb[0].mxu0
    %v4104 = vadd.f32 %v1640, %v4103
    %4105 = vdwg.mxu0
    %4106 = vmatprep.subr.mxu0 %v3933
    %4107 = vmatpush1.msra.mxu0 %v3932
    %4108 = vmatprep.subr.mxu0 %v3941
    %4109 = vmatpush1.msra.mxu0 %v3940
    %4110 = vmatprep.subr.mxu0 0.0
    %4111 = vmatpush1.msra.mxu0 0.0
    %4112 = vmatprep.subr.mxu0 0.0
    %4113 = vmatpush1.msra.mxu0 0.0
    %4114 = vmatprep.subr.mxu0 0.0
    %4115 = vmatpush1.msra.mxu0 0.0
    %4116 = vmatprep.subr.mxu0 0.0
    %4117 = vmatpush1.msra.mxu0 0.0
    %4118 = vmatprep.subr.mxu0 0.0
    %4119 = vmatpush1.msra.mxu0 0.0
    %4120 = vmatprep.subr.mxu0 0.0
    %4121 = vmatpush1.msra.mxu0 0.0
    %4122 = vmatprep.subr.mxu0 0.0
    %4123 = vmatpush1.msra.mxu0 0.0
    %4124 = vmatprep.subr.mxu0 0.0
    %4125 = vmatpush1.msra.mxu0 0.0
    %4126 = vmatprep.subr.mxu0 0.0
    %4127 = vmatpush1.msra.mxu0 0.0
    %4128 = vmatprep.subr.mxu0 0.0
    %4129 = vmatpush1.msra.mxu0 0.0
    %4130 = vmatprep.subr.mxu0 0.0
    %4131 = vmatpush1.msra.mxu0 0.0
    %4132 = vmatprep.subr.mxu0 0.0
    %4133 = vmatpush1.msra.mxu0 0.0
    %4134 = vmatprep.subr.mxu0 0.0
    %4135 = vmatpush1.msra.mxu0 0.0
    %4136 = vmatprep.subr.mxu0 0.0
    %4137 = vmatpush1.msra.mxu0 0.0
    %4138 = vmatprep.subr.mxu0 0.0
    %4139 = vmatpush1.msra.mxu0 0.0
    %4140 = vmatprep.subr.mxu0 0.0
    %4141 = vmatpush1.msra.mxu0 0.0
    %4142 = vmatprep.subr.mxu0 0.0
    %4143 = vmatpush1.msra.mxu0 0.0
    %4144 = vmatprep.subr.mxu0 0.0
    %4145 = vmatpush1.msra.mxu0 0.0
    %4146 = vmatprep.subr.mxu0 0.0
    %4147 = vmatpush1.msra.mxu0 0.0
    %4148 = vmatprep.subr.mxu0 0.0
    %4149 = vmatpush1.msra.mxu0 0.0
    %4150 = vmatprep.subr.mxu0 0.0
    %4151 = vmatpush1.msra.mxu0 0.0
    %4152 = vmatprep.subr.mxu0 0.0
    %4153 = vmatpush1.msra.mxu0 0.0
    %4154 = vmatprep.subr.mxu0 0.0
    %4155 = vmatpush1.msra.mxu0 0.0
    %4156 = vmatprep.subr.mxu0 0.0
    %4157 = vmatpush1.msra.mxu0 0.0
    %4158 = vmatprep.subr.mxu0 0.0
    %4159 = vmatpush1.msra.mxu0 0.0
    %4160 = vmatprep.subr.mxu0 0.0
    %4161 = vmatpush1.msra.mxu0 0.0
    %4162 = vmatprep.subr.mxu0 0.0
    %4163 = vmatpush1.msra.mxu0 0.0
    %4164 = vmatprep.subr.mxu0 0.0
    %4165 = vmatpush1.msra.mxu0 0.0
    %4166 = vmatprep.subr.mxu0 0.0
    %4167 = vmatpush1.msra.mxu0 0.0
    %4168 = vmatprep.subr.mxu0 0.0
    %4169 = vmatpush1.msra.mxu0 0.0
    %4170 = vmatprep.mubr.f32.mxu0 0.0
    %4171 = vmatmul.mubr.f32.gmra.mrb[0].mxu0 %v3947
    %v4172 = vpop.f32.mrb[0].mxu0
    %v4173 = vadd.f32 %v1635, %v4172
    %v4174 = vpop.f32.mrb[0].mxu0
    %v4175 = vadd.f32 %v1635, %v4174
    %4176 = vmatprep.mubr.f32.mxu0 0.0
    %4177 = vmatmul.mubr.f32.gmra.mrb[0].mxu0 %v3950
    %v4178 = vpop.f32.mrb[0].mxu0
    %v4179 = vadd.f32 %v1640, %v4178
    %v4180 = vpop.f32.mrb[0].mxu0
    %v4181 = vadd.f32 %v1640, %v4180
    %4182 = vdwg.mxu0
    %4183 = vmatprep.subr.mxu0 %v3935
    %4184 = vmatpush1.msra.mxu0 %v3934
    %4185 = vmatprep.subr.mxu0 %v3943
    %4186 = vmatpush1.msra.mxu0 %v3942
    %4187 = vmatprep.subr.mxu0 0.0
    %4188 = vmatpush1.msra.mxu0 0.0
    %4189 = vmatprep.subr.mxu0 0.0
    %4190 = vmatpush1.msra.mxu0 0.0
    %4191 = vmatprep.subr.mxu0 0.0
    %4192 = vmatpush1.msra.mxu0 0.0
    %4193 = vmatprep.subr.mxu0 0.0
    %4194 = vmatpush1.msra.mxu0 0.0
    %4195 = vmatprep.subr.mxu0 0.0
    %4196 = vmatpush1.msra.mxu0 0.0
    %4197 = vmatprep.subr.mxu0 0.0
    %4198 = vmatpush1.msra.mxu0 0.0
    %4199 = vmatprep.subr.mxu0 0.0
    %4200 = vmatpush1.msra.mxu0 0.0
    %4201 = vmatprep.subr.mxu0 0.0
    %4202 = vmatpush1.msra.mxu0 0.0
    %4203 = vmatprep.subr.mxu0 0.0
    %4204 = vmatpush1.msra.mxu0 0.0
    %4205 = vmatprep.subr.mxu0 0.0
    %4206 = vmatpush1.msra.mxu0 0.0
    %4207 = vmatprep.subr.mxu0 0.0
    %4208 = vmatpush1.msra.mxu0 0.0
    %4209 = vmatprep.subr.mxu0 0.0
    %4210 = vmatpush1.msra.mxu0 0.0
    %4211 = vmatprep.subr.mxu0 0.0
    %4212 = vmatpush1.msra.mxu0 0.0
    %4213 = vmatprep.subr.mxu0 0.0
    %4214 = vmatpush1.msra.mxu0 0.0
    %4215 = vmatprep.subr.mxu0 0.0
    %4216 = vmatpush1.msra.mxu0 0.0
    %4217 = vmatprep.subr.mxu0 0.0
    %4218 = vmatpush1.msra.mxu0 0.0
    %4219 = vmatprep.subr.mxu0 0.0
    %4220 = vmatpush1.msra.mxu0 0.0
    %4221 = vmatprep.subr.mxu0 0.0
    %4222 = vmatpush1.msra.mxu0 0.0
    %4223 = vmatprep.subr.mxu0 0.0
    %4224 = vmatpush1.msra.mxu0 0.0
    %4225 = vmatprep.subr.mxu0 0.0
    %4226 = vmatpush1.msra.mxu0 0.0
    %4227 = vmatprep.subr.mxu0 0.0
    %4228 = vmatpush1.msra.mxu0 0.0
    %4229 = vmatprep.subr.mxu0 0.0
    %4230 = vmatpush1.msra.mxu0 0.0
    %4231 = vmatprep.subr.mxu0 0.0
    %4232 = vmatpush1.msra.mxu0 0.0
    %4233 = vmatprep.subr.mxu0 0.0
    %4234 = vmatpush1.msra.mxu0 0.0
    %4235 = vmatprep.subr.mxu0 0.0
    %4236 = vmatpush1.msra.mxu0 0.0
    %4237 = vmatprep.subr.mxu0 0.0
    %4238 = vmatpush1.msra.mxu0 0.0
    %4239 = vmatprep.subr.mxu0 0.0
    %4240 = vmatpush1.msra.mxu0 0.0
    %4241 = vmatprep.subr.mxu0 0.0
    %4242 = vmatpush1.msra.mxu0 0.0
    %4243 = vmatprep.subr.mxu0 0.0
    %4244 = vmatpush1.msra.mxu0 0.0
    %4245 = vmatprep.subr.mxu0 0.0
    %4246 = vmatpush1.msra.mxu0 0.0
    %4247 = vmatprep.mubr.f32.mxu0 0.0
    %4248 = vmatmul.mubr.f32.gmra.mrb[0].mxu0 %v3947
    %v4249 = vpop.f32.mrb[0].mxu0
    %v4250 = vadd.f32 %v1635, %v4249
    %v4251 = vpop.f32.mrb[0].mxu0
    %v4252 = vadd.f32 %v1635, %v4251
    %4253 = vmatprep.mubr.f32.mxu0 0.0
    %4254 = vmatmul.mubr.f32.gmra.mrb[0].mxu0 %v3950
    %v4255 = vpop.f32.mrb[0].mxu0
    %v4256 = vadd.f32 %v1640, %v4255
    %v4257 = vpop.f32.mrb[0].mxu0
    %v4258 = vadd.f32 %v1640, %v4257
    %4259 = vdwg.mxu0
    %v4260 = vld [vmem:[%s9] sm:$0xff]
    %v4261 = vld [vmem:[%s9 + $0x8] sm:$0xff]
    %4263 = vset.pattern.permute.xlu0 0
    %4264 = vperm.xlu0 %4263, %v4260
    %v4265 = vpop.permute.xlu0 %4264
    %4268 = vset.pattern.permute.xlu0 0
    %4269 = vperm.xlu0 %4268, %v4261
    %v4270 = vpop.permute.xlu0 %4269
    %v4272 = vadd.f32 %v4019, %v4265
    %v4273 = vadd.f32 %v4021, %v4265
    %v4274 = vadd.f32 %v4096, %v4265
    %v4275 = vadd.f32 %v4098, %v4265
    %v4276 = vadd.f32 %v4173, %v4265
    %v4277 = vadd.f32 %v4175, %v4265
    %v4278 = vadd.f32 %v4250, %v4265
    %v4279 = vadd.f32 %v4252, %v4265
    %v4280 = vadd.f32 %v4025, %v4270
    %v4281 = vadd.f32 %v4027, %v4270
    %v4282 = vadd.f32 %v4102, %v4270
    %v4283 = vadd.f32 %v4104, %v4270
    %v4284 = vadd.f32 %v4179, %v4270
    %v4285 = vadd.f32 %v4181, %v4270
    %v4286 = vadd.f32 %v4256, %v4270
    %v4287 = vadd.f32 %v4258, %v4270
    %v4288 = vtanh.pop %v4272
    %v4289 = vtanh.pop %v4273
    %v4290 = vtanh.pop %v4274
    %v4291 = vtanh.pop %v4275
    %v4292 = vtanh.pop %v4276
    %v4293 = vtanh.pop %v4277
    %v4294 = vtanh.pop %v4278
    %v4295 = vtanh.pop %v4279
    %v4296 = vtanh.pop %v4280
    %v4297 = vtanh.pop %v4281
    %v4298 = vtanh.pop %v4282
    %v4299 = vtanh.pop %v4283
    %v4300 = vtanh.pop %v4284
    %v4301 = vtanh.pop %v4285
    %v4302 = vtanh.pop %v4286
    %v4303 = vtanh.pop %v4287
    %v4304 = vmax.f32 %v4288, %v4296
    %v4305 = vrot.slane %v4304, 4
    %v4306 = vmax.f32 %v4304, %v4305
    %v4307 = vrot.slane %v4306, 2
    %v4308 = vmax.f32 %v4306, %v4307
    %v4309 = vrot.slane %v4308, 1
    %v4310 = vmax.f32 %v4308, %v4309
    %v4311 = vmax.f32 %v4289, %v4297
    %v4312 = vrot.slane %v4311, 4
    %v4313 = vmax.f32 %v4311, %v4312
    %v4314 = vrot.slane %v4313, 2
    %v4315 = vmax.f32 %v4313, %v4314
    %v4316 = vrot.slane %v4315, 1
    %v4317 = vmax.f32 %v4315, %v4316
    %v4318 = vmax.f32 %v4290, %v4298
    %v4319 = vrot.slane %v4318, 4
    %v4320 = vmax.f32 %v4318, %v4319
    %v4321 = vrot.slane %v4320, 2
    %v4322 = vmax.f32 %v4320, %v4321
    %v4323 = vrot.slane %v4322, 1
    %v4324 = vmax.f32 %v4322, %v4323
    %v4325 = vmax.f32 %v4291, %v4299
    %v4326 = vrot.slane %v4325, 4
    %v4327 = vmax.f32 %v4325, %v4326
    %v4328 = vrot.slane %v4327, 2
    %v4329 = vmax.f32 %v4327, %v4328
    %v4330 = vrot.slane %v4329, 1
    %v4331 = vmax.f32 %v4329, %v4330
    %v4332 = vmax.f32 %v4292, %v4300
    %v4333 = vrot.slane %v4332, 4
    %v4334 = vmax.f32 %v4332, %v4333
    %v4335 = vrot.slane %v4334, 2
    %v4336 = vmax.f32 %v4334, %v4335
    %v4337 = vrot.slane %v4336, 1
    %v4338 = vmax.f32 %v4336, %v4337
    %v4339 = vmax.f32 %v4293, %v4301
    %v4340 = vrot.slane %v4339, 4
    %v4341 = vmax.f32 %v4339, %v4340
    %v4342 = vrot.slane %v4341, 2
    %v4343 = vmax.f32 %v4341, %v4342
    %v4344 = vrot.slane %v4343, 1
    %v4345 = vmax.f32 %v4343, %v4344
    %v4346 = vmax.f32 %v4294, %v4302
    %v4347 = vrot.slane %v4346, 4
    %v4348 = vmax.f32 %v4346, %v4347
    %v4349 = vrot.slane %v4348, 2
    %v4350 = vmax.f32 %v4348, %v4349
    %v4351 = vrot.slane %v4350, 1
    %v4352 = vmax.f32 %v4350, %v4351
    %v4353 = vmax.f32 %v4295, %v4303
    %v4354 = vrot.slane %v4353, 4
    %v4355 = vmax.f32 %v4353, %v4354
    %v4356 = vrot.slane %v4355, 2
    %v4357 = vmax.f32 %v4355, %v4356
    %v4358 = vrot.slane %v4357, 1
    %v4359 = vmax.f32 %v4357, %v4358
    %v4360 = vsub.f32 %v4288, %v4310
    %v4361 = vsub.f32 %v4289, %v4317
    %v4362 = vsub.f32 %v4290, %v4324
    %v4363 = vsub.f32 %v4291, %v4331
    %v4364 = vsub.f32 %v4292, %v4338
    %v4365 = vsub.f32 %v4293, %v4345
    %v4366 = vsub.f32 %v4294, %v4352
    %v4367 = vsub.f32 %v4295, %v4359
    %v4368 = vsub.f32 %v4296, %v4310
    %v4369 = vsub.f32 %v4297, %v4317
    %v4370 = vsub.f32 %v4298, %v4324
    %v4371 = vsub.f32 %v4299, %v4331
    %v4372 = vsub.f32 %v4300, %v4338
    %v4373 = vsub.f32 %v4301, %v4345
    %v4374 = vsub.f32 %v4302, %v4352
    %v4375 = vsub.f32 %v4303, %v4359
    %v4376 = vmul.f32 %v4360, 1.442695
    %v4377 = vpow.pop %v4376
    %v4378 = vmul.f32 %v4361, 1.442695
    %v4379 = vpow.pop %v4378
    %v4380 = vmul.f32 %v4362, 1.442695
    %v4381 = vpow.pop %v4380
    %v4382 = vmul.f32 %v4363, 1.442695
    %v4383 = vpow.pop %v4382
    %v4384 = vmul.f32 %v4364, 1.442695
    %v4385 = vpow.pop %v4384
    %v4386 = vmul.f32 %v4365, 1.442695
    %v4387 = vpow.pop %v4386
    %v4388 = vmul.f32 %v4366, 1.442695
    %v4389 = vpow.pop %v4388
    %v4390 = vmul.f32 %v4367, 1.442695
    %v4391 = vpow.pop %v4390
    %v4392 = vmul.f32 %v4368, 1.442695
    %v4393 = vpow.pop %v4392
    %v4394 = vmul.f32 %v4369, 1.442695
    %v4395 = vpow.pop %v4394
    %v4396 = vmul.f32 %v4370, 1.442695
    %v4397 = vpow.pop %v4396
    %v4398 = vmul.f32 %v4371, 1.442695
    %v4399 = vpow.pop %v4398
    %v4400 = vmul.f32 %v4372, 1.442695
    %v4401 = vpow.pop %v4400
    %v4402 = vmul.f32 %v4373, 1.442695
    %v4403 = vpow.pop %v4402
    %v4404 = vmul.f32 %v4374, 1.442695
    %v4405 = vpow.pop %v4404
    %v4406 = vmul.f32 %v4375, 1.442695
    %v4407 = vpow.pop %v4406
    %v4408 = vadd.f32 %v4377, %v4393
    %v4409 = vrot.slane %v4408, 4
    %v4410 = vadd.f32 %v4408, %v4409
    %v4411 = vrot.slane %v4410, 2
    %v4412 = vadd.f32 %v4410, %v4411
    %v4413 = vrot.slane %v4412, 1
    %v4414 = vadd.f32 %v4412, %v4413
    %v4415 = vadd.f32 %v4379, %v4395
    %v4416 = vrot.slane %v4415, 4
    %v4417 = vadd.f32 %v4415, %v4416
    %v4418 = vrot.slane %v4417, 2
    %v4419 = vadd.f32 %v4417, %v4418
    %v4420 = vrot.slane %v4419, 1
    %v4421 = vadd.f32 %v4419, %v4420
    %v4422 = vadd.f32 %v4381, %v4397
    %v4423 = vrot.slane %v4422, 4
    %v4424 = vadd.f32 %v4422, %v4423
    %v4425 = vrot.slane %v4424, 2
    %v4426 = vadd.f32 %v4424, %v4425
    %v4427 = vrot.slane %v4426, 1
    %v4428 = vadd.f32 %v4426, %v4427
    %v4429 = vadd.f32 %v4383, %v4399
    %v4430 = vrot.slane %v4429, 4
    %v4431 = vadd.f32 %v4429, %v4430
    %v4432 = vrot.slane %v4431, 2
    %v4433 = vadd.f32 %v4431, %v4432
    %v4434 = vrot.slane %v4433, 1
    %v4435 = vadd.f32 %v4433, %v4434
    %v4436 = vadd.f32 %v4385, %v4401
    %v4437 = vrot.slane %v4436, 4
    %v4438 = vadd.f32 %v4436, %v4437
    %v4439 = vrot.slane %v4438, 2
    %v4440 = vadd.f32 %v4438, %v4439
    %v4441 = vrot.slane %v4440, 1
    %v4442 = vadd.f32 %v4440, %v4441
    %v4443 = vadd.f32 %v4387, %v4403
    %v4444 = vrot.slane %v4443, 4
    %v4445 = vadd.f32 %v4443, %v4444
    %v4446 = vrot.slane %v4445, 2
    %v4447 = vadd.f32 %v4445, %v4446
    %v4448 = vrot.slane %v4447, 1
    %v4449 = vadd.f32 %v4447, %v4448
    %v4450 = vadd.f32 %v4389, %v4405
    %v4451 = vrot.slane %v4450, 4
    %v4452 = vadd.f32 %v4450, %v4451
    %v4453 = vrot.slane %v4452, 2
    %v4454 = vadd.f32 %v4452, %v4453
    %v4455 = vrot.slane %v4454, 1
    %v4456 = vadd.f32 %v4454, %v4455
    %v4457 = vadd.f32 %v4391, %v4407
    %v4458 = vrot.slane %v4457, 4
    %v4459 = vadd.f32 %v4457, %v4458
    %v4460 = vrot.slane %v4459, 2
    %v4461 = vadd.f32 %v4459, %v4460
    %v4462 = vrot.slane %v4461, 1
    %v4463 = vadd.f32 %v4461, %v4462
    %v4464 = vrcp.pop %v4414
    %v4465 = vmul.f32 %v4377, %v4464
    %v4466 = vrcp.pop %v4421
    %v4467 = vmul.f32 %v4379, %v4466
    %v4468 = vrcp.pop %v4428
    %v4469 = vmul.f32 %v4381, %v4468
    %v4470 = vrcp.pop %v4435
    %v4471 = vmul.f32 %v4383, %v4470
    %v4472 = vrcp.pop %v4442
    %v4473 = vmul.f32 %v4385, %v4472
    %v4474 = vrcp.pop %v4449
    %v4475 = vmul.f32 %v4387, %v4474
    %v4476 = vrcp.pop %v4456
    %v4477 = vmul.f32 %v4389, %v4476
    %v4478 = vrcp.pop %v4463
    %v4479 = vmul.f32 %v4391, %v4478
    %v4480 = vmul.f32 %v4393, %v4464
    %v4481 = vmul.f32 %v4395, %v4466
    %v4482 = vmul.f32 %v4397, %v4468
    %v4483 = vmul.f32 %v4399, %v4470
    %v4484 = vmul.f32 %v4401, %v4472
    %v4485 = vmul.f32 %v4403, %v4474
    %v4486 = vmul.f32 %v4405, %v4476
    %v4487 = vmul.f32 %v4407, %v4478
    %v4488 = vmul.f32 %v4465, 16.0
    %v4489 = vmul.f32 %v4467, 16.0
    %v4490 = vmul.f32 %v4469, 16.0
    %v4491 = vmul.f32 %v4471, 16.0
    %v4492 = vmul.f32 %v4473, 16.0
    %v4493 = vmul.f32 %v4475, 16.0
    %v4494 = vmul.f32 %v4477, 16.0
    %v4495 = vmul.f32 %v4479, 16.0
    %v4496 = vmul.f32 %v4480, 16.0
    %v4497 = vmul.f32 %v4481, 16.0
    %v4498 = vmul.f32 %v4482, 16.0
    %v4499 = vmul.f32 %v4483, 16.0
    %v4500 = vmul.f32 %v4484, 16.0
    %v4501 = vmul.f32 %v4485, 16.0
    %v4502 = vmul.f32 %v4486, 16.0
    %v4503 = vmul.f32 %v4487, 16.0
    %v4504 = vmul.f32 %v4488, %v3928
    %v4505 = vmul.f32 %v4489, %v3929
    %v4506 = vmul.f32 %v4490, %v3930
    %v4507 = vmul.f32 %v4491, %v3931
    %v4508 = vmul.f32 %v4492, %v3932
    %v4509 = vmul.f32 %v4493, %v3933
    %v4510 = vmul.f32 %v4494, %v3934
    %v4511 = vmul.f32 %v4495, %v3935
    %v4512 = vmul.f32 %v4496, %v3936
    %v4513 = vmul.f32 %v4497, %v3937
    %v4514 = vmul.f32 %v4498, %v3938
    %v4515 = vmul.f32 %v4499, %v3939
    %v4516 = vmul.f32 %v4500, %v3940
    %v4517 = vmul.f32 %v4501, %v3941
    %v4518 = vmul.f32 %v4502, %v3942
    %v4519 = vmul.f32 %v4503, %v3943
    %v4520 = vld [vmem:[%s10] sm:$0xff]
    %v4521 = vld [vmem:[%s10 + $0x8] sm:$0xff]
    %4523 = vset.pattern.permute.xlu0 0
    %4524 = vperm.xlu0 %4523, %v4520
    %v4525 = vpop.permute.xlu0 %4524
    %4528 = vset.pattern.permute.xlu0 0
    %4529 = vperm.xlu0 %4528, %v4521
    %v4530 = vpop.permute.xlu0 %4529
    %v4532 = vmul.f32 %v4504, %v4525
    %v4533 = vmul.f32 %v4505, %v4525
    %v4534 = vmul.f32 %v4506, %v4525
    %v4535 = vmul.f32 %v4507, %v4525
    %v4536 = vmul.f32 %v4508, %v4525
    %v4537 = vmul.f32 %v4509, %v4525
    %v4538 = vmul.f32 %v4510, %v4525
    %v4539 = vmul.f32 %v4511, %v4525
    %v4540 = vmul.f32 %v4512, %v4530
    %v4541 = vmul.f32 %v4513, %v4530
    %v4542 = vmul.f32 %v4514, %v4530
    %v4543 = vmul.f32 %v4515, %v4530
    %v4544 = vmul.f32 %v4516, %v4530
    %v4545 = vmul.f32 %v4517, %v4530
    %v4546 = vmul.f32 %v4518, %v4530
    %v4547 = vmul.f32 %v4519, %v4530
    %v4548 = vadd.f32 %v4532, %v4540
    %v4549 = vrot.slane %v4548, 4
    %v4550 = vadd.f32 %v4548, %v4549
    %v4551 = vrot.slane %v4550, 2
    %v4552 = vadd.f32 %v4550, %v4551
    %v4553 = vrot.slane %v4552, 1
    %v4554 = vadd.f32 %v4552, %v4553
    %v4555 = vadd.f32 %v4533, %v4541
    %v4556 = vrot.slane %v4555, 4
    %v4557 = vadd.f32 %v4555, %v4556
    %v4558 = vrot.slane %v4557, 2
    %v4559 = vadd.f32 %v4557, %v4558
    %v4560 = vrot.slane %v4559, 1
    %v4561 = vadd.f32 %v4559, %v4560
    %v4562 = vadd.f32 %v4534, %v4542
    %v4563 = vrot.slane %v4562, 4
    %v4564 = vadd.f32 %v4562, %v4563
    %v4565 = vrot.slane %v4564, 2
    %v4566 = vadd.f32 %v4564, %v4565
    %v4567 = vrot.slane %v4566, 1
    %v4568 = vadd.f32 %v4566, %v4567
    %v4569 = vadd.f32 %v4535, %v4543
    %v4570 = vrot.slane %v4569, 4
    %v4571 = vadd.f32 %v4569, %v4570
    %v4572 = vrot.slane %v4571, 2
    %v4573 = vadd.f32 %v4571, %v4572
    %v4574 = vrot.slane %v4573, 1
    %v4575 = vadd.f32 %v4573, %v4574
    %v4576 = vadd.f32 %v4536, %v4544
    %v4577 = vrot.slane %v4576, 4
    %v4578 = vadd.f32 %v4576, %v4577
    %v4579 = vrot.slane %v4578, 2
    %v4580 = vadd.f32 %v4578, %v4579
    %v4581 = vrot.slane %v4580, 1
    %v4582 = vadd.f32 %v4580, %v4581
    %v4583 = vadd.f32 %v4537, %v4545
    %v4584 = vrot.slane %v4583, 4
    %v4585 = vadd.f32 %v4583, %v4584
    %v4586 = vrot.slane %v4585, 2
    %v4587 = vadd.f32 %v4585, %v4586
    %v4588 = vrot.slane %v4587, 1
    %v4589 = vadd.f32 %v4587, %v4588
    %v4590 = vadd.f32 %v4538, %v4546
    %v4591 = vrot.slane %v4590, 4
    %v4592 = vadd.f32 %v4590, %v4591
    %v4593 = vrot.slane %v4592, 2
    %v4594 = vadd.f32 %v4592, %v4593
    %v4595 = vrot.slane %v4594, 1
    %v4596 = vadd.f32 %v4594, %v4595
    %v4597 = vadd.f32 %v4539, %v4547
    %v4598 = vrot.slane %v4597, 4
    %v4599 = vadd.f32 %v4597, %v4598
    %v4600 = vrot.slane %v4599, 2
    %v4601 = vadd.f32 %v4599, %v4600
    %v4602 = vrot.slane %v4601, 1
    %v4603 = vadd.f32 %v4601, %v4602
    %v4604 = vld [vmem:[#allocation4] sm:$0x1]
    %4606 = vset.pattern.permute.xlu0 0
    %4607 = vperm.xlu0 %4606, %v4604
    %v4608 = vpop.permute.xlu0 %4607
    %v4610 = vlaneseq
    %v4611 = vshrl.u32 %v4610, 7
    %v4612 = vsub.s32 0, %v4611
    %v4613 = vrot.slane %v4608, %v4612
    %v4614 = vadd.f32 %v4554, %v4613
    %v4615 = vadd.f32 %v4561, %v4613
    %v4616 = vadd.f32 %v4568, %v4613
    %v4617 = vadd.f32 %v4575, %v4613
    %v4618 = vadd.f32 %v4582, %v4613
    %v4619 = vadd.f32 %v4589, %v4613
    %v4620 = vadd.f32 %v4596, %v4613
    %v4621 = vadd.f32 %v4603, %v4613
    %vm4622 = vcmask 1040384
    %v4623 = vsel %vm4622, %v4614, %v4615
    %vm4624 = vcmask 1041408
    %v4625 = vsel %vm4624, %v4623, %v4616
    %vm4626 = vcmask 1042432
    %v4627 = vsel %vm4626, %v4625, %v4617
    %v4628 = vsel %vm1756, %v4627, %v4618
    %vm4629 = vcmask 1044480
    %v4630 = vsel %vm4629, %v4628, %v4619
    %vm4631 = vcmask 1045504
    %v4632 = vsel %vm4631, %v4630, %v4620
    %vm4633 = vcmask 1046528
    %v4634 = vsel %vm4633, %v4632, %v4621
    %4635 = vst [vmem:[#allocation5] sm:$0xff] %v4634
    // Predicated region
    $region62: #{tpu_custom_call.1} parent=1 // pred_check
      _
    $region63: #{tpu_custom_call.1} parent=1 // pred_check_branch
      %4637 = sbr.rel (0) target = $region65
    $region64: #{tpu_custom_call.1} parent=1 // pred_region
      %s4639 = ssub.s32 128, 128
      %4640 = vsyncadd [#allocation6], %s4639
      %s4642 = sshll.u32 [#allocation5], 4
      %s4643 = int_to_ptr.vmem [resolvable:$true] %s4642
      %4645 = dma.vmem_to_hbm [thread:$0]  %s4643, 128, %s15, [#allocation6]
    $region65: #{tpu_custom_call.1} parent=1 // pred_fallthru
      _
    // Predicated region
    $region66: #{tpu_custom_call.1} parent=1 // pred_check
      _
    $region67: #{tpu_custom_call.1} parent=1 // pred_check_branch
      %4647 = sbr.rel (0) target = $region69
    $region68: #{tpu_custom_call.1} parent=1 // pred_region
      %4648 = dma.done [#allocation6], 128
    $region69: #{tpu_custom_call.1} parent=1 // pred_fallthru
      _
    %4649 = vsyncpa [#allocation6], 1

</llo_original>
